<compile_context>
chip_gen: v7x
topology: tpu7x:2x2x1
jax: 0.10.0
libtpu: 0.0.40
codegen_flags: <defaults>
</compile_context>

<pallas_src>
import jax
import jax.numpy as jnp
from jax.experimental import pallas as pl
from jax.experimental.pallas import tpu as pltpu


# ----------------------------- kernel --------------------------------------


def _simclr_fused_kernel(xi_ref, xj_ref, w_enc_ref, w1_ref, w2_ref,
                         hi_ref, hj_ref, zi_ref, zj_ref):
    """h = x @ W_enc (accumulated over K into the fp32 h outputs);
    z = relu(h @ W1) @ W2 computed on the last K step."""
    k = pl.program_id(1)
    cdt = w_enc_ref.dtype  # bf16 MXU operands, fp32 accumulation

    w_enc = w_enc_ref[...]
    # x arrives fp32 from HBM; cast to bf16 on the VPU (no extra XLA pass).
    pi = jnp.dot(xi_ref[...].astype(cdt), w_enc, preferred_element_type=jnp.float32)
    pj = jnp.dot(xj_ref[...].astype(cdt), w_enc, preferred_element_type=jnp.float32)

    @pl.when(k == 0)
    def _first():
        hi_ref[...] = pi
        hj_ref[...] = pj

    @pl.when(k > 0)
    def _accumulate():
        hi_ref[...] += pi
        hj_ref[...] += pj

    @pl.when(k == pl.num_programs(1) - 1)
    def _project():
        w1 = w1_ref[...]
        w2 = w2_ref[...]

        def proj(h):
            a = jnp.dot(h.astype(cdt), w1, preferred_element_type=jnp.float32)
            a = jnp.maximum(a, 0.0)  # ReLU
            return jnp.dot(a.astype(cdt), w2, preferred_element_type=jnp.float32)

        zi_ref[...] = proj(hi_ref[...]).astype(zi_ref.dtype)
        zj_ref[...] = proj(hj_ref[...]).astype(zj_ref.dtype)


# ----------------------------- tiling helpers -------------------------------


def _default_vmem_limit():
    """~half of physical VMEM: ~64 MiB on 128 MiB parts (v5e/v6e), 32 MiB on v7x."""
    try:
        info = pltpu.get_tpu_info()
        cap = getattr(info, "vmem_capacity_bytes", None)
        if cap:
            return int(max(32 << 20, min(64 << 20, cap // 2)))
    except Exception:
        pass
    return 32 << 20


def _pick_tb(batch):
    """Per-view batch tile: fill MXU rows; >=2 tiles at realistic batch for megacore."""
    if batch <= 256:
        return batch
    for t in (256, 128, 64, 32, 16, 8):
        if batch % t == 0:
            return t
    return batch


def _pick_tk(f_in, n_feat, proj_dim, tb, budget_bytes):
    """Prefer collapsing the K grid to one step; fall back to K-streaming for large f_in."""
    fixed = (n_feat * n_feat + n_feat * proj_dim) * 2        # W1 + W2, bf16, single-buffered
    fixed += 2 * 2 * tb * (n_feat + proj_dim) * 4            # h/z output blocks (x2 buffers, fp32)

    def footprint(tk, wenc_bufs):
        x_bytes = 2 * 2 * tb * tk * 4                        # x_i + x_j tiles, double-buffered fp32
        return fixed + x_bytes + wenc_bufs * tk * n_feat * 2

    if footprint(f_in, 1) <= budget_bytes:
        return f_in                                          # single K step: no acc loop overhead
    for tk in (8192, 4096, 2048, 1024, 512, 256, 128):
        if tk < f_in and f_in % tk == 0 and footprint(tk, 2) <= budget_bytes:
            return tk
    return f_in


# ----------------------------- wrapper --------------------------------------


def simclr_fused(x_i2d, x_j2d, w_enc, w1, w2):
    """One fused pallas_call: encoder + projector for both views."""
    B, f_in = x_i2d.shape
    assert x_j2d.shape == (B, f_in)
    assert w_enc.shape[0] == f_in
    n_feat = w_enc.shape[1]
    proj_dim = w2.shape[1]

    # Params are expected to be stored in bf16 (cast once at init); be forgiving.
    cdt = jnp.bfloat16
    w_enc = w_enc if w_enc.dtype == cdt else w_enc.astype(cdt)
    w1 = w1 if w1.dtype == cdt else w1.astype(cdt)
    w2 = w2 if w2.dtype == cdt else w2.astype(cdt)

    vmem_limit = _default_vmem_limit()
    tb = _pick_tb(B)
    tk = _pick_tk(f_in, n_feat, proj_dim, tb, budget_bytes=int(0.7 * vmem_limit))
    assert B % tb == 0 and f_in % tk == 0, "batch / f_in must tile evenly"

    m_tiles = B // tb
    k_tiles = f_in // tk
    grid = (m_tiles, k_tiles)  # (parallel M tiles, arbitrary K reduction; K last)

    flops = 2 * (2 * B) * (f_in * n_feat + n_feat * n_feat + n_feat * proj_dim)
    w_enc_passes = 1 if k_tiles == 1 else m_tiles            # re-streamed per M pass when K-streaming
    bytes_accessed = (
        2 * B * f_in * 4                                     # x_i + x_j fp32 reads (once each)
        + w_enc_passes * f_in * n_feat * 2                   # W_enc bf16 reads
        + (n_feat * n_feat + n_feat * proj_dim) * 2          # W1, W2 bf16 reads (once)
        + 2 * B * (n_feat + proj_dim) * 4                    # h, z fp32 writes
    )

    out_shape = (
        jax.ShapeDtypeStruct((B, n_feat), jnp.float32),      # h_i
        jax.ShapeDtypeStruct((B, n_feat), jnp.float32),      # h_j
        jax.ShapeDtypeStruct((B, proj_dim), jnp.float32),    # z_i
        jax.ShapeDtypeStruct((B, proj_dim), jnp.float32),    # z_j
    )

    def build(single_buffer_resident):
        def resident_spec(shape):
            if single_buffer_resident:
                return pl.BlockSpec(shape, lambda m, k: (0, 0),
                                    pipeline_mode=pl.Buffered(1))
            return pl.BlockSpec(shape, lambda m, k: (0, 0))

        if k_tiles == 1 and single_buffer_resident:
            # W_enc index is constant when K is collapsed -> single buffer is enough.
            w_enc_spec = pl.BlockSpec((tk, n_feat), lambda m, k: (k, 0),
                                      pipeline_mode=pl.Buffered(1))
        else:
            w_enc_spec = pl.BlockSpec((tk, n_feat), lambda m, k: (k, 0))

        return pl.pallas_call(
            _simclr_fused_kernel,
            out_shape=out_shape,
            grid_spec=pltpu.PrefetchScalarGridSpec(
                num_scalar_prefetch=0,
                grid=grid,
                in_specs=[
                    pl.BlockSpec((tb, tk), lambda m, k: (m, k)),    # x_i tile (fp32)
                    pl.BlockSpec((tb, tk), lambda m, k: (m, k)),    # x_j tile (fp32)
                    w_enc_spec,                                     # W_enc (streams over K)
                    resident_spec((n_feat, n_feat)),                # W1 (resident)
                    resident_spec((n_feat, proj_dim)),              # W2 (resident)
                ],
                out_specs=[
                    pl.BlockSpec((tb, n_feat), lambda m, k: (m, 0)),    # h_i (acc over K)
                    pl.BlockSpec((tb, n_feat), lambda m, k: (m, 0)),    # h_j (acc over K)
                    pl.BlockSpec((tb, proj_dim), lambda m, k: (m, 0)),  # z_i
                    pl.BlockSpec((tb, proj_dim), lambda m, k: (m, 0)),  # z_j
                ],
            ),
            compiler_params=pltpu.CompilerParams(
                dimension_semantics=("parallel", "arbitrary"),
                vmem_limit_bytes=vmem_limit,
            ),
            cost_estimate=pl.CostEstimate(
                flops=flops, transcendentals=0, bytes_accessed=bytes_accessed
            ),
        )

    try:
        return build(True)(x_i2d, x_j2d, w_enc, w1, w2)
    except Exception:
        # Fallback for environments where pipeline_mode / Buffered(1) is unsupported.
        return build(False)(x_i2d, x_j2d, w_enc, w1, w2)


def simclr_forward(x_i, x_j, params):
    """Mirrors SimCLR.forward: returns (h_i, h_j, z_i, z_j)."""
    B = x_i.shape[0]
    x_i2d = x_i.reshape(B, -1)   # free metadata reshape of contiguous NCHW
    x_j2d = x_j.reshape(B, -1)
    return simclr_fused(x_i2d, x_j2d, params["w_enc"], params["w1"], params["w2"])


# ----------------------------- setup ----------------------------------------


def make_params(key, f_in, n_features, projection_dim):
    k_enc, k1, k2 = jax.random.split(key, 3)
    # PyTorch nn.Linear stores weight as (out, in) and computes x @ W.T; we
    # materialize the (in, out) transposed weights directly, and store them in
    # bf16 once here (not per forward call).
    w_enc = jax.random.normal(k_enc, (f_in, n_features), jnp.float32) / jnp.sqrt(f_in)
    w1 = jax.random.normal(k1, (n_features, n_features), jnp.float32) / jnp.sqrt(
        n_features
    )
    w2 = jax.random.normal(k2, (n_features, projection_dim), jnp.float32) / jnp.sqrt(
        n_features
    )
    return {
        "w_enc": w_enc.astype(jnp.bfloat16),
        "w1": w1.astype(jnp.bfloat16),
        "w2": w2.astype(jnp.bfloat16),
    }


if __name__ == "__main__":
    # Small shapes consistent with the module (n_features / projection_dim
    # scaled down for the synthetic test; all lane dims are multiples of 128).
    B, C, H, W = 8, 4, 16, 16
    n_features = 256
    projection_dim = 128
    f_in = C * H * W  # 1024

    key = jax.random.PRNGKey(0)
    kx_i, kx_j, kp = jax.random.split(key, 3)
    x_i = jax.random.normal(kx_i, (B, C, H, W), jnp.float32)  # NCHW like PyTorch
    x_j = jax.random.normal(kx_j, (B, C, H, W), jnp.float32)
    params = make_params(kp, f_in, n_features, projection_dim)

    h_i, h_j, z_i, z_j = simclr_forward(x_i, x_j, params)
    jax.block_until_ready((h_i, h_j, z_i, z_j))

    # Reference in plain JAX with identical bf16-operand / fp32-accumulate math.
    def ref(x):
        bf = jnp.bfloat16
        xb = x.reshape(x.shape[0], -1).astype(bf)
        h = jnp.dot(xb, params["w_enc"], preferred_element_type=jnp.float32)
        a = jnp.dot(h.astype(bf), params["w1"], preferred_element_type=jnp.float32)
        a = jnp.maximum(a, 0.0)
        z = jnp.dot(a.astype(bf), params["w2"], preferred_element_type=jnp.float32)
        return h, z

    h_i_ref, z_i_ref = ref(x_i)
    h_j_ref, z_j_ref = ref(x_j)

    assert h_i.shape == (B, n_features) and h_j.shape == (B, n_features)
    assert z_i.shape == (B, projection_dim) and z_j.shape == (B, projection_dim)

    # Tolerances sized for chained bf16-operand matmuls (bf16 ulp ~ 4e-3 relative;
    # re-rounding h and a to bf16 amplifies tiny accumulation-order differences).
    tol = dict(atol=2e-2, rtol=2e-2)
    assert jnp.allclose(h_i, h_i_ref, **tol)
    assert jnp.allclose(h_j, h_j_ref, **tol)
    assert jnp.allclose(z_i, z_i_ref, **tol)
    assert jnp.allclose(z_j, z_j_ref, **tol)

    # TODO(synk): the real SimCLR encoder is an injected ResNet; only a bias-free
    # linear stand-in encoder on the flattened input is implemented here.
    print("KERNEL_OK")
</pallas_src>

<mosaic_0001>
module attributes {stable_mosaic.version = 11 : i64} {
  func.func @_simclr_fused_kernel(%arg0: i32, %arg1: i32, %arg2: memref<8x1024xf32, #tpu.memory_space<vmem>>, %arg3: memref<8x1024xf32, #tpu.memory_space<vmem>>, %arg4: memref<1024x256xbf16, #tpu.memory_space<vmem>>, %arg5: memref<256x256xbf16, #tpu.memory_space<vmem>>, %arg6: memref<256x128xbf16, #tpu.memory_space<vmem>>, %arg7: memref<8x256xf32, #tpu.memory_space<vmem>>, %arg8: memref<8x256xf32, #tpu.memory_space<vmem>>, %arg9: memref<8x128xf32, #tpu.memory_space<vmem>>, %arg10: memref<8x128xf32, #tpu.memory_space<vmem>>) attributes {dimension_semantics = [#tpu.dimension_semantics<parallel>, #tpu.dimension_semantics<arbitrary>], iteration_bounds = array<i64: 1, 1>, scalar_prefetch = 0 : i64, scratch_operands = 0 : i64, tpu.core_type = #tpu.core_type<tc>, window_params = [{transform_indices = @transform_0, window_bounds = array<i64: 8, 1024>}, {transform_indices = @transform_1, window_bounds = array<i64: 8, 1024>}, {pipeline_mode = #tpu.pipeline_mode<synchronous>, transform_indices = @transform_2, window_bounds = array<i64: 1024, 256>}, {pipeline_mode = #tpu.pipeline_mode<synchronous>, transform_indices = @transform_3, window_bounds = array<i64: 256, 256>}, {pipeline_mode = #tpu.pipeline_mode<synchronous>, transform_indices = @transform_4, window_bounds = array<i64: 256, 128>}, {transform_indices = @transform_5, window_bounds = array<i64: 8, 256>}, {transform_indices = @transform_6, window_bounds = array<i64: 8, 256>}, {transform_indices = @transform_7, window_bounds = array<i64: 8, 128>}, {transform_indices = @transform_8, window_bounds = array<i64: 8, 128>}]} {
    %c0 = arith.constant 0 : index
    %c0_0 = arith.constant 0 : index
    %0 = vector.load %arg4[%c0, %c0_0] : memref<1024x256xbf16, #tpu.memory_space<vmem>>, vector<1024x256xbf16>
    %c0_1 = arith.constant 0 : index
    %c0_2 = arith.constant 0 : index
    %1 = vector.load %arg2[%c0_1, %c0_2] : memref<8x1024xf32, #tpu.memory_space<vmem>>, vector<8x1024xf32>
    %2 = arith.truncf %1 : vector<8x1024xf32> to vector<8x1024xbf16>
    %cst = arith.constant dense<0.000000e+00> : vector<8x256xf32>
    %3 = tpu.matmul %2, %0, %cst {dimension_numbers = #tpu.dot_dimension_numbers<[1], [0], [0], [1], [0, 0, 1, 1], [], []>} : vector<8x1024xbf16>, vector<1024x256xbf16>, vector<8x256xf32> -> vector<8x256xf32>
    %c0_3 = arith.constant 0 : index
    %c0_4 = arith.constant 0 : index
    %4 = vector.load %arg3[%c0_3, %c0_4] : memref<8x1024xf32, #tpu.memory_space<vmem>>, vector<8x1024xf32>
    %5 = arith.truncf %4 : vector<8x1024xf32> to vector<8x1024xbf16>
    %cst_5 = arith.constant dense<0.000000e+00> : vector<8x256xf32>
    %6 = tpu.matmul %5, %0, %cst_5 {dimension_numbers = #tpu.dot_dimension_numbers<[1], [0], [0], [1], [0, 0, 1, 1], [], []>} : vector<8x1024xbf16>, vector<1024x256xbf16>, vector<8x256xf32> -> vector<8x256xf32>
    %c0_i32 = arith.constant 0 : i32
    %7 = arith.cmpi eq, %arg1, %c0_i32 : i32
    %8 = arith.extui %7 : i1 to i32
    %c0_i32_6 = arith.constant 0 : i32
    %9 = arith.cmpi ne, %8, %c0_i32_6 : i32
    scf.if %9 {
      %c0_11 = arith.constant 0 : index
      %c0_12 = arith.constant 0 : index
      %16 = vector.load %arg7[%c0_11, %c0_12] : memref<8x256xf32, #tpu.memory_space<vmem>>, vector<8x256xf32>
      tpu.vector_store %arg7[%c0_11, %c0_12], %3 {strides = array<i32>} : memref<8x256xf32, #tpu.memory_space<vmem>>, vector<8x256xf32>,
      %c0_13 = arith.constant 0 : index
      %c0_14 = arith.constant 0 : index
      %17 = vector.load %arg8[%c0_13, %c0_14] : memref<8x256xf32, #tpu.memory_space<vmem>>, vector<8x256xf32>
      tpu.vector_store %arg8[%c0_13, %c0_14], %6 {strides = array<i32>} : memref<8x256xf32, #tpu.memory_space<vmem>>, vector<8x256xf32>,
    } else {
    }
    %c0_i32_7 = arith.constant 0 : i32
    %10 = arith.cmpi sgt, %arg1, %c0_i32_7 : i32
    %11 = arith.extui %10 : i1 to i32
    %c0_i32_8 = arith.constant 0 : i32
    %12 = arith.cmpi ne, %11, %c0_i32_8 : i32
    scf.if %12 {
      %c0_11 = arith.constant 0 : index
      %c0_12 = arith.constant 0 : index
      %16 = vector.load %arg7[%c0_11, %c0_12] : memref<8x256xf32, #tpu.memory_space<vmem>>, vector<8x256xf32>
      %17 = arith.addf %16, %3 : vector<8x256xf32>
      %c0_13 = arith.constant 0 : index
      %c0_14 = arith.constant 0 : index
      %18 = vector.load %arg7[%c0_13, %c0_14] : memref<8x256xf32, #tpu.memory_space<vmem>>, vector<8x256xf32>
      tpu.vector_store %arg7[%c0_13, %c0_14], %17 {strides = array<i32>} : memref<8x256xf32, #tpu.memory_space<vmem>>, vector<8x256xf32>,
      %c0_15 = arith.constant 0 : index
      %c0_16 = arith.constant 0 : index
      %19 = vector.load %arg8[%c0_15, %c0_16] : memref<8x256xf32, #tpu.memory_space<vmem>>, vector<8x256xf32>
      %20 = arith.addf %19, %6 : vector<8x256xf32>
      %c0_17 = arith.constant 0 : index
      %c0_18 = arith.constant 0 : index
      %21 = vector.load %arg8[%c0_17, %c0_18] : memref<8x256xf32, #tpu.memory_space<vmem>>, vector<8x256xf32>
      tpu.vector_store %arg8[%c0_17, %c0_18], %20 {strides = array<i32>} : memref<8x256xf32, #tpu.memory_space<vmem>>, vector<8x256xf32>,
    } else {
    }
    %c0_i32_9 = arith.constant 0 : i32
    %13 = arith.cmpi eq, %arg1, %c0_i32_9 : i32
    %14 = arith.extui %13 : i1 to i32
    %c0_i32_10 = arith.constant 0 : i32
    %15 = arith.cmpi ne, %14, %c0_i32_10 : i32
    scf.if %15 {
      %c0_11 = arith.constant 0 : index
      %c0_12 = arith.constant 0 : index
      %16 = vector.load %arg5[%c0_11, %c0_12] : memref<256x256xbf16, #tpu.memory_space<vmem>>, vector<256x256xbf16>
      %c0_13 = arith.constant 0 : index
      %c0_14 = arith.constant 0 : index
      %17 = vector.load %arg6[%c0_13, %c0_14] : memref<256x128xbf16, #tpu.memory_space<vmem>>, vector<256x128xbf16>
      %c0_15 = arith.constant 0 : index
      %c0_16 = arith.constant 0 : index
      %18 = vector.load %arg7[%c0_15, %c0_16] : memref<8x256xf32, #tpu.memory_space<vmem>>, vector<8x256xf32>
      %19 = arith.truncf %18 : vector<8x256xf32> to vector<8x256xbf16>
      %cst_17 = arith.constant dense<0.000000e+00> : vector<8x256xf32>
      %20 = tpu.matmul %19, %16, %cst_17 {dimension_numbers = #tpu.dot_dimension_numbers<[1], [0], [0], [1], [0, 0, 1, 1], [], []>} : vector<8x256xbf16>, vector<256x256xbf16>, vector<8x256xf32> -> vector<8x256xf32>
      %cst_18 = arith.constant 0.000000e+00 : f32
      %21 = vector.broadcast %cst_18 : f32 to vector<8x256xf32>
      %22 = arith.maximumf %20, %21 : vector<8x256xf32>
      %23 = arith.truncf %22 : vector<8x256xf32> to vector<8x256xbf16>
      %cst_19 = arith.constant dense<0.000000e+00> : vector<8x128xf32>
      %24 = tpu.matmul %23, %17, %cst_19 {dimension_numbers = #tpu.dot_dimension_numbers<[1], [0], [0], [1], [0, 0, 1, 1], [], []>} : vector<8x256xbf16>, vector<256x128xbf16>, vector<8x128xf32> -> vector<8x128xf32>
      %c0_20 = arith.constant 0 : index
      %c0_21 = arith.constant 0 : index
      %25 = vector.load %arg9[%c0_20, %c0_21] : memref<8x128xf32, #tpu.memory_space<vmem>>, vector<8x128xf32>
      tpu.vector_store %arg9[%c0_20, %c0_21], %24 {strides = array<i32>} : memref<8x128xf32, #tpu.memory_space<vmem>>, vector<8x128xf32>,
      %c0_22 = arith.constant 0 : index
      %c0_23 = arith.constant 0 : index
      %26 = vector.load %arg8[%c0_22, %c0_23] : memref<8x256xf32, #tpu.memory_space<vmem>>, vector<8x256xf32>
      %27 = arith.truncf %26 : vector<8x256xf32> to vector<8x256xbf16>
      %cst_24 = arith.constant dense<0.000000e+00> : vector<8x256xf32>
      %28 = tpu.matmul %27, %16, %cst_24 {dimension_numbers = #tpu.dot_dimension_numbers<[1], [0], [0], [1], [0, 0, 1, 1], [], []>} : vector<8x256xbf16>, vector<256x256xbf16>, vector<8x256xf32> -> vector<8x256xf32>
      %cst_25 = arith.constant 0.000000e+00 : f32
      %29 = vector.broadcast %cst_25 : f32 to vector<8x256xf32>
      %30 = arith.maximumf %28, %29 : vector<8x256xf32>
      %31 = arith.truncf %30 : vector<8x256xf32> to vector<8x256xbf16>
      %cst_26 = arith.constant dense<0.000000e+00> : vector<8x128xf32>
      %32 = tpu.matmul %31, %17, %cst_26 {dimension_numbers = #tpu.dot_dimension_numbers<[1], [0], [0], [1], [0, 0, 1, 1], [], []>} : vector<8x256xbf16>, vector<256x128xbf16>, vector<8x128xf32> -> vector<8x128xf32>
      %c0_27 = arith.constant 0 : index
      %c0_28 = arith.constant 0 : index
      %33 = vector.load %arg10[%c0_27, %c0_28] : memref<8x128xf32, #tpu.memory_space<vmem>>, vector<8x128xf32>
      tpu.vector_store %arg10[%c0_27, %c0_28], %32 {strides = array<i32>} : memref<8x128xf32, #tpu.memory_space<vmem>>, vector<8x128xf32>,
    } else {
    }
    return
  }
  func.func @transform_0(%arg0: i32, %arg1: i32) -> (i32, i32) {
    %c0_i32 = arith.constant 0 : i32
    return %arg0, %arg1 : i32, i32
  }
  func.func @transform_1(%arg0: i32, %arg1: i32) -> (i32, i32) {
    %c0_i32 = arith.constant 0 : i32
    return %arg0, %arg1 : i32, i32
  }
  func.func @transform_2(%arg0: i32, %arg1: i32) -> (i32, i32) {
    %c0_i32 = arith.constant 0 : i32
    %c0_i32_0 = arith.constant 0 : i32
    return %arg1, %c0_i32 : i32, i32
  }
  func.func @transform_3(%arg0: i32, %arg1: i32) -> (i32, i32) {
    %c0_i32 = arith.constant 0 : i32
    %c0_i32_0 = arith.constant 0 : i32
    %c0_i32_1 = arith.constant 0 : i32
    return %c0_i32, %c0_i32_0 : i32, i32
  }
  func.func @transform_4(%arg0: i32, %arg1: i32) -> (i32, i32) {
    %c0_i32 = arith.constant 0 : i32
    %c0_i32_0 = arith.constant 0 : i32
    %c0_i32_1 = arith.constant 0 : i32
    return %c0_i32, %c0_i32_0 : i32, i32
  }
  func.func @transform_5(%arg0: i32, %arg1: i32) -> (i32, i32) {
    %c0_i32 = arith.constant 0 : i32
    %c0_i32_0 = arith.constant 0 : i32
    return %arg0, %c0_i32 : i32, i32
  }
  func.func @transform_6(%arg0: i32, %arg1: i32) -> (i32, i32) {
    %c0_i32 = arith.constant 0 : i32
    %c0_i32_0 = arith.constant 0 : i32
    return %arg0, %c0_i32 : i32, i32
  }
  func.func @transform_7(%arg0: i32, %arg1: i32) -> (i32, i32) {
    %c0_i32 = arith.constant 0 : i32
    %c0_i32_0 = arith.constant 0 : i32
    return %arg0, %c0_i32 : i32, i32
  }
  func.func @transform_8(%arg0: i32, %arg1: i32) -> (i32, i32) {
    %c0_i32 = arith.constant 0 : i32
    %c0_i32_0 = arith.constant 0 : i32
    return %arg0, %c0_i32 : i32, i32
  }
}

module attributes {stable_mosaic.version = 11 : i64} {
  func.func @_simclr_fused_kernel(%arg0: i32, %arg1: i32, %arg2: memref<8x1024xf32, #tpu.memory_space<vmem>>, %arg3: memref<8x1024xf32, #tpu.memory_space<vmem>>, %arg4: memref<1024x256xbf16, #tpu.memory_space<vmem>>, %arg5: memref<256x256xbf16, #tpu.memory_space<vmem>>, %arg6: memref<256x128xbf16, #tpu.memory_space<vmem>>, %arg7: memref<8x256xf32, #tpu.memory_space<vmem>>, %arg8: memref<8x256xf32, #tpu.memory_space<vmem>>, %arg9: memref<8x128xf32, #tpu.memory_space<vmem>>, %arg10: memref<8x128xf32, #tpu.memory_space<vmem>>) attributes {dimension_semantics = [#tpu.dimension_semantics<parallel>, #tpu.dimension_semantics<arbitrary>], iteration_bounds = array<i64: 1, 1>, scalar_prefetch = 0 : i64, scratch_operands = 0 : i64, tpu.core_type = #tpu.core_type<tc>, window_params = [{transform_indices = @transform_0, window_bounds = array<i64: 8, 1024>}, {transform_indices = @transform_1, window_bounds = array<i64: 8, 1024>}, {transform_indices = @transform_2, window_bounds = array<i64: 1024, 256>}, {pipeline_mode = #tpu.pipeline_mode<synchronous>, transform_indices = @transform_3, window_bounds = array<i64: 256, 256>}, {pipeline_mode = #tpu.pipeline_mode<synchronous>, transform_indices = @transform_4, window_bounds = array<i64: 256, 128>}, {transform_indices = @transform_5, window_bounds = array<i64: 8, 256>}, {transform_indices = @transform_6, window_bounds = array<i64: 8, 256>}, {transform_indices = @transform_7, window_bounds = array<i64: 8, 128>}, {transform_indices = @transform_8, window_bounds = array<i64: 8, 128>}]} {
    %c0 = arith.constant 0 : index
    %c0_0 = arith.constant 0 : index
    %0 = vector.load %arg4[%c0, %c0_0] : memref<1024x256xbf16, #tpu.memory_space<vmem>>, vector<1024x256xbf16>
    %c0_1 = arith.constant 0 : index
    %c0_2 = arith.constant 0 : index
    %1 = vector.load %arg2[%c0_1, %c0_2] : memref<8x1024xf32, #tpu.memory_space<vmem>>, vector<8x1024xf32>
    %2 = arith.truncf %1 : vector<8x1024xf32> to vector<8x1024xbf16>
    %cst = arith.constant dense<0.000000e+00> : vector<8x256xf32>
    %3 = tpu.matmul %2, %0, %cst {dimension_numbers = #tpu.dot_dimension_numbers<[1], [0], [0], [1], [0, 0, 1, 1], [], []>} : vector<8x1024xbf16>, vector<1024x256xbf16>, vector<8x256xf32> -> vector<8x256xf32>
    %c0_3 = arith.constant 0 : index
    %c0_4 = arith.constant 0 : index
    %4 = vector.load %arg3[%c0_3, %c0_4] : memref<8x1024xf32, #tpu.memory_space<vmem>>, vector<8x1024xf32>
    %5 = arith.truncf %4 : vector<8x1024xf32> to vector<8x1024xbf16>
    %cst_5 = arith.constant dense<0.000000e+00> : vector<8x256xf32>
    %6 = tpu.matmul %5, %0, %cst_5 {dimension_numbers = #tpu.dot_dimension_numbers<[1], [0], [0], [1], [0, 0, 1, 1], [], []>} : vector<8x1024xbf16>, vector<1024x256xbf16>, vector<8x256xf32> -> vector<8x256xf32>
    %c0_i32 = arith.constant 0 : i32
    %7 = arith.cmpi eq, %arg1, %c0_i32 : i32
    %8 = arith.extui %7 : i1 to i32
    %c0_i32_6 = arith.constant 0 : i32
    %9 = arith.cmpi ne, %8, %c0_i32_6 : i32
    scf.if %9 {
      %c0_11 = arith.constant 0 : index
      %c0_12 = arith.constant 0 : index
      %16 = vector.load %arg7[%c0_11, %c0_12] : memref<8x256xf32, #tpu.memory_space<vmem>>, vector<8x256xf32>
      tpu.vector_store %arg7[%c0_11, %c0_12], %3 {strides = array<i32>} : memref<8x256xf32, #tpu.memory_space<vmem>>, vector<8x256xf32>,
      %c0_13 = arith.constant 0 : index
      %c0_14 = arith.constant 0 : index
      %17 = vector.load %arg8[%c0_13, %c0_14] : memref<8x256xf32, #tpu.memory_space<vmem>>, vector<8x256xf32>
      tpu.vector_store %arg8[%c0_13, %c0_14], %6 {strides = array<i32>} : memref<8x256xf32, #tpu.memory_space<vmem>>, vector<8x256xf32>,
    } else {
    }
    %c0_i32_7 = arith.constant 0 : i32
    %10 = arith.cmpi sgt, %arg1, %c0_i32_7 : i32
    %11 = arith.extui %10 : i1 to i32
    %c0_i32_8 = arith.constant 0 : i32
    %12 = arith.cmpi ne, %11, %c0_i32_8 : i32
    scf.if %12 {
      %c0_11 = arith.constant 0 : index
      %c0_12 = arith.constant 0 : index
      %16 = vector.load %arg7[%c0_11, %c0_12] : memref<8x256xf32, #tpu.memory_space<vmem>>, vector<8x256xf32>
      %17 = arith.addf %16, %3 : vector<8x256xf32>
      %c0_13 = arith.constant 0 : index
      %c0_14 = arith.constant 0 : index
      %18 = vector.load %arg7[%c0_13, %c0_14] : memref<8x256xf32, #tpu.memory_space<vmem>>, vector<8x256xf32>
      tpu.vector_store %arg7[%c0_13, %c0_14], %17 {strides = array<i32>} : memref<8x256xf32, #tpu.memory_space<vmem>>, vector<8x256xf32>,
      %c0_15 = arith.constant 0 : index
      %c0_16 = arith.constant 0 : index
      %19 = vector.load %arg8[%c0_15, %c0_16] : memref<8x256xf32, #tpu.memory_space<vmem>>, vector<8x256xf32>
      %20 = arith.addf %19, %6 : vector<8x256xf32>
      %c0_17 = arith.constant 0 : index
      %c0_18 = arith.constant 0 : index
      %21 = vector.load %arg8[%c0_17, %c0_18] : memref<8x256xf32, #tpu.memory_space<vmem>>, vector<8x256xf32>
      tpu.vector_store %arg8[%c0_17, %c0_18], %20 {strides = array<i32>} : memref<8x256xf32, #tpu.memory_space<vmem>>, vector<8x256xf32>,
    } else {
    }
    %c0_i32_9 = arith.constant 0 : i32
    %13 = arith.cmpi eq, %arg1, %c0_i32_9 : i32
    %14 = arith.extui %13 : i1 to i32
    %c0_i32_10 = arith.constant 0 : i32
    %15 = arith.cmpi ne, %14, %c0_i32_10 : i32
    scf.if %15 {
      %c0_11 = arith.constant 0 : index
      %c0_12 = arith.constant 0 : index
      %16 = vector.load %arg5[%c0_11, %c0_12] : memref<256x256xbf16, #tpu.memory_space<vmem>>, vector<256x256xbf16>
      %c0_13 = arith.constant 0 : index
      %c0_14 = arith.constant 0 : index
      %17 = vector.load %arg6[%c0_13, %c0_14] : memref<256x128xbf16, #tpu.memory_space<vmem>>, vector<256x128xbf16>
      %c0_15 = arith.constant 0 : index
      %c0_16 = arith.constant 0 : index
      %18 = vector.load %arg7[%c0_15, %c0_16] : memref<8x256xf32, #tpu.memory_space<vmem>>, vector<8x256xf32>
      %19 = arith.truncf %18 : vector<8x256xf32> to vector<8x256xbf16>
      %cst_17 = arith.constant dense<0.000000e+00> : vector<8x256xf32>
      %20 = tpu.matmul %19, %16, %cst_17 {dimension_numbers = #tpu.dot_dimension_numbers<[1], [0], [0], [1], [0, 0, 1, 1], [], []>} : vector<8x256xbf16>, vector<256x256xbf16>, vector<8x256xf32> -> vector<8x256xf32>
      %cst_18 = arith.constant 0.000000e+00 : f32
      %21 = vector.broadcast %cst_18 : f32 to vector<8x256xf32>
      %22 = arith.maximumf %20, %21 : vector<8x256xf32>
      %23 = arith.truncf %22 : vector<8x256xf32> to vector<8x256xbf16>
      %cst_19 = arith.constant dense<0.000000e+00> : vector<8x128xf32>
      %24 = tpu.matmul %23, %17, %cst_19 {dimension_numbers = #tpu.dot_dimension_numbers<[1], [0], [0], [1], [0, 0, 1, 1], [], []>} : vector<8x256xbf16>, vector<256x128xbf16>, vector<8x128xf32> -> vector<8x128xf32>
      %c0_20 = arith.constant 0 : index
      %c0_21 = arith.constant 0 : index
      %25 = vector.load %arg9[%c0_20, %c0_21] : memref<8x128xf32, #tpu.memory_space<vmem>>, vector<8x128xf32>
      tpu.vector_store %arg9[%c0_20, %c0_21], %24 {strides = array<i32>} : memref<8x128xf32, #tpu.memory_space<vmem>>, vector<8x128xf32>,
      %c0_22 = arith.constant 0 : index
      %c0_23 = arith.constant 0 : index
      %26 = vector.load %arg8[%c0_22, %c0_23] : memref<8x256xf32, #tpu.memory_space<vmem>>, vector<8x256xf32>
      %27 = arith.truncf %26 : vector<8x256xf32> to vector<8x256xbf16>
      %cst_24 = arith.constant dense<0.000000e+00> : vector<8x256xf32>
      %28 = tpu.matmul %27, %16, %cst_24 {dimension_numbers = #tpu.dot_dimension_numbers<[1], [0], [0], [1], [0, 0, 1, 1], [], []>} : vector<8x256xbf16>, vector<256x256xbf16>, vector<8x256xf32> -> vector<8x256xf32>
      %cst_25 = arith.constant 0.000000e+00 : f32
      %29 = vector.broadcast %cst_25 : f32 to vector<8x256xf32>
      %30 = arith.maximumf %28, %29 : vector<8x256xf32>
      %31 = arith.truncf %30 : vector<8x256xf32> to vector<8x256xbf16>
      %cst_26 = arith.constant dense<0.000000e+00> : vector<8x128xf32>
      %32 = tpu.matmul %31, %17, %cst_26 {dimension_numbers = #tpu.dot_dimension_numbers<[1], [0], [0], [1], [0, 0, 1, 1], [], []>} : vector<8x256xbf16>, vector<256x128xbf16>, vector<8x128xf32> -> vector<8x128xf32>
      %c0_27 = arith.constant 0 : index
      %c0_28 = arith.constant 0 : index
      %33 = vector.load %arg10[%c0_27, %c0_28] : memref<8x128xf32, #tpu.memory_space<vmem>>, vector<8x128xf32>
      tpu.vector_store %arg10[%c0_27, %c0_28], %32 {strides = array<i32>} : memref<8x128xf32, #tpu.memory_space<vmem>>, vector<8x128xf32>,
    } else {
    }
    return
  }
  func.func @transform_0(%arg0: i32, %arg1: i32) -> (i32, i32) {
    %c0_i32 = arith.constant 0 : i32
    return %arg0, %arg1 : i32, i32
  }
  func.func @transform_1(%arg0: i32, %arg1: i32) -> (i32, i32) {
    %c0_i32 = arith.constant 0 : i32
    return %arg0, %arg1 : i32, i32
  }
  func.func @transform_2(%arg0: i32, %arg1: i32) -> (i32, i32) {
    %c0_i32 = arith.constant 0 : i32
    %c0_i32_0 = arith.constant 0 : i32
    return %arg1, %c0_i32 : i32, i32
  }
  func.func @transform_3(%arg0: i32, %arg1: i32) -> (i32, i32) {
    %c0_i32 = arith.constant 0 : i32
    %c0_i32_0 = arith.constant 0 : i32
    %c0_i32_1 = arith.constant 0 : i32
    return %c0_i32, %c0_i32_0 : i32, i32
  }
  func.func @transform_4(%arg0: i32, %arg1: i32) -> (i32, i32) {
    %c0_i32 = arith.constant 0 : i32
    %c0_i32_0 = arith.constant 0 : i32
    %c0_i32_1 = arith.constant 0 : i32
    return %c0_i32, %c0_i32_0 : i32, i32
  }
  func.func @transform_5(%arg0: i32, %arg1: i32) -> (i32, i32) {
    %c0_i32 = arith.constant 0 : i32
    %c0_i32_0 = arith.constant 0 : i32
    return %arg0, %c0_i32 : i32, i32
  }
  func.func @transform_6(%arg0: i32, %arg1: i32) -> (i32, i32) {
    %c0_i32 = arith.constant 0 : i32
    %c0_i32_0 = arith.constant 0 : i32
    return %arg0, %c0_i32 : i32, i32
  }
  func.func @transform_7(%arg0: i32, %arg1: i32) -> (i32, i32) {
    %c0_i32 = arith.constant 0 : i32
    %c0_i32_0 = arith.constant 0 : i32
    return %arg0, %c0_i32 : i32, i32
  }
  func.func @transform_8(%arg0: i32, %arg1: i32) -> (i32, i32) {
    %c0_i32 = arith.constant 0 : i32
    %c0_i32_0 = arith.constant 0 : i32
    return %arg0, %c0_i32 : i32, i32
  }
}

</mosaic_0001>

<llo_original>
// kernel: tpu_custom_call.1
$region0: #{tpu_custom_call.1}
  #allocation0 [shape = 'u32[]', space=smem, size = 0x4, offset = 0x4, fixed_abs, tag = 'smem constant byte address 0x4 - core index']
  #allocation1 [shape = 'u32[144,128]{1,0:T(1,128)}', space=vmem, size = 0x12000, scoped, tag = 'internal scratch']
  %s0 = inlined_call_operand.hbm [shape: f32[8,1024], index: 0, kind: input, shape index: {}]
  %s1 = inlined_call_operand.hbm [shape: f32[8,1024], index: 1, kind: input, shape index: {}]
  %s2 = inlined_call_operand.hbm [shape: bf16[1024,256], index: 2, kind: input, shape index: {}]
  %s3 = inlined_call_operand.hbm [shape: bf16[256,256], index: 3, kind: input, shape index: {}]
  %s4 = inlined_call_operand.hbm [shape: bf16[256,128], index: 4, kind: input, shape index: {}]
  %s5 = inlined_call_operand.hbm [shape: f32[8,256], index: 5, kind: output, shape index: {0}]
  %s6 = inlined_call_operand.hbm [shape: f32[8,256], index: 6, kind: output, shape index: {1}]
  %s7 = inlined_call_operand.hbm [shape: f32[8,128], index: 7, kind: output, shape index: {2}]
  %s8 = inlined_call_operand.hbm [shape: f32[8,128], index: 8, kind: output, shape index: {3}]
  %9 = xla_tuple %s5, %s6, %s7, %s8
  %s10 = sld [smem:[#allocation0]]
  $region86: #{tpu_custom_call.1} parent=0
    _
  %s12 = ssub.s32 1, %s10
  %s13 = scalar_select 0, %s12, %s10
  $region1: #{tpu_custom_call.1} parent=0
    #allocation2 [shape = 'u8[32768]{0}', space=vmem, size = 0x8000, scoped, tag = 'input window, operand 0, single buffered']
    #allocation3 [shape = 's32[1]{0}', space=sflag, size = 0x4, scoped, tag = 'scoped memory for tpu_custom_call.1']
    #allocation4 [shape = 's32[1]{0}', space=sflag, size = 0x4, scoped, tag = 'scoped memory for tpu_custom_call.1']
    #allocation5 [shape = 'u8[32768]{0}', space=vmem, size = 0x8000, scoped, tag = 'input window, operand 1, single buffered']
    #allocation6 [shape = 's32[1]{0}', space=sflag, size = 0x4, scoped, tag = 'scoped memory for tpu_custom_call.1']
    #allocation7 [shape = 'u8[524288]{0}', space=vmem, size = 0x80000, scoped, tag = 'input window, operand 2, single buffered']
    #allocation8 [shape = 'u8[131072]{0}', space=vmem, size = 0x20000, scoped, tag = 'input window, operand 3, single buffered']
    #allocation9 [shape = 's32[1]{0}', space=sflag, size = 0x4, scoped, tag = 'scoped memory for tpu_custom_call.1']
    #allocation10 [shape = 'u8[65536]{0}', space=vmem, size = 0x10000, scoped, tag = 'input window, operand 4, single buffered']
    #allocation11 [shape = 'u8[8192]{0}', space=vmem, size = 0x2000, scoped, tag = 'output window, operand 0, single buffered']
    #allocation12 [shape = 'u8[8192]{0}', space=vmem, size = 0x2000, scoped, tag = 'output window, operand 1, single buffered']
    #allocation13 [shape = 's32[1]{0}', space=sflag, size = 0x4, scoped, tag = 'scoped memory for tpu_custom_call.1']
    #allocation14 [shape = 'u8[4096]{0}', space=vmem, size = 0x1000, scoped, tag = 'output window, operand 2, single buffered']
    #allocation15 [shape = 'u8[4096]{0}', space=vmem, size = 0x1000, scoped, tag = 'output window, operand 3, single buffered']
    #allocation16 [shape = 's32[1]{0}', space=sflag, size = 0x4, scoped, tag = 'scoped memory for tpu_custom_call.1']
    %14 = vsyncpa [#allocation3], 0
    %15 = vsyncpa [#allocation6], 0
    %16 = vsyncpa [#allocation9], 0
    %17 = vsyncpa [#allocation4], 0
    %18 = vsyncpa [#allocation13], 0
    %19 = vsyncpa [#allocation16], 0
    // Predicated region
    $region2: #{tpu_custom_call.1} parent=1 // pred_check
      _
    $region3: #{tpu_custom_call.1} parent=1 // pred_check_branch
      %21 = sbr.rel (0) target = $region5
    $region4: #{tpu_custom_call.1} parent=1 // pred_region
      %s23 = ssub.s32 1024, 1024
      %24 = vsyncadd [#allocation3], %s23
      %s26 = sshll.u32 [#allocation2], 4
      %s27 = int_to_ptr.vmem [resolvable:$true] %s26
      %29 = dma.hbm_to_vmem [thread:$0]  %s0, 1024, %s27, [#allocation3]
    $region5: #{tpu_custom_call.1} parent=1 // pred_fallthru
      _
    // Predicated region
    $region6: #{tpu_custom_call.1} parent=1 // pred_check
      _
    $region7: #{tpu_custom_call.1} parent=1 // pred_check_branch
      %31 = sbr.rel (0) target = $region9
    $region8: #{tpu_custom_call.1} parent=1 // pred_region
      %s33 = ssub.s32 1024, 1024
      %34 = vsyncadd [#allocation6], %s33
      %s36 = sshll.u32 [#allocation5], 4
      %s37 = int_to_ptr.vmem [resolvable:$true] %s36
      %39 = dma.hbm_to_vmem [thread:$0]  %s1, 1024, %s37, [#allocation6]
    $region9: #{tpu_custom_call.1} parent=1 // pred_fallthru
      _
    // Predicated region
    $region10: #{tpu_custom_call.1} parent=1 // pred_check
      _
    $region11: #{tpu_custom_call.1} parent=1 // pred_check_branch
      %41 = sbr.rel (0) target = $region13
    $region12: #{tpu_custom_call.1} parent=1 // pred_region
      %s43 = ssub.s32 16384, 16384
      %44 = vsyncadd [#allocation6], %s43
      %s45 = sshll.u32 [#allocation7], 4
      %s46 = int_to_ptr.vmem [resolvable:$true] %s45
      %51 = dma.hbm_to_vmem [thread:$0]  %s2, 16384, %s46, [#allocation6], 128, 128, 8
    $region13: #{tpu_custom_call.1} parent=1 // pred_fallthru
      _
    // Predicated region
    $region14: #{tpu_custom_call.1} parent=1 // pred_check
      _
    $region15: #{tpu_custom_call.1} parent=1 // pred_check_branch
      %53 = sbr.rel (0) target = $region17
    $region16: #{tpu_custom_call.1} parent=1 // pred_region
      %s55 = ssub.s32 4096, 4096
      %56 = vsyncadd [#allocation9], %s55
      %s57 = sshll.u32 [#allocation8], 4
      %s58 = int_to_ptr.vmem [resolvable:$true] %s57
      %63 = dma.hbm_to_vmem [thread:$0]  %s3, 4096, %s58, [#allocation9], 128, 128, 8
    $region17: #{tpu_custom_call.1} parent=1 // pred_fallthru
      _
    // Predicated region
    $region18: #{tpu_custom_call.1} parent=1 // pred_check
      _
    $region19: #{tpu_custom_call.1} parent=1 // pred_check_branch
      %65 = sbr.rel (0) target = $region21
    $region20: #{tpu_custom_call.1} parent=1 // pred_region
      %s67 = ssub.s32 2048, 2048
      %68 = vsyncadd [#allocation9], %s67
      %s69 = sshll.u32 [#allocation10], 4
      %s70 = int_to_ptr.vmem [resolvable:$true] %s69
      %75 = dma.hbm_to_vmem [thread:$0]  %s4, 2048, %s70, [#allocation9], 64, 64, 4
    $region21: #{tpu_custom_call.1} parent=1 // pred_fallthru
      _
    // Predicated region
    $region22: #{tpu_custom_call.1} parent=1 // pred_check
      _
    $region23: #{tpu_custom_call.1} parent=1 // pred_check_branch
      %77 = sbr.rel (0) target = $region25
    $region24: #{tpu_custom_call.1} parent=1 // pred_region
      %78 = dma.done [#allocation3], 1024
    $region25: #{tpu_custom_call.1} parent=1 // pred_fallthru
      _
    // Predicated region
    $region26: #{tpu_custom_call.1} parent=1 // pred_check
      _
    $region27: #{tpu_custom_call.1} parent=1 // pred_check_branch
      %80 = sbr.rel (0) target = $region29
    $region28: #{tpu_custom_call.1} parent=1 // pred_region
      %81 = dma.done [#allocation6], 1024
    $region29: #{tpu_custom_call.1} parent=1 // pred_fallthru
      _
    // Predicated region
    $region30: #{tpu_custom_call.1} parent=1 // pred_check
      _
    $region31: #{tpu_custom_call.1} parent=1 // pred_check_branch
      %83 = sbr.rel (0) target = $region33
    $region32: #{tpu_custom_call.1} parent=1 // pred_region
      %84 = dma.done [#allocation6], 16384
    $region33: #{tpu_custom_call.1} parent=1 // pred_fallthru
      _
    // Predicated region
    $region34: #{tpu_custom_call.1} parent=1 // pred_check
      _
    $region35: #{tpu_custom_call.1} parent=1 // pred_check_branch
      %86 = sbr.rel (0) target = $region37
    $region36: #{tpu_custom_call.1} parent=1 // pred_region
      %87 = dma.done [#allocation9], 4096
    $region37: #{tpu_custom_call.1} parent=1 // pred_fallthru
      _
    // Predicated region
    $region38: #{tpu_custom_call.1} parent=1 // pred_check
      _
    $region39: #{tpu_custom_call.1} parent=1 // pred_check_branch
      %89 = sbr.rel (0) target = $region41
    $region40: #{tpu_custom_call.1} parent=1 // pred_region
      %90 = dma.done [#allocation9], 2048
    $region41: #{tpu_custom_call.1} parent=1 // pred_fallthru
      _
    %v92 = vld [vmem:[#allocation7] sm:$0xff]
    %v93 = vld [vmem:[#allocation7 + $0x8] sm:$0xff]
    %v94 = vld [vmem:[#allocation7 + $0x10] sm:$0xff]
    %v95 = vld [vmem:[#allocation7 + $0x18] sm:$0xff]
    %v96 = vld [vmem:[#allocation7 + $0x20] sm:$0xff]
    %v97 = vld [vmem:[#allocation7 + $0x28] sm:$0xff]
    %v98 = vld [vmem:[#allocation7 + $0x30] sm:$0xff]
    %v99 = vld [vmem:[#allocation7 + $0x38] sm:$0xff]
    %v100 = vld [vmem:[#allocation7 + $0x40] sm:$0xff]
    %v101 = vld [vmem:[#allocation7 + $0x48] sm:$0xff]
    %v102 = vld [vmem:[#allocation7 + $0x50] sm:$0xff]
    %v103 = vld [vmem:[#allocation7 + $0x58] sm:$0xff]
    %v104 = vld [vmem:[#allocation7 + $0x60] sm:$0xff]
    %v105 = vld [vmem:[#allocation7 + $0x68] sm:$0xff]
    %v106 = vld [vmem:[#allocation7 + $0x70] sm:$0xff]
    %v107 = vld [vmem:[#allocation7 + $0x78] sm:$0xff]
    %v108 = vld [vmem:[#allocation7 + $0x80] sm:$0xff]
    %v109 = vld [vmem:[#allocation7 + $0x88] sm:$0xff]
    %v110 = vld [vmem:[#allocation7 + $0x90] sm:$0xff]
    %v111 = vld [vmem:[#allocation7 + $0x98] sm:$0xff]
    %v112 = vld [vmem:[#allocation7 + $0xa0] sm:$0xff]
    %v113 = vld [vmem:[#allocation7 + $0xa8] sm:$0xff]
    %v114 = vld [vmem:[#allocation7 + $0xb0] sm:$0xff]
    %v115 = vld [vmem:[#allocation7 + $0xb8] sm:$0xff]
    %v116 = vld [vmem:[#allocation7 + $0xc0] sm:$0xff]
    %v117 = vld [vmem:[#allocation7 + $0xc8] sm:$0xff]
    %v118 = vld [vmem:[#allocation7 + $0xd0] sm:$0xff]
    %v119 = vld [vmem:[#allocation7 + $0xd8] sm:$0xff]
    %v120 = vld [vmem:[#allocation7 + $0xe0] sm:$0xff]
    %v121 = vld [vmem:[#allocation7 + $0xe8] sm:$0xff]
    %v122 = vld [vmem:[#allocation7 + $0xf0] sm:$0xff]
    %v123 = vld [vmem:[#allocation7 + $0xf8] sm:$0xff]
    %v124 = vld [vmem:[#allocation7 + $0x100] sm:$0xff]
    %v125 = vld [vmem:[#allocation7 + $0x108] sm:$0xff]
    %v126 = vld [vmem:[#allocation7 + $0x110] sm:$0xff]
    %v127 = vld [vmem:[#allocation7 + $0x118] sm:$0xff]
    %v128 = vld [vmem:[#allocation7 + $0x120] sm:$0xff]
    %v129 = vld [vmem:[#allocation7 + $0x128] sm:$0xff]
    %v130 = vld [vmem:[#allocation7 + $0x130] sm:$0xff]
    %v131 = vld [vmem:[#allocation7 + $0x138] sm:$0xff]
    %v132 = vld [vmem:[#allocation7 + $0x140] sm:$0xff]
    %v133 = vld [vmem:[#allocation7 + $0x148] sm:$0xff]
    %v134 = vld [vmem:[#allocation7 + $0x150] sm:$0xff]
    %v135 = vld [vmem:[#allocation7 + $0x158] sm:$0xff]
    %v136 = vld [vmem:[#allocation7 + $0x160] sm:$0xff]
    %v137 = vld [vmem:[#allocation7 + $0x168] sm:$0xff]
    %v138 = vld [vmem:[#allocation7 + $0x170] sm:$0xff]
    %v139 = vld [vmem:[#allocation7 + $0x178] sm:$0xff]
    %v140 = vld [vmem:[#allocation7 + $0x180] sm:$0xff]
    %v141 = vld [vmem:[#allocation7 + $0x188] sm:$0xff]
    %v142 = vld [vmem:[#allocation7 + $0x190] sm:$0xff]
    %v143 = vld [vmem:[#allocation7 + $0x198] sm:$0xff]
    %v144 = vld [vmem:[#allocation7 + $0x1a0] sm:$0xff]
    %v145 = vld [vmem:[#allocation7 + $0x1a8] sm:$0xff]
    %v146 = vld [vmem:[#allocation7 + $0x1b0] sm:$0xff]
    %v147 = vld [vmem:[#allocation7 + $0x1b8] sm:$0xff]
    %v148 = vld [vmem:[#allocation7 + $0x1c0] sm:$0xff]
    %v149 = vld [vmem:[#allocation7 + $0x1c8] sm:$0xff]
    %v150 = vld [vmem:[#allocation7 + $0x1d0] sm:$0xff]
    %v151 = vld [vmem:[#allocation7 + $0x1d8] sm:$0xff]
    %v152 = vld [vmem:[#allocation7 + $0x1e0] sm:$0xff]
    %v153 = vld [vmem:[#allocation7 + $0x1e8] sm:$0xff]
    %v154 = vld [vmem:[#allocation7 + $0x1f0] sm:$0xff]
    %v155 = vld [vmem:[#allocation7 + $0x1f8] sm:$0xff]
    %v156 = vld [vmem:[#allocation7 + $0x200] sm:$0xff]
    %v157 = vld [vmem:[#allocation7 + $0x208] sm:$0xff]
    %v158 = vld [vmem:[#allocation7 + $0x210] sm:$0xff]
    %v159 = vld [vmem:[#allocation7 + $0x218] sm:$0xff]
    %v160 = vld [vmem:[#allocation7 + $0x220] sm:$0xff]
    %v161 = vld [vmem:[#allocation7 + $0x228] sm:$0xff]
    %v162 = vld [vmem:[#allocation7 + $0x230] sm:$0xff]
    %v163 = vld [vmem:[#allocation7 + $0x238] sm:$0xff]
    %v164 = vld [vmem:[#allocation7 + $0x240] sm:$0xff]
    %v165 = vld [vmem:[#allocation7 + $0x248] sm:$0xff]
    %v166 = vld [vmem:[#allocation7 + $0x250] sm:$0xff]
    %v167 = vld [vmem:[#allocation7 + $0x258] sm:$0xff]
    %v168 = vld [vmem:[#allocation7 + $0x260] sm:$0xff]
    %v169 = vld [vmem:[#allocation7 + $0x268] sm:$0xff]
    %v170 = vld [vmem:[#allocation7 + $0x270] sm:$0xff]
    %v171 = vld [vmem:[#allocation7 + $0x278] sm:$0xff]
    %v172 = vld [vmem:[#allocation7 + $0x280] sm:$0xff]
    %v173 = vld [vmem:[#allocation7 + $0x288] sm:$0xff]
    %v174 = vld [vmem:[#allocation7 + $0x290] sm:$0xff]
    %v175 = vld [vmem:[#allocation7 + $0x298] sm:$0xff]
    %v176 = vld [vmem:[#allocation7 + $0x2a0] sm:$0xff]
    %v177 = vld [vmem:[#allocation7 + $0x2a8] sm:$0xff]
    %v178 = vld [vmem:[#allocation7 + $0x2b0] sm:$0xff]
    %v179 = vld [vmem:[#allocation7 + $0x2b8] sm:$0xff]
    %v180 = vld [vmem:[#allocation7 + $0x2c0] sm:$0xff]
    %v181 = vld [vmem:[#allocation7 + $0x2c8] sm:$0xff]
    %v182 = vld [vmem:[#allocation7 + $0x2d0] sm:$0xff]
    %v183 = vld [vmem:[#allocation7 + $0x2d8] sm:$0xff]
    %v184 = vld [vmem:[#allocation7 + $0x2e0] sm:$0xff]
    %v185 = vld [vmem:[#allocation7 + $0x2e8] sm:$0xff]
    %v186 = vld [vmem:[#allocation7 + $0x2f0] sm:$0xff]
    %v187 = vld [vmem:[#allocation7 + $0x2f8] sm:$0xff]
    %v188 = vld [vmem:[#allocation7 + $0x300] sm:$0xff]
    %v189 = vld [vmem:[#allocation7 + $0x308] sm:$0xff]
    %v190 = vld [vmem:[#allocation7 + $0x310] sm:$0xff]
    %v191 = vld [vmem:[#allocation7 + $0x318] sm:$0xff]
    %v192 = vld [vmem:[#allocation7 + $0x320] sm:$0xff]
    %v193 = vld [vmem:[#allocation7 + $0x328] sm:$0xff]
    %v194 = vld [vmem:[#allocation7 + $0x330] sm:$0xff]
    %v195 = vld [vmem:[#allocation7 + $0x338] sm:$0xff]
    %v196 = vld [vmem:[#allocation7 + $0x340] sm:$0xff]
    %v197 = vld [vmem:[#allocation7 + $0x348] sm:$0xff]
    %v198 = vld [vmem:[#allocation7 + $0x350] sm:$0xff]
    %v199 = vld [vmem:[#allocation7 + $0x358] sm:$0xff]
    %v200 = vld [vmem:[#allocation7 + $0x360] sm:$0xff]
    %v201 = vld [vmem:[#allocation7 + $0x368] sm:$0xff]
    %v202 = vld [vmem:[#allocation7 + $0x370] sm:$0xff]
    %v203 = vld [vmem:[#allocation7 + $0x378] sm:$0xff]
    %v204 = vld [vmem:[#allocation7 + $0x380] sm:$0xff]
    %v205 = vld [vmem:[#allocation7 + $0x388] sm:$0xff]
    %v206 = vld [vmem:[#allocation7 + $0x390] sm:$0xff]
    %v207 = vld [vmem:[#allocation7 + $0x398] sm:$0xff]
    %v208 = vld [vmem:[#allocation7 + $0x3a0] sm:$0xff]
    %v209 = vld [vmem:[#allocation7 + $0x3a8] sm:$0xff]
    %v210 = vld [vmem:[#allocation7 + $0x3b0] sm:$0xff]
    %v211 = vld [vmem:[#allocation7 + $0x3b8] sm:$0xff]
    %v212 = vld [vmem:[#allocation7 + $0x3c0] sm:$0xff]
    %v213 = vld [vmem:[#allocation7 + $0x3c8] sm:$0xff]
    %v214 = vld [vmem:[#allocation7 + $0x3d0] sm:$0xff]
    %v215 = vld [vmem:[#allocation7 + $0x3d8] sm:$0xff]
    %v216 = vld [vmem:[#allocation7 + $0x3e0] sm:$0xff]
    %v217 = vld [vmem:[#allocation7 + $0x3e8] sm:$0xff]
    %v218 = vld [vmem:[#allocation7 + $0x3f0] sm:$0xff]
    %v219 = vld [vmem:[#allocation7 + $0x3f8] sm:$0xff]
    %v220 = vld [vmem:[#allocation2] sm:$0xff]
    %v221 = vld [vmem:[#allocation2 + $0x8] sm:$0xff]
    %v222 = vld [vmem:[#allocation2 + $0x10] sm:$0xff]
    %v223 = vld [vmem:[#allocation2 + $0x18] sm:$0xff]
    %v224 = vld [vmem:[#allocation2 + $0x20] sm:$0xff]
    %v225 = vld [vmem:[#allocation2 + $0x28] sm:$0xff]
    %v226 = vld [vmem:[#allocation2 + $0x30] sm:$0xff]
    %v227 = vld [vmem:[#allocation2 + $0x38] sm:$0xff]
    %v228 = vpack.c.bf16 %v220, %v220
    %v229 = vpack.c.bf16 %v221, %v221
    %v230 = vpack.c.bf16 %v222, %v222
    %v231 = vpack.c.bf16 %v223, %v223
    %v232 = vpack.c.bf16 %v224, %v224
    %v233 = vpack.c.bf16 %v225, %v225
    %v234 = vpack.c.bf16 %v226, %v226
    %v235 = vpack.c.bf16 %v227, %v227
    %v364 = vunpack.c.l.b16 %v92
    %v365 = vunpack.c.h.b16 %v92
    %v366 = vunpack.c.l.b16 %v93
    %v367 = vunpack.c.h.b16 %v93
    %v368 = vunpack.c.l.b16 %v94
    %v369 = vunpack.c.h.b16 %v94
    %v370 = vunpack.c.l.b16 %v95
    %v371 = vunpack.c.h.b16 %v95
    %v372 = vunpack.c.l.b16 %v96
    %v373 = vunpack.c.h.b16 %v96
    %v374 = vunpack.c.l.b16 %v97
    %v375 = vunpack.c.h.b16 %v97
    %v376 = vunpack.c.l.b16 %v98
    %v377 = vunpack.c.h.b16 %v98
    %v378 = vunpack.c.l.b16 %v99
    %v379 = vunpack.c.h.b16 %v99
    %v380 = vunpack.c.l.b16 %v100
    %v381 = vunpack.c.h.b16 %v100
    %v382 = vunpack.c.l.b16 %v101
    %v383 = vunpack.c.h.b16 %v101
    %v384 = vunpack.c.l.b16 %v102
    %v385 = vunpack.c.h.b16 %v102
    %v386 = vunpack.c.l.b16 %v103
    %v387 = vunpack.c.h.b16 %v103
    %v388 = vunpack.c.l.b16 %v104
    %v389 = vunpack.c.h.b16 %v104
    %v390 = vunpack.c.l.b16 %v105
    %v391 = vunpack.c.h.b16 %v105
    %v392 = vunpack.c.l.b16 %v106
    %v393 = vunpack.c.h.b16 %v106
    %v394 = vunpack.c.l.b16 %v107
    %v395 = vunpack.c.h.b16 %v107
    %v396 = vunpack.c.l.b16 %v108
    %v397 = vunpack.c.h.b16 %v108
    %v398 = vunpack.c.l.b16 %v109
    %v399 = vunpack.c.h.b16 %v109
    %v400 = vunpack.c.l.b16 %v110
    %v401 = vunpack.c.h.b16 %v110
    %v402 = vunpack.c.l.b16 %v111
    %v403 = vunpack.c.h.b16 %v111
    %v404 = vunpack.c.l.b16 %v112
    %v405 = vunpack.c.h.b16 %v112
    %v406 = vunpack.c.l.b16 %v113
    %v407 = vunpack.c.h.b16 %v113
    %v408 = vunpack.c.l.b16 %v114
    %v409 = vunpack.c.h.b16 %v114
    %v410 = vunpack.c.l.b16 %v115
    %v411 = vunpack.c.h.b16 %v115
    %v412 = vunpack.c.l.b16 %v116
    %v413 = vunpack.c.h.b16 %v116
    %v414 = vunpack.c.l.b16 %v117
    %v415 = vunpack.c.h.b16 %v117
    %v416 = vunpack.c.l.b16 %v118
    %v417 = vunpack.c.h.b16 %v118
    %v418 = vunpack.c.l.b16 %v119
    %v419 = vunpack.c.h.b16 %v119
    %v420 = vunpack.c.l.b16 %v120
    %v421 = vunpack.c.h.b16 %v120
    %v422 = vunpack.c.l.b16 %v121
    %v423 = vunpack.c.h.b16 %v121
    %v424 = vunpack.c.l.b16 %v122
    %v425 = vunpack.c.h.b16 %v122
    %v426 = vunpack.c.l.b16 %v123
    %v427 = vunpack.c.h.b16 %v123
    %v428 = vunpack.c.l.b16 %v124
    %v429 = vunpack.c.h.b16 %v124
    %v430 = vunpack.c.l.b16 %v125
    %v431 = vunpack.c.h.b16 %v125
    %v432 = vunpack.c.l.b16 %v126
    %v433 = vunpack.c.h.b16 %v126
    %v434 = vunpack.c.l.b16 %v127
    %v435 = vunpack.c.h.b16 %v127
    %v436 = vunpack.c.l.b16 %v128
    %v437 = vunpack.c.h.b16 %v128
    %v438 = vunpack.c.l.b16 %v129
    %v439 = vunpack.c.h.b16 %v129
    %v440 = vunpack.c.l.b16 %v130
    %v441 = vunpack.c.h.b16 %v130
    %v442 = vunpack.c.l.b16 %v131
    %v443 = vunpack.c.h.b16 %v131
    %v444 = vunpack.c.l.b16 %v132
    %v445 = vunpack.c.h.b16 %v132
    %v446 = vunpack.c.l.b16 %v133
    %v447 = vunpack.c.h.b16 %v133
    %v448 = vunpack.c.l.b16 %v134
    %v449 = vunpack.c.h.b16 %v134
    %v450 = vunpack.c.l.b16 %v135
    %v451 = vunpack.c.h.b16 %v135
    %v452 = vunpack.c.l.b16 %v136
    %v453 = vunpack.c.h.b16 %v136
    %v454 = vunpack.c.l.b16 %v137
    %v455 = vunpack.c.h.b16 %v137
    %v456 = vunpack.c.l.b16 %v138
    %v457 = vunpack.c.h.b16 %v138
    %v458 = vunpack.c.l.b16 %v139
    %v459 = vunpack.c.h.b16 %v139
    %v460 = vunpack.c.l.b16 %v140
    %v461 = vunpack.c.h.b16 %v140
    %v462 = vunpack.c.l.b16 %v141
    %v463 = vunpack.c.h.b16 %v141
    %v464 = vunpack.c.l.b16 %v142
    %v465 = vunpack.c.h.b16 %v142
    %v466 = vunpack.c.l.b16 %v143
    %v467 = vunpack.c.h.b16 %v143
    %v468 = vunpack.c.l.b16 %v144
    %v469 = vunpack.c.h.b16 %v144
    %v470 = vunpack.c.l.b16 %v145
    %v471 = vunpack.c.h.b16 %v145
    %v472 = vunpack.c.l.b16 %v146
    %v473 = vunpack.c.h.b16 %v146
    %v474 = vunpack.c.l.b16 %v147
    %v475 = vunpack.c.h.b16 %v147
    %v476 = vunpack.c.l.b16 %v148
    %v477 = vunpack.c.h.b16 %v148
    %v478 = vunpack.c.l.b16 %v149
    %v479 = vunpack.c.h.b16 %v149
    %v480 = vunpack.c.l.b16 %v150
    %v481 = vunpack.c.h.b16 %v150
    %v482 = vunpack.c.l.b16 %v151
    %v483 = vunpack.c.h.b16 %v151
    %v484 = vunpack.c.l.b16 %v152
    %v485 = vunpack.c.h.b16 %v152
    %v486 = vunpack.c.l.b16 %v153
    %v487 = vunpack.c.h.b16 %v153
    %v488 = vunpack.c.l.b16 %v154
    %v489 = vunpack.c.h.b16 %v154
    %v490 = vunpack.c.l.b16 %v155
    %v491 = vunpack.c.h.b16 %v155
    %v492 = vunpack.c.l.b16 %v156
    %v493 = vunpack.c.h.b16 %v156
    %v494 = vunpack.c.l.b16 %v157
    %v495 = vunpack.c.h.b16 %v157
    %v496 = vunpack.c.l.b16 %v158
    %v497 = vunpack.c.h.b16 %v158
    %v498 = vunpack.c.l.b16 %v159
    %v499 = vunpack.c.h.b16 %v159
    %v500 = vunpack.c.l.b16 %v160
    %v501 = vunpack.c.h.b16 %v160
    %v502 = vunpack.c.l.b16 %v161
    %v503 = vunpack.c.h.b16 %v161
    %v504 = vunpack.c.l.b16 %v162
    %v505 = vunpack.c.h.b16 %v162
    %v506 = vunpack.c.l.b16 %v163
    %v507 = vunpack.c.h.b16 %v163
    %v508 = vunpack.c.l.b16 %v164
    %v509 = vunpack.c.h.b16 %v164
    %v510 = vunpack.c.l.b16 %v165
    %v511 = vunpack.c.h.b16 %v165
    %v512 = vunpack.c.l.b16 %v166
    %v513 = vunpack.c.h.b16 %v166
    %v514 = vunpack.c.l.b16 %v167
    %v515 = vunpack.c.h.b16 %v167
    %v516 = vunpack.c.l.b16 %v168
    %v517 = vunpack.c.h.b16 %v168
    %v518 = vunpack.c.l.b16 %v169
    %v519 = vunpack.c.h.b16 %v169
    %v520 = vunpack.c.l.b16 %v170
    %v521 = vunpack.c.h.b16 %v170
    %v522 = vunpack.c.l.b16 %v171
    %v523 = vunpack.c.h.b16 %v171
    %v524 = vunpack.c.l.b16 %v172
    %v525 = vunpack.c.h.b16 %v172
    %v526 = vunpack.c.l.b16 %v173
    %v527 = vunpack.c.h.b16 %v173
    %v528 = vunpack.c.l.b16 %v174
    %v529 = vunpack.c.h.b16 %v174
    %v530 = vunpack.c.l.b16 %v175
    %v531 = vunpack.c.h.b16 %v175
    %v532 = vunpack.c.l.b16 %v176
    %v533 = vunpack.c.h.b16 %v176
    %v534 = vunpack.c.l.b16 %v177
    %v535 = vunpack.c.h.b16 %v177
    %v536 = vunpack.c.l.b16 %v178
    %v537 = vunpack.c.h.b16 %v178
    %v538 = vunpack.c.l.b16 %v179
    %v539 = vunpack.c.h.b16 %v179
    %v540 = vunpack.c.l.b16 %v180
    %v541 = vunpack.c.h.b16 %v180
    %v542 = vunpack.c.l.b16 %v181
    %v543 = vunpack.c.h.b16 %v181
    %v544 = vunpack.c.l.b16 %v182
    %v545 = vunpack.c.h.b16 %v182
    %v546 = vunpack.c.l.b16 %v183
    %v547 = vunpack.c.h.b16 %v183
    %v548 = vunpack.c.l.b16 %v184
    %v549 = vunpack.c.h.b16 %v184
    %v550 = vunpack.c.l.b16 %v185
    %v551 = vunpack.c.h.b16 %v185
    %v552 = vunpack.c.l.b16 %v186
    %v553 = vunpack.c.h.b16 %v186
    %v554 = vunpack.c.l.b16 %v187
    %v555 = vunpack.c.h.b16 %v187
    %v556 = vunpack.c.l.b16 %v188
    %v557 = vunpack.c.h.b16 %v188
    %v558 = vunpack.c.l.b16 %v189
    %v559 = vunpack.c.h.b16 %v189
    %v560 = vunpack.c.l.b16 %v190
    %v561 = vunpack.c.h.b16 %v190
    %v562 = vunpack.c.l.b16 %v191
    %v563 = vunpack.c.h.b16 %v191
    %v564 = vunpack.c.l.b16 %v192
    %v565 = vunpack.c.h.b16 %v192
    %v566 = vunpack.c.l.b16 %v193
    %v567 = vunpack.c.h.b16 %v193
    %v568 = vunpack.c.l.b16 %v194
    %v569 = vunpack.c.h.b16 %v194
    %v570 = vunpack.c.l.b16 %v195
    %v571 = vunpack.c.h.b16 %v195
    %v572 = vunpack.c.l.b16 %v196
    %v573 = vunpack.c.h.b16 %v196
    %v574 = vunpack.c.l.b16 %v197
    %v575 = vunpack.c.h.b16 %v197
    %v576 = vunpack.c.l.b16 %v198
    %v577 = vunpack.c.h.b16 %v198
    %v578 = vunpack.c.l.b16 %v199
    %v579 = vunpack.c.h.b16 %v199
    %v580 = vunpack.c.l.b16 %v200
    %v581 = vunpack.c.h.b16 %v200
    %v582 = vunpack.c.l.b16 %v201
    %v583 = vunpack.c.h.b16 %v201
    %v584 = vunpack.c.l.b16 %v202
    %v585 = vunpack.c.h.b16 %v202
    %v586 = vunpack.c.l.b16 %v203
    %v587 = vunpack.c.h.b16 %v203
    %v588 = vunpack.c.l.b16 %v204
    %v589 = vunpack.c.h.b16 %v204
    %v590 = vunpack.c.l.b16 %v205
    %v591 = vunpack.c.h.b16 %v205
    %v592 = vunpack.c.l.b16 %v206
    %v593 = vunpack.c.h.b16 %v206
    %v594 = vunpack.c.l.b16 %v207
    %v595 = vunpack.c.h.b16 %v207
    %v596 = vunpack.c.l.b16 %v208
    %v597 = vunpack.c.h.b16 %v208
    %v598 = vunpack.c.l.b16 %v209
    %v599 = vunpack.c.h.b16 %v209
    %v600 = vunpack.c.l.b16 %v210
    %v601 = vunpack.c.h.b16 %v210
    %v602 = vunpack.c.l.b16 %v211
    %v603 = vunpack.c.h.b16 %v211
    %v604 = vunpack.c.l.b16 %v212
    %v605 = vunpack.c.h.b16 %v212
    %v606 = vunpack.c.l.b16 %v213
    %v607 = vunpack.c.h.b16 %v213
    %v608 = vunpack.c.l.b16 %v214
    %v609 = vunpack.c.h.b16 %v214
    %v610 = vunpack.c.l.b16 %v215
    %v611 = vunpack.c.h.b16 %v215
    %v612 = vunpack.c.l.b16 %v216
    %v613 = vunpack.c.h.b16 %v216
    %v614 = vunpack.c.l.b16 %v217
    %v615 = vunpack.c.h.b16 %v217
    %v616 = vunpack.c.l.b16 %v218
    %v617 = vunpack.c.h.b16 %v218
    %v618 = vunpack.c.l.b16 %v219
    %v619 = vunpack.c.h.b16 %v219
    %v620 = vpack.c.b16 %v366, %v364
    %v621 = vpack.c.b16 %v367, %v365
    %v622 = vpack.c.b16 %v370, %v368
    %v623 = vpack.c.b16 %v371, %v369
    %v624 = vpack.c.b16 %v374, %v372
    %v625 = vpack.c.b16 %v375, %v373
    %v626 = vpack.c.b16 %v378, %v376
    %v627 = vpack.c.b16 %v379, %v377
    %v628 = vpack.c.b16 %v382, %v380
    %v629 = vpack.c.b16 %v383, %v381
    %v630 = vpack.c.b16 %v386, %v384
    %v631 = vpack.c.b16 %v387, %v385
    %v632 = vpack.c.b16 %v390, %v388
    %v633 = vpack.c.b16 %v391, %v389
    %v634 = vpack.c.b16 %v394, %v392
    %v635 = vpack.c.b16 %v395, %v393
    %v636 = vpack.c.b16 %v398, %v396
    %v637 = vpack.c.b16 %v399, %v397
    %v638 = vpack.c.b16 %v402, %v400
    %v639 = vpack.c.b16 %v403, %v401
    %v640 = vpack.c.b16 %v406, %v404
    %v641 = vpack.c.b16 %v407, %v405
    %v642 = vpack.c.b16 %v410, %v408
    %v643 = vpack.c.b16 %v411, %v409
    %v644 = vpack.c.b16 %v414, %v412
    %v645 = vpack.c.b16 %v415, %v413
    %v646 = vpack.c.b16 %v418, %v416
    %v647 = vpack.c.b16 %v419, %v417
    %v648 = vpack.c.b16 %v422, %v420
    %v649 = vpack.c.b16 %v423, %v421
    %v650 = vpack.c.b16 %v426, %v424
    %v651 = vpack.c.b16 %v427, %v425
    %v652 = vpack.c.b16 %v430, %v428
    %v653 = vpack.c.b16 %v431, %v429
    %v654 = vpack.c.b16 %v434, %v432
    %v655 = vpack.c.b16 %v435, %v433
    %v656 = vpack.c.b16 %v438, %v436
    %v657 = vpack.c.b16 %v439, %v437
    %v658 = vpack.c.b16 %v442, %v440
    %v659 = vpack.c.b16 %v443, %v441
    %v660 = vpack.c.b16 %v446, %v444
    %v661 = vpack.c.b16 %v447, %v445
    %v662 = vpack.c.b16 %v450, %v448
    %v663 = vpack.c.b16 %v451, %v449
    %v664 = vpack.c.b16 %v454, %v452
    %v665 = vpack.c.b16 %v455, %v453
    %v666 = vpack.c.b16 %v458, %v456
    %v667 = vpack.c.b16 %v459, %v457
    %v668 = vpack.c.b16 %v462, %v460
    %v669 = vpack.c.b16 %v463, %v461
    %v670 = vpack.c.b16 %v466, %v464
    %v671 = vpack.c.b16 %v467, %v465
    %v672 = vpack.c.b16 %v470, %v468
    %v673 = vpack.c.b16 %v471, %v469
    %v674 = vpack.c.b16 %v474, %v472
    %v675 = vpack.c.b16 %v475, %v473
    %v676 = vpack.c.b16 %v478, %v476
    %v677 = vpack.c.b16 %v479, %v477
    %v678 = vpack.c.b16 %v482, %v480
    %v679 = vpack.c.b16 %v483, %v481
    %v680 = vpack.c.b16 %v486, %v484
    %v681 = vpack.c.b16 %v487, %v485
    %v682 = vpack.c.b16 %v490, %v488
    %v683 = vpack.c.b16 %v491, %v489
    %v684 = vpack.c.b16 %v494, %v492
    %v685 = vpack.c.b16 %v495, %v493
    %v686 = vpack.c.b16 %v498, %v496
    %v687 = vpack.c.b16 %v499, %v497
    %v688 = vpack.c.b16 %v502, %v500
    %v689 = vpack.c.b16 %v503, %v501
    %v690 = vpack.c.b16 %v506, %v504
    %v691 = vpack.c.b16 %v507, %v505
    %v692 = vpack.c.b16 %v510, %v508
    %v693 = vpack.c.b16 %v511, %v509
    %v694 = vpack.c.b16 %v514, %v512
    %v695 = vpack.c.b16 %v515, %v513
    %v696 = vpack.c.b16 %v518, %v516
    %v697 = vpack.c.b16 %v519, %v517
    %v698 = vpack.c.b16 %v522, %v520
    %v699 = vpack.c.b16 %v523, %v521
    %v700 = vpack.c.b16 %v526, %v524
    %v701 = vpack.c.b16 %v527, %v525
    %v702 = vpack.c.b16 %v530, %v528
    %v703 = vpack.c.b16 %v531, %v529
    %v704 = vpack.c.b16 %v534, %v532
    %v705 = vpack.c.b16 %v535, %v533
    %v706 = vpack.c.b16 %v538, %v536
    %v707 = vpack.c.b16 %v539, %v537
    %v708 = vpack.c.b16 %v542, %v540
    %v709 = vpack.c.b16 %v543, %v541
    %v710 = vpack.c.b16 %v546, %v544
    %v711 = vpack.c.b16 %v547, %v545
    %v712 = vpack.c.b16 %v550, %v548
    %v713 = vpack.c.b16 %v551, %v549
    %v714 = vpack.c.b16 %v554, %v552
    %v715 = vpack.c.b16 %v555, %v553
    %v716 = vpack.c.b16 %v558, %v556
    %v717 = vpack.c.b16 %v559, %v557
    %v718 = vpack.c.b16 %v562, %v560
    %v719 = vpack.c.b16 %v563, %v561
    %v720 = vpack.c.b16 %v566, %v564
    %v721 = vpack.c.b16 %v567, %v565
    %v722 = vpack.c.b16 %v570, %v568
    %v723 = vpack.c.b16 %v571, %v569
    %v724 = vpack.c.b16 %v574, %v572
    %v725 = vpack.c.b16 %v575, %v573
    %v726 = vpack.c.b16 %v578, %v576
    %v727 = vpack.c.b16 %v579, %v577
    %v728 = vpack.c.b16 %v582, %v580
    %v729 = vpack.c.b16 %v583, %v581
    %v730 = vpack.c.b16 %v586, %v584
    %v731 = vpack.c.b16 %v587, %v585
    %v732 = vpack.c.b16 %v590, %v588
    %v733 = vpack.c.b16 %v591, %v589
    %v734 = vpack.c.b16 %v594, %v592
    %v735 = vpack.c.b16 %v595, %v593
    %v736 = vpack.c.b16 %v598, %v596
    %v737 = vpack.c.b16 %v599, %v597
    %v738 = vpack.c.b16 %v602, %v600
    %v739 = vpack.c.b16 %v603, %v601
    %v740 = vpack.c.b16 %v606, %v604
    %v741 = vpack.c.b16 %v607, %v605
    %v742 = vpack.c.b16 %v610, %v608
    %v743 = vpack.c.b16 %v611, %v609
    %v744 = vpack.c.b16 %v614, %v612
    %v745 = vpack.c.b16 %v615, %v613
    %v746 = vpack.c.b16 %v618, %v616
    %v747 = vpack.c.b16 %v619, %v617
    %876 = vmatprep.subr.bf16.mxu0 %v621
    %877 = vmatpush1.bf16.msra.mxu0 %v620
    %878 = vmatprep.subr.bf16.mxu0 %v623
    %879 = vmatpush1.bf16.msra.mxu0 %v622
    %880 = vmatprep.subr.bf16.mxu0 %v625
    %881 = vmatpush1.bf16.msra.mxu0 %v624
    %882 = vmatprep.subr.bf16.mxu0 %v627
    %883 = vmatpush1.bf16.msra.mxu0 %v626
    %884 = vmatprep.subr.bf16.mxu0 %v629
    %885 = vmatpush1.bf16.msra.mxu0 %v628
    %886 = vmatprep.subr.bf16.mxu0 %v631
    %887 = vmatpush1.bf16.msra.mxu0 %v630
    %888 = vmatprep.subr.bf16.mxu0 %v633
    %889 = vmatpush1.bf16.msra.mxu0 %v632
    %890 = vmatprep.subr.bf16.mxu0 %v635
    %891 = vmatpush1.bf16.msra.mxu0 %v634
    %892 = vmatprep.subr.bf16.mxu0 %v637
    %893 = vmatpush1.bf16.msra.mxu0 %v636
    %894 = vmatprep.subr.bf16.mxu0 %v639
    %895 = vmatpush1.bf16.msra.mxu0 %v638
    %896 = vmatprep.subr.bf16.mxu0 %v641
    %897 = vmatpush1.bf16.msra.mxu0 %v640
    %898 = vmatprep.subr.bf16.mxu0 %v643
    %899 = vmatpush1.bf16.msra.mxu0 %v642
    %900 = vmatprep.subr.bf16.mxu0 %v645
    %901 = vmatpush1.bf16.msra.mxu0 %v644
    %902 = vmatprep.subr.bf16.mxu0 %v647
    %903 = vmatpush1.bf16.msra.mxu0 %v646
    %904 = vmatprep.subr.bf16.mxu0 %v649
    %905 = vmatpush1.bf16.msra.mxu0 %v648
    %906 = vmatprep.subr.bf16.mxu0 %v651
    %907 = vmatpush1.bf16.msra.mxu0 %v650
    %908 = vmatprep.mubr.bf16.mxu0 %v229
    %909 = vmatmul.mubr.bf16.gmra.mrb[0].mxu0 %v228
    %v910 = vpop.f32.mrb[0].mxu0
    %v911 = vadd.f32 0.0, %v910
    %v912 = vpop.f32.mrb[0].mxu0
    %v913 = vadd.f32 0.0, %v912
    %v914 = vpop.f32.mrb[0].mxu0
    %v915 = vpop.f32.mrb[0].mxu0
    %916 = vdwg.mxu0
    %917 = vmatprep.subr.bf16.mxu0 %v653
    %918 = vmatpush1.bf16.msra.mxu0 %v652
    %919 = vmatprep.subr.bf16.mxu0 %v655
    %920 = vmatpush1.bf16.msra.mxu0 %v654
    %921 = vmatprep.subr.bf16.mxu0 %v657
    %922 = vmatpush1.bf16.msra.mxu0 %v656
    %923 = vmatprep.subr.bf16.mxu0 %v659
    %924 = vmatpush1.bf16.msra.mxu0 %v658
    %925 = vmatprep.subr.bf16.mxu0 %v661
    %926 = vmatpush1.bf16.msra.mxu0 %v660
    %927 = vmatprep.subr.bf16.mxu0 %v663
    %928 = vmatpush1.bf16.msra.mxu0 %v662
    %929 = vmatprep.subr.bf16.mxu0 %v665
    %930 = vmatpush1.bf16.msra.mxu0 %v664
    %931 = vmatprep.subr.bf16.mxu0 %v667
    %932 = vmatpush1.bf16.msra.mxu0 %v666
    %933 = vmatprep.subr.bf16.mxu0 %v669
    %934 = vmatpush1.bf16.msra.mxu0 %v668
    %935 = vmatprep.subr.bf16.mxu0 %v671
    %936 = vmatpush1.bf16.msra.mxu0 %v670
    %937 = vmatprep.subr.bf16.mxu0 %v673
    %938 = vmatpush1.bf16.msra.mxu0 %v672
    %939 = vmatprep.subr.bf16.mxu0 %v675
    %940 = vmatpush1.bf16.msra.mxu0 %v674
    %941 = vmatprep.subr.bf16.mxu0 %v677
    %942 = vmatpush1.bf16.msra.mxu0 %v676
    %943 = vmatprep.subr.bf16.mxu0 %v679
    %944 = vmatpush1.bf16.msra.mxu0 %v678
    %945 = vmatprep.subr.bf16.mxu0 %v681
    %946 = vmatpush1.bf16.msra.mxu0 %v680
    %947 = vmatprep.subr.bf16.mxu0 %v683
    %948 = vmatpush1.bf16.msra.mxu0 %v682
    %949 = vmatprep.mubr.bf16.mxu0 %v231
    %950 = vmatmul.mubr.bf16.gmra.mrb[0].mxu0 %v230
    %v951 = vpop.f32.mrb[0].mxu0
    %v952 = vadd.f32 %v911, %v951
    %v953 = vpop.f32.mrb[0].mxu0
    %v954 = vadd.f32 %v913, %v953
    %v955 = vpop.f32.mrb[0].mxu0
    %v956 = vpop.f32.mrb[0].mxu0
    %957 = vdwg.mxu0
    %958 = vmatprep.subr.bf16.mxu0 %v685
    %959 = vmatpush1.bf16.msra.mxu0 %v684
    %960 = vmatprep.subr.bf16.mxu0 %v687
    %961 = vmatpush1.bf16.msra.mxu0 %v686
    %962 = vmatprep.subr.bf16.mxu0 %v689
    %963 = vmatpush1.bf16.msra.mxu0 %v688
    %964 = vmatprep.subr.bf16.mxu0 %v691
    %965 = vmatpush1.bf16.msra.mxu0 %v690
    %966 = vmatprep.subr.bf16.mxu0 %v693
    %967 = vmatpush1.bf16.msra.mxu0 %v692
    %968 = vmatprep.subr.bf16.mxu0 %v695
    %969 = vmatpush1.bf16.msra.mxu0 %v694
    %970 = vmatprep.subr.bf16.mxu0 %v697
    %971 = vmatpush1.bf16.msra.mxu0 %v696
    %972 = vmatprep.subr.bf16.mxu0 %v699
    %973 = vmatpush1.bf16.msra.mxu0 %v698
    %974 = vmatprep.subr.bf16.mxu0 %v701
    %975 = vmatpush1.bf16.msra.mxu0 %v700
    %976 = vmatprep.subr.bf16.mxu0 %v703
    %977 = vmatpush1.bf16.msra.mxu0 %v702
    %978 = vmatprep.subr.bf16.mxu0 %v705
    %979 = vmatpush1.bf16.msra.mxu0 %v704
    %980 = vmatprep.subr.bf16.mxu0 %v707
    %981 = vmatpush1.bf16.msra.mxu0 %v706
    %982 = vmatprep.subr.bf16.mxu0 %v709
    %983 = vmatpush1.bf16.msra.mxu0 %v708
    %984 = vmatprep.subr.bf16.mxu0 %v711
    %985 = vmatpush1.bf16.msra.mxu0 %v710
    %986 = vmatprep.subr.bf16.mxu0 %v713
    %987 = vmatpush1.bf16.msra.mxu0 %v712
    %988 = vmatprep.subr.bf16.mxu0 %v715
    %989 = vmatpush1.bf16.msra.mxu0 %v714
    %990 = vmatprep.mubr.bf16.mxu0 %v233
    %991 = vmatmul.mubr.bf16.gmra.mrb[0].mxu0 %v232
    %v992 = vpop.f32.mrb[0].mxu0
    %v993 = vadd.f32 %v952, %v992
    %v994 = vpop.f32.mrb[0].mxu0
    %v995 = vadd.f32 %v954, %v994
    %v996 = vpop.f32.mrb[0].mxu0
    %v997 = vpop.f32.mrb[0].mxu0
    %998 = vdwg.mxu0
    %999 = vmatprep.subr.bf16.mxu0 %v717
    %1000 = vmatpush1.bf16.msra.mxu0 %v716
    %1001 = vmatprep.subr.bf16.mxu0 %v719
    %1002 = vmatpush1.bf16.msra.mxu0 %v718
    %1003 = vmatprep.subr.bf16.mxu0 %v721
    %1004 = vmatpush1.bf16.msra.mxu0 %v720
    %1005 = vmatprep.subr.bf16.mxu0 %v723
    %1006 = vmatpush1.bf16.msra.mxu0 %v722
    %1007 = vmatprep.subr.bf16.mxu0 %v725
    %1008 = vmatpush1.bf16.msra.mxu0 %v724
    %1009 = vmatprep.subr.bf16.mxu0 %v727
    %1010 = vmatpush1.bf16.msra.mxu0 %v726
    %1011 = vmatprep.subr.bf16.mxu0 %v729
    %1012 = vmatpush1.bf16.msra.mxu0 %v728
    %1013 = vmatprep.subr.bf16.mxu0 %v731
    %1014 = vmatpush1.bf16.msra.mxu0 %v730
    %1015 = vmatprep.subr.bf16.mxu0 %v733
    %1016 = vmatpush1.bf16.msra.mxu0 %v732
    %1017 = vmatprep.subr.bf16.mxu0 %v735
    %1018 = vmatpush1.bf16.msra.mxu0 %v734
    %1019 = vmatprep.subr.bf16.mxu0 %v737
    %1020 = vmatpush1.bf16.msra.mxu0 %v736
    %1021 = vmatprep.subr.bf16.mxu0 %v739
    %1022 = vmatpush1.bf16.msra.mxu0 %v738
    %1023 = vmatprep.subr.bf16.mxu0 %v741
    %1024 = vmatpush1.bf16.msra.mxu0 %v740
    %1025 = vmatprep.subr.bf16.mxu0 %v743
    %1026 = vmatpush1.bf16.msra.mxu0 %v742
    %1027 = vmatprep.subr.bf16.mxu0 %v745
    %1028 = vmatpush1.bf16.msra.mxu0 %v744
    %1029 = vmatprep.subr.bf16.mxu0 %v747
    %1030 = vmatpush1.bf16.msra.mxu0 %v746
    %1031 = vmatprep.mubr.bf16.mxu0 %v235
    %1032 = vmatmul.mubr.bf16.gmra.mrb[0].mxu0 %v234
    %v1033 = vpop.f32.mrb[0].mxu0
    %v1034 = vadd.f32 %v993, %v1033
    %v1035 = vpop.f32.mrb[0].mxu0
    %v1036 = vadd.f32 %v995, %v1035
    %v1037 = vpop.f32.mrb[0].mxu0
    %v1038 = vpop.f32.mrb[0].mxu0
    %1039 = vdwg.mxu0
    %v1040 = vld [vmem:[#allocation5] sm:$0xff]
    %v1041 = vld [vmem:[#allocation5 + $0x8] sm:$0xff]
    %v1042 = vld [vmem:[#allocation5 + $0x10] sm:$0xff]
    %v1043 = vld [vmem:[#allocation5 + $0x18] sm:$0xff]
    %v1044 = vld [vmem:[#allocation5 + $0x20] sm:$0xff]
    %v1045 = vld [vmem:[#allocation5 + $0x28] sm:$0xff]
    %v1046 = vld [vmem:[#allocation5 + $0x30] sm:$0xff]
    %v1047 = vld [vmem:[#allocation5 + $0x38] sm:$0xff]
    %v1048 = vpack.c.bf16 %v1040, %v1040
    %v1049 = vpack.c.bf16 %v1041, %v1041
    %v1050 = vpack.c.bf16 %v1042, %v1042
    %v1051 = vpack.c.bf16 %v1043, %v1043
    %v1052 = vpack.c.bf16 %v1044, %v1044
    %v1053 = vpack.c.bf16 %v1045, %v1045
    %v1054 = vpack.c.bf16 %v1046, %v1046
    %v1055 = vpack.c.bf16 %v1047, %v1047
    %1056 = vmatprep.subr.bf16.mxu0 %v621
    %1057 = vmatpush1.bf16.msra.mxu0 %v620
    %1058 = vmatprep.subr.bf16.mxu0 %v623
    %1059 = vmatpush1.bf16.msra.mxu0 %v622
    %1060 = vmatprep.subr.bf16.mxu0 %v625
    %1061 = vmatpush1.bf16.msra.mxu0 %v624
    %1062 = vmatprep.subr.bf16.mxu0 %v627
    %1063 = vmatpush1.bf16.msra.mxu0 %v626
    %1064 = vmatprep.subr.bf16.mxu0 %v629
    %1065 = vmatpush1.bf16.msra.mxu0 %v628
    %1066 = vmatprep.subr.bf16.mxu0 %v631
    %1067 = vmatpush1.bf16.msra.mxu0 %v630
    %1068 = vmatprep.subr.bf16.mxu0 %v633
    %1069 = vmatpush1.bf16.msra.mxu0 %v632
    %1070 = vmatprep.subr.bf16.mxu0 %v635
    %1071 = vmatpush1.bf16.msra.mxu0 %v634
    %1072 = vmatprep.subr.bf16.mxu0 %v637
    %1073 = vmatpush1.bf16.msra.mxu0 %v636
    %1074 = vmatprep.subr.bf16.mxu0 %v639
    %1075 = vmatpush1.bf16.msra.mxu0 %v638
    %1076 = vmatprep.subr.bf16.mxu0 %v641
    %1077 = vmatpush1.bf16.msra.mxu0 %v640
    %1078 = vmatprep.subr.bf16.mxu0 %v643
    %1079 = vmatpush1.bf16.msra.mxu0 %v642
    %1080 = vmatprep.subr.bf16.mxu0 %v645
    %1081 = vmatpush1.bf16.msra.mxu0 %v644
    %1082 = vmatprep.subr.bf16.mxu0 %v647
    %1083 = vmatpush1.bf16.msra.mxu0 %v646
    %1084 = vmatprep.subr.bf16.mxu0 %v649
    %1085 = vmatpush1.bf16.msra.mxu0 %v648
    %1086 = vmatprep.subr.bf16.mxu0 %v651
    %1087 = vmatpush1.bf16.msra.mxu0 %v650
    %1088 = vmatprep.mubr.bf16.mxu0 %v1049
    %1089 = vmatmul.mubr.bf16.gmra.mrb[0].mxu0 %v1048
    %v1090 = vpop.f32.mrb[0].mxu0
    %v1091 = vadd.f32 0.0, %v1090
    %v1092 = vpop.f32.mrb[0].mxu0
    %v1093 = vadd.f32 0.0, %v1092
    %v1094 = vpop.f32.mrb[0].mxu0
    %v1095 = vpop.f32.mrb[0].mxu0
    %1096 = vdwg.mxu0
    %1097 = vmatprep.subr.bf16.mxu0 %v653
    %1098 = vmatpush1.bf16.msra.mxu0 %v652
    %1099 = vmatprep.subr.bf16.mxu0 %v655
    %1100 = vmatpush1.bf16.msra.mxu0 %v654
    %1101 = vmatprep.subr.bf16.mxu0 %v657
    %1102 = vmatpush1.bf16.msra.mxu0 %v656
    %1103 = vmatprep.subr.bf16.mxu0 %v659
    %1104 = vmatpush1.bf16.msra.mxu0 %v658
    %1105 = vmatprep.subr.bf16.mxu0 %v661
    %1106 = vmatpush1.bf16.msra.mxu0 %v660
    %1107 = vmatprep.subr.bf16.mxu0 %v663
    %1108 = vmatpush1.bf16.msra.mxu0 %v662
    %1109 = vmatprep.subr.bf16.mxu0 %v665
    %1110 = vmatpush1.bf16.msra.mxu0 %v664
    %1111 = vmatprep.subr.bf16.mxu0 %v667
    %1112 = vmatpush1.bf16.msra.mxu0 %v666
    %1113 = vmatprep.subr.bf16.mxu0 %v669
    %1114 = vmatpush1.bf16.msra.mxu0 %v668
    %1115 = vmatprep.subr.bf16.mxu0 %v671
    %1116 = vmatpush1.bf16.msra.mxu0 %v670
    %1117 = vmatprep.subr.bf16.mxu0 %v673
    %1118 = vmatpush1.bf16.msra.mxu0 %v672
    %1119 = vmatprep.subr.bf16.mxu0 %v675
    %1120 = vmatpush1.bf16.msra.mxu0 %v674
    %1121 = vmatprep.subr.bf16.mxu0 %v677
    %1122 = vmatpush1.bf16.msra.mxu0 %v676
    %1123 = vmatprep.subr.bf16.mxu0 %v679
    %1124 = vmatpush1.bf16.msra.mxu0 %v678
    %1125 = vmatprep.subr.bf16.mxu0 %v681
    %1126 = vmatpush1.bf16.msra.mxu0 %v680
    %1127 = vmatprep.subr.bf16.mxu0 %v683
    %1128 = vmatpush1.bf16.msra.mxu0 %v682
    %1129 = vmatprep.mubr.bf16.mxu0 %v1051
    %1130 = vmatmul.mubr.bf16.gmra.mrb[0].mxu0 %v1050
    %v1131 = vpop.f32.mrb[0].mxu0
    %v1132 = vadd.f32 %v1091, %v1131
    %v1133 = vpop.f32.mrb[0].mxu0
    %v1134 = vadd.f32 %v1093, %v1133
    %v1135 = vpop.f32.mrb[0].mxu0
    %v1136 = vpop.f32.mrb[0].mxu0
    %1137 = vdwg.mxu0
    %1138 = vmatprep.subr.bf16.mxu0 %v685
    %1139 = vmatpush1.bf16.msra.mxu0 %v684
    %1140 = vmatprep.subr.bf16.mxu0 %v687
    %1141 = vmatpush1.bf16.msra.mxu0 %v686
    %1142 = vmatprep.subr.bf16.mxu0 %v689
    %1143 = vmatpush1.bf16.msra.mxu0 %v688
    %1144 = vmatprep.subr.bf16.mxu0 %v691
    %1145 = vmatpush1.bf16.msra.mxu0 %v690
    %1146 = vmatprep.subr.bf16.mxu0 %v693
    %1147 = vmatpush1.bf16.msra.mxu0 %v692
    %1148 = vmatprep.subr.bf16.mxu0 %v695
    %1149 = vmatpush1.bf16.msra.mxu0 %v694
    %1150 = vmatprep.subr.bf16.mxu0 %v697
    %1151 = vmatpush1.bf16.msra.mxu0 %v696
    %1152 = vmatprep.subr.bf16.mxu0 %v699
    %1153 = vmatpush1.bf16.msra.mxu0 %v698
    %1154 = vmatprep.subr.bf16.mxu0 %v701
    %1155 = vmatpush1.bf16.msra.mxu0 %v700
    %1156 = vmatprep.subr.bf16.mxu0 %v703
    %1157 = vmatpush1.bf16.msra.mxu0 %v702
    %1158 = vmatprep.subr.bf16.mxu0 %v705
    %1159 = vmatpush1.bf16.msra.mxu0 %v704
    %1160 = vmatprep.subr.bf16.mxu0 %v707
    %1161 = vmatpush1.bf16.msra.mxu0 %v706
    %1162 = vmatprep.subr.bf16.mxu0 %v709
    %1163 = vmatpush1.bf16.msra.mxu0 %v708
    %1164 = vmatprep.subr.bf16.mxu0 %v711
    %1165 = vmatpush1.bf16.msra.mxu0 %v710
    %1166 = vmatprep.subr.bf16.mxu0 %v713
    %1167 = vmatpush1.bf16.msra.mxu0 %v712
    %1168 = vmatprep.subr.bf16.mxu0 %v715
    %1169 = vmatpush1.bf16.msra.mxu0 %v714
    %1170 = vmatprep.mubr.bf16.mxu0 %v1053
    %1171 = vmatmul.mubr.bf16.gmra.mrb[0].mxu0 %v1052
    %v1172 = vpop.f32.mrb[0].mxu0
    %v1173 = vadd.f32 %v1132, %v1172
    %v1174 = vpop.f32.mrb[0].mxu0
    %v1175 = vadd.f32 %v1134, %v1174
    %v1176 = vpop.f32.mrb[0].mxu0
    %v1177 = vpop.f32.mrb[0].mxu0
    %1178 = vdwg.mxu0
    %1179 = vmatprep.subr.bf16.mxu0 %v717
    %1180 = vmatpush1.bf16.msra.mxu0 %v716
    %1181 = vmatprep.subr.bf16.mxu0 %v719
    %1182 = vmatpush1.bf16.msra.mxu0 %v718
    %1183 = vmatprep.subr.bf16.mxu0 %v721
    %1184 = vmatpush1.bf16.msra.mxu0 %v720
    %1185 = vmatprep.subr.bf16.mxu0 %v723
    %1186 = vmatpush1.bf16.msra.mxu0 %v722
    %1187 = vmatprep.subr.bf16.mxu0 %v725
    %1188 = vmatpush1.bf16.msra.mxu0 %v724
    %1189 = vmatprep.subr.bf16.mxu0 %v727
    %1190 = vmatpush1.bf16.msra.mxu0 %v726
    %1191 = vmatprep.subr.bf16.mxu0 %v729
    %1192 = vmatpush1.bf16.msra.mxu0 %v728
    %1193 = vmatprep.subr.bf16.mxu0 %v731
    %1194 = vmatpush1.bf16.msra.mxu0 %v730
    %1195 = vmatprep.subr.bf16.mxu0 %v733
    %1196 = vmatpush1.bf16.msra.mxu0 %v732
    %1197 = vmatprep.subr.bf16.mxu0 %v735
    %1198 = vmatpush1.bf16.msra.mxu0 %v734
    %1199 = vmatprep.subr.bf16.mxu0 %v737
    %1200 = vmatpush1.bf16.msra.mxu0 %v736
    %1201 = vmatprep.subr.bf16.mxu0 %v739
    %1202 = vmatpush1.bf16.msra.mxu0 %v738
    %1203 = vmatprep.subr.bf16.mxu0 %v741
    %1204 = vmatpush1.bf16.msra.mxu0 %v740
    %1205 = vmatprep.subr.bf16.mxu0 %v743
    %1206 = vmatpush1.bf16.msra.mxu0 %v742
    %1207 = vmatprep.subr.bf16.mxu0 %v745
    %1208 = vmatpush1.bf16.msra.mxu0 %v744
    %1209 = vmatprep.subr.bf16.mxu0 %v747
    %1210 = vmatpush1.bf16.msra.mxu0 %v746
    %1211 = vmatprep.mubr.bf16.mxu0 %v1055
    %1212 = vmatmul.mubr.bf16.gmra.mrb[0].mxu0 %v1054
    %v1213 = vpop.f32.mrb[0].mxu0
    %v1214 = vadd.f32 %v1173, %v1213
    %v1215 = vpop.f32.mrb[0].mxu0
    %v1216 = vadd.f32 %v1175, %v1215
    %v1217 = vpop.f32.mrb[0].mxu0
    %v1218 = vpop.f32.mrb[0].mxu0
    %1219 = vdwg.mxu0
    %p1220 = scmp.eq.s32.totalorder 0, 0
    // Predicated region
    $region42: #{tpu_custom_call.1} parent=1 // pred_check
      %p1221 = pneg %p1220
    $region43: #{tpu_custom_call.1} parent=1 // pred_check_branch
      %1223 = sbr.rel (%p1221) target = $region45
    $region44: #{tpu_custom_call.1} parent=1 // pred_region
      %1224 = vst [vmem:[#allocation11] sm:$0xff] %v1034
      %1225 = vst [vmem:[#allocation11 + $0x8] sm:$0xff] %v1036
      %1226 = vst [vmem:[#allocation12] sm:$0xff] %v1214
      %1227 = vst [vmem:[#allocation12 + $0x8] sm:$0xff] %v1216
    $region45: #{tpu_custom_call.1} parent=1 // pred_fallthru
      _
    %p1228 = scmp.gt.s32.totalorder 0, 0
    // Predicated region
    $region46: #{tpu_custom_call.1} parent=1 // pred_check
      %p1229 = pneg %p1228
    $region47: #{tpu_custom_call.1} parent=1 // pred_check_branch
      %1231 = sbr.rel (%p1229) target = $region49
    $region48: #{tpu_custom_call.1} parent=1 // pred_region
      %v1232 = vld [vmem:[#allocation11] sm:$0xff]
      %v1233 = vld [vmem:[#allocation11 + $0x8] sm:$0xff]
      %v1234 = vadd.f32 %v1232, %v1034
      %v1235 = vadd.f32 %v1233, %v1036
      %1236 = vst [vmem:[#allocation11] sm:$0xff] %v1234
      %1237 = vst [vmem:[#allocation11 + $0x8] sm:$0xff] %v1235
      %v1238 = vld [vmem:[#allocation12] sm:$0xff]
      %v1239 = vld [vmem:[#allocation12 + $0x8] sm:$0xff]
      %v1240 = vadd.f32 %v1238, %v1214
      %v1241 = vadd.f32 %v1239, %v1216
      %1242 = vst [vmem:[#allocation12] sm:$0xff] %v1240
      %1243 = vst [vmem:[#allocation12 + $0x8] sm:$0xff] %v1241
    $region49: #{tpu_custom_call.1} parent=1 // pred_fallthru
      _
    // Predicated region
    $region50: #{tpu_custom_call.1} parent=1 // pred_check
      %p1244 = pneg %p1220
    $region51: #{tpu_custom_call.1} parent=1 // pred_check_branch
      %1246 = sbr.rel (%p1244) target = $region53
    $region52: #{tpu_custom_call.1} parent=1 // pred_region
      %v1247 = vld [vmem:[#allocation8] sm:$0xff]
      %v1248 = vld [vmem:[#allocation8 + $0x8] sm:$0xff]
      %v1249 = vld [vmem:[#allocation8 + $0x10] sm:$0xff]
      %v1250 = vld [vmem:[#allocation8 + $0x18] sm:$0xff]
      %v1251 = vld [vmem:[#allocation8 + $0x20] sm:$0xff]
      %v1252 = vld [vmem:[#allocation8 + $0x28] sm:$0xff]
      %v1253 = vld [vmem:[#allocation8 + $0x30] sm:$0xff]
      %v1254 = vld [vmem:[#allocation8 + $0x38] sm:$0xff]
      %v1255 = vld [vmem:[#allocation8 + $0x40] sm:$0xff]
      %v1256 = vld [vmem:[#allocation8 + $0x48] sm:$0xff]
      %v1257 = vld [vmem:[#allocation8 + $0x50] sm:$0xff]
      %v1258 = vld [vmem:[#allocation8 + $0x58] sm:$0xff]
      %v1259 = vld [vmem:[#allocation8 + $0x60] sm:$0xff]
      %v1260 = vld [vmem:[#allocation8 + $0x68] sm:$0xff]
      %v1261 = vld [vmem:[#allocation8 + $0x70] sm:$0xff]
      %v1262 = vld [vmem:[#allocation8 + $0x78] sm:$0xff]
      %v1263 = vld [vmem:[#allocation8 + $0x80] sm:$0xff]
      %v1264 = vld [vmem:[#allocation8 + $0x88] sm:$0xff]
      %v1265 = vld [vmem:[#allocation8 + $0x90] sm:$0xff]
      %v1266 = vld [vmem:[#allocation8 + $0x98] sm:$0xff]
      %v1267 = vld [vmem:[#allocation8 + $0xa0] sm:$0xff]
      %v1268 = vld [vmem:[#allocation8 + $0xa8] sm:$0xff]
      %v1269 = vld [vmem:[#allocation8 + $0xb0] sm:$0xff]
      %v1270 = vld [vmem:[#allocation8 + $0xb8] sm:$0xff]
      %v1271 = vld [vmem:[#allocation8 + $0xc0] sm:$0xff]
      %v1272 = vld [vmem:[#allocation8 + $0xc8] sm:$0xff]
      %v1273 = vld [vmem:[#allocation8 + $0xd0] sm:$0xff]
      %v1274 = vld [vmem:[#allocation8 + $0xd8] sm:$0xff]
      %v1275 = vld [vmem:[#allocation8 + $0xe0] sm:$0xff]
      %v1276 = vld [vmem:[#allocation8 + $0xe8] sm:$0xff]
      %v1277 = vld [vmem:[#allocation8 + $0xf0] sm:$0xff]
      %v1278 = vld [vmem:[#allocation8 + $0xf8] sm:$0xff]
      %v1279 = vld [vmem:[#allocation10] sm:$0xf]
      %v1280 = vld [vmem:[#allocation10 + $0x4] sm:$0xf]
      %v1281 = vld [vmem:[#allocation10 + $0x8] sm:$0xf]
      %v1282 = vld [vmem:[#allocation10 + $0xc] sm:$0xf]
      %v1283 = vld [vmem:[#allocation10 + $0x10] sm:$0xf]
      %v1284 = vld [vmem:[#allocation10 + $0x14] sm:$0xf]
      %v1285 = vld [vmem:[#allocation10 + $0x18] sm:$0xf]
      %v1286 = vld [vmem:[#allocation10 + $0x1c] sm:$0xf]
      %v1287 = vld [vmem:[#allocation10 + $0x20] sm:$0xf]
      %v1288 = vld [vmem:[#allocation10 + $0x24] sm:$0xf]
      %v1289 = vld [vmem:[#allocation10 + $0x28] sm:$0xf]
      %v1290 = vld [vmem:[#allocation10 + $0x2c] sm:$0xf]
      %v1291 = vld [vmem:[#allocation10 + $0x30] sm:$0xf]
      %v1292 = vld [vmem:[#allocation10 + $0x34] sm:$0xf]
      %v1293 = vld [vmem:[#allocation10 + $0x38] sm:$0xf]
      %v1294 = vld [vmem:[#allocation10 + $0x3c] sm:$0xf]
      %v1295 = vld [vmem:[#allocation10 + $0x40] sm:$0xf]
      %v1296 = vld [vmem:[#allocation10 + $0x44] sm:$0xf]
      %v1297 = vld [vmem:[#allocation10 + $0x48] sm:$0xf]
      %v1298 = vld [vmem:[#allocation10 + $0x4c] sm:$0xf]
      %v1299 = vld [vmem:[#allocation10 + $0x50] sm:$0xf]
      %v1300 = vld [vmem:[#allocation10 + $0x54] sm:$0xf]
      %v1301 = vld [vmem:[#allocation10 + $0x58] sm:$0xf]
      %v1302 = vld [vmem:[#allocation10 + $0x5c] sm:$0xf]
      %v1303 = vld [vmem:[#allocation10 + $0x60] sm:$0xf]
      %v1304 = vld [vmem:[#allocation10 + $0x64] sm:$0xf]
      %v1305 = vld [vmem:[#allocation10 + $0x68] sm:$0xf]
      %v1306 = vld [vmem:[#allocation10 + $0x6c] sm:$0xf]
      %v1307 = vld [vmem:[#allocation10 + $0x70] sm:$0xf]
      %v1308 = vld [vmem:[#allocation10 + $0x74] sm:$0xf]
      %v1309 = vld [vmem:[#allocation10 + $0x78] sm:$0xf]
      %v1310 = vld [vmem:[#allocation10 + $0x7c] sm:$0xf]
      %v1311 = vld [vmem:[#allocation11] sm:$0xff]
      %v1312 = vld [vmem:[#allocation11 + $0x8] sm:$0xff]
      %v1313 = vpack.c.bf16 %v1311, %v1311
      %v1314 = vpack.c.bf16 %v1312, %v1312
      %v1347 = vunpack.c.l.b16 %v1247
      %v1348 = vunpack.c.h.b16 %v1247
      %v1349 = vunpack.c.l.b16 %v1248
      %v1350 = vunpack.c.h.b16 %v1248
      %v1351 = vunpack.c.l.b16 %v1249
      %v1352 = vunpack.c.h.b16 %v1249
      %v1353 = vunpack.c.l.b16 %v1250
      %v1354 = vunpack.c.h.b16 %v1250
      %v1355 = vunpack.c.l.b16 %v1251
      %v1356 = vunpack.c.h.b16 %v1251
      %v1357 = vunpack.c.l.b16 %v1252
      %v1358 = vunpack.c.h.b16 %v1252
      %v1359 = vunpack.c.l.b16 %v1253
      %v1360 = vunpack.c.h.b16 %v1253
      %v1361 = vunpack.c.l.b16 %v1254
      %v1362 = vunpack.c.h.b16 %v1254
      %v1363 = vunpack.c.l.b16 %v1255
      %v1364 = vunpack.c.h.b16 %v1255
      %v1365 = vunpack.c.l.b16 %v1256
      %v1366 = vunpack.c.h.b16 %v1256
      %v1367 = vunpack.c.l.b16 %v1257
      %v1368 = vunpack.c.h.b16 %v1257
      %v1369 = vunpack.c.l.b16 %v1258
      %v1370 = vunpack.c.h.b16 %v1258
      %v1371 = vunpack.c.l.b16 %v1259
      %v1372 = vunpack.c.h.b16 %v1259
      %v1373 = vunpack.c.l.b16 %v1260
      %v1374 = vunpack.c.h.b16 %v1260
      %v1375 = vunpack.c.l.b16 %v1261
      %v1376 = vunpack.c.h.b16 %v1261
      %v1377 = vunpack.c.l.b16 %v1262
      %v1378 = vunpack.c.h.b16 %v1262
      %v1379 = vunpack.c.l.b16 %v1263
      %v1380 = vunpack.c.h.b16 %v1263
      %v1381 = vunpack.c.l.b16 %v1264
      %v1382 = vunpack.c.h.b16 %v1264
      %v1383 = vunpack.c.l.b16 %v1265
      %v1384 = vunpack.c.h.b16 %v1265
      %v1385 = vunpack.c.l.b16 %v1266
      %v1386 = vunpack.c.h.b16 %v1266
      %v1387 = vunpack.c.l.b16 %v1267
      %v1388 = vunpack.c.h.b16 %v1267
      %v1389 = vunpack.c.l.b16 %v1268
      %v1390 = vunpack.c.h.b16 %v1268
      %v1391 = vunpack.c.l.b16 %v1269
      %v1392 = vunpack.c.h.b16 %v1269
      %v1393 = vunpack.c.l.b16 %v1270
      %v1394 = vunpack.c.h.b16 %v1270
      %v1395 = vunpack.c.l.b16 %v1271
      %v1396 = vunpack.c.h.b16 %v1271
      %v1397 = vunpack.c.l.b16 %v1272
      %v1398 = vunpack.c.h.b16 %v1272
      %v1399 = vunpack.c.l.b16 %v1273
      %v1400 = vunpack.c.h.b16 %v1273
      %v1401 = vunpack.c.l.b16 %v1274
      %v1402 = vunpack.c.h.b16 %v1274
      %v1403 = vunpack.c.l.b16 %v1275
      %v1404 = vunpack.c.h.b16 %v1275
      %v1405 = vunpack.c.l.b16 %v1276
      %v1406 = vunpack.c.h.b16 %v1276
      %v1407 = vunpack.c.l.b16 %v1277
      %v1408 = vunpack.c.h.b16 %v1277
      %v1409 = vunpack.c.l.b16 %v1278
      %v1410 = vunpack.c.h.b16 %v1278
      %v1411 = vpack.c.b16 %v1349, %v1347
      %v1412 = vpack.c.b16 %v1350, %v1348
      %v1413 = vpack.c.b16 %v1353, %v1351
      %v1414 = vpack.c.b16 %v1354, %v1352
      %v1415 = vpack.c.b16 %v1357, %v1355
      %v1416 = vpack.c.b16 %v1358, %v1356
      %v1417 = vpack.c.b16 %v1361, %v1359
      %v1418 = vpack.c.b16 %v1362, %v1360
      %v1419 = vpack.c.b16 %v1365, %v1363
      %v1420 = vpack.c.b16 %v1366, %v1364
      %v1421 = vpack.c.b16 %v1369, %v1367
      %v1422 = vpack.c.b16 %v1370, %v1368
      %v1423 = vpack.c.b16 %v1373, %v1371
      %v1424 = vpack.c.b16 %v1374, %v1372
      %v1425 = vpack.c.b16 %v1377, %v1375
      %v1426 = vpack.c.b16 %v1378, %v1376
      %v1427 = vpack.c.b16 %v1381, %v1379
      %v1428 = vpack.c.b16 %v1382, %v1380
      %v1429 = vpack.c.b16 %v1385, %v1383
      %v1430 = vpack.c.b16 %v1386, %v1384
      %v1431 = vpack.c.b16 %v1389, %v1387
      %v1432 = vpack.c.b16 %v1390, %v1388
      %v1433 = vpack.c.b16 %v1393, %v1391
      %v1434 = vpack.c.b16 %v1394, %v1392
      %v1435 = vpack.c.b16 %v1397, %v1395
      %v1436 = vpack.c.b16 %v1398, %v1396
      %v1437 = vpack.c.b16 %v1401, %v1399
      %v1438 = vpack.c.b16 %v1402, %v1400
      %v1439 = vpack.c.b16 %v1405, %v1403
      %v1440 = vpack.c.b16 %v1406, %v1404
      %v1441 = vpack.c.b16 %v1409, %v1407
      %v1442 = vpack.c.b16 %v1410, %v1408
      %1475 = vmatprep.subr.bf16.mxu0 %v1412
      %1476 = vmatpush1.bf16.msra.mxu0 %v1411
      %1477 = vmatprep.subr.bf16.mxu0 %v1414
      %1478 = vmatpush1.bf16.msra.mxu0 %v1413
      %1479 = vmatprep.subr.bf16.mxu0 %v1416
      %1480 = vmatpush1.bf16.msra.mxu0 %v1415
      %1481 = vmatprep.subr.bf16.mxu0 %v1418
      %1482 = vmatpush1.bf16.msra.mxu0 %v1417
      %1483 = vmatprep.subr.bf16.mxu0 %v1420
      %1484 = vmatpush1.bf16.msra.mxu0 %v1419
      %1485 = vmatprep.subr.bf16.mxu0 %v1422
      %1486 = vmatpush1.bf16.msra.mxu0 %v1421
      %1487 = vmatprep.subr.bf16.mxu0 %v1424
      %1488 = vmatpush1.bf16.msra.mxu0 %v1423
      %1489 = vmatprep.subr.bf16.mxu0 %v1426
      %1490 = vmatpush1.bf16.msra.mxu0 %v1425
      %1491 = vmatprep.subr.bf16.mxu0 %v1428
      %1492 = vmatpush1.bf16.msra.mxu0 %v1427
      %1493 = vmatprep.subr.bf16.mxu0 %v1430
      %1494 = vmatpush1.bf16.msra.mxu0 %v1429
      %1495 = vmatprep.subr.bf16.mxu0 %v1432
      %1496 = vmatpush1.bf16.msra.mxu0 %v1431
      %1497 = vmatprep.subr.bf16.mxu0 %v1434
      %1498 = vmatpush1.bf16.msra.mxu0 %v1433
      %1499 = vmatprep.subr.bf16.mxu0 %v1436
      %1500 = vmatpush1.bf16.msra.mxu0 %v1435
      %1501 = vmatprep.subr.bf16.mxu0 %v1438
      %1502 = vmatpush1.bf16.msra.mxu0 %v1437
      %1503 = vmatprep.subr.bf16.mxu0 %v1440
      %1504 = vmatpush1.bf16.msra.mxu0 %v1439
      %1505 = vmatprep.subr.bf16.mxu0 %v1442
      %1506 = vmatpush1.bf16.msra.mxu0 %v1441
      %1507 = vmatprep.mubr.bf16.mxu0 %v1314
      %1508 = vmatmul.mubr.bf16.gmra.mrb[0].mxu0 %v1313
      %v1509 = vpop.f32.mrb[0].mxu0
      %v1510 = vadd.f32 0.0, %v1509
      %v1511 = vpop.f32.mrb[0].mxu0
      %v1512 = vadd.f32 0.0, %v1511
      %v1513 = vpop.f32.mrb[0].mxu0
      %v1514 = vpop.f32.mrb[0].mxu0
      %1515 = vdwg.mxu0
      %v1516 = vmax.f32 %v1510, 0.0
      %v1517 = vmax.f32 %v1512, 0.0
      %v1518 = vpack.c.bf16 %v1516, %v1516
      %v1519 = vpack.c.bf16 %v1517, %v1517
      %v1552 = vunpack.c.l.b16 %v1279
      %v1553 = vunpack.c.l.b16 %v1280
      %v1554 = vunpack.c.l.b16 %v1281
      %v1555 = vunpack.c.l.b16 %v1282
      %v1556 = vunpack.c.l.b16 %v1283
      %v1557 = vunpack.c.l.b16 %v1284
      %v1558 = vunpack.c.l.b16 %v1285
      %v1559 = vunpack.c.l.b16 %v1286
      %v1560 = vunpack.c.l.b16 %v1287
      %v1561 = vunpack.c.l.b16 %v1288
      %v1562 = vunpack.c.l.b16 %v1289
      %v1563 = vunpack.c.l.b16 %v1290
      %v1564 = vunpack.c.l.b16 %v1291
      %v1565 = vunpack.c.l.b16 %v1292
      %v1566 = vunpack.c.l.b16 %v1293
      %v1567 = vunpack.c.l.b16 %v1294
      %v1568 = vunpack.c.l.b16 %v1295
      %v1569 = vunpack.c.l.b16 %v1296
      %v1570 = vunpack.c.l.b16 %v1297
      %v1571 = vunpack.c.l.b16 %v1298
      %v1572 = vunpack.c.l.b16 %v1299
      %v1573 = vunpack.c.l.b16 %v1300
      %v1574 = vunpack.c.l.b16 %v1301
      %v1575 = vunpack.c.l.b16 %v1302
      %v1576 = vunpack.c.l.b16 %v1303
      %v1577 = vunpack.c.l.b16 %v1304
      %v1578 = vunpack.c.l.b16 %v1305
      %v1579 = vunpack.c.l.b16 %v1306
      %v1580 = vunpack.c.l.b16 %v1307
      %v1581 = vunpack.c.l.b16 %v1308
      %v1582 = vunpack.c.l.b16 %v1309
      %v1583 = vunpack.c.l.b16 %v1310
      %v1584 = vpack.c.b16 %v1553, %v1552
      %v1585 = vpack.c.b16 %v1555, %v1554
      %v1586 = vpack.c.b16 %v1557, %v1556
      %v1587 = vpack.c.b16 %v1559, %v1558
      %v1588 = vpack.c.b16 %v1561, %v1560
      %v1589 = vpack.c.b16 %v1563, %v1562
      %v1590 = vpack.c.b16 %v1565, %v1564
      %v1591 = vpack.c.b16 %v1567, %v1566
      %v1592 = vpack.c.b16 %v1569, %v1568
      %v1593 = vpack.c.b16 %v1571, %v1570
      %v1594 = vpack.c.b16 %v1573, %v1572
      %v1595 = vpack.c.b16 %v1575, %v1574
      %v1596 = vpack.c.b16 %v1577, %v1576
      %v1597 = vpack.c.b16 %v1579, %v1578
      %v1598 = vpack.c.b16 %v1581, %v1580
      %v1599 = vpack.c.b16 %v1583, %v1582
      %1616 = vmatprep.subr.bf16.mxu0 0
      %1617 = vmatpush1.bf16.msra.mxu0 %v1584
      %1618 = vmatprep.subr.bf16.mxu0 0
      %1619 = vmatpush1.bf16.msra.mxu0 %v1585
      %1620 = vmatprep.subr.bf16.mxu0 0
      %1621 = vmatpush1.bf16.msra.mxu0 %v1586
      %1622 = vmatprep.subr.bf16.mxu0 0
      %1623 = vmatpush1.bf16.msra.mxu0 %v1587
      %1624 = vmatprep.subr.bf16.mxu0 0
      %1625 = vmatpush1.bf16.msra.mxu0 %v1588
      %1626 = vmatprep.subr.bf16.mxu0 0
      %1627 = vmatpush1.bf16.msra.mxu0 %v1589
      %1628 = vmatprep.subr.bf16.mxu0 0
      %1629 = vmatpush1.bf16.msra.mxu0 %v1590
      %1630 = vmatprep.subr.bf16.mxu0 0
      %1631 = vmatpush1.bf16.msra.mxu0 %v1591
      %1632 = vmatprep.subr.bf16.mxu0 0
      %1633 = vmatpush1.bf16.msra.mxu0 %v1592
      %1634 = vmatprep.subr.bf16.mxu0 0
      %1635 = vmatpush1.bf16.msra.mxu0 %v1593
      %1636 = vmatprep.subr.bf16.mxu0 0
      %1637 = vmatpush1.bf16.msra.mxu0 %v1594
      %1638 = vmatprep.subr.bf16.mxu0 0
      %1639 = vmatpush1.bf16.msra.mxu0 %v1595
      %1640 = vmatprep.subr.bf16.mxu0 0
      %1641 = vmatpush1.bf16.msra.mxu0 %v1596
      %1642 = vmatprep.subr.bf16.mxu0 0
      %1643 = vmatpush1.bf16.msra.mxu0 %v1597
      %1644 = vmatprep.subr.bf16.mxu0 0
      %1645 = vmatpush1.bf16.msra.mxu0 %v1598
      %1646 = vmatprep.subr.bf16.mxu0 0
      %1647 = vmatpush1.bf16.msra.mxu0 %v1599
      %1648 = vmatprep.mubr.bf16.mxu0 %v1519
      %1649 = vmatmul.mubr.bf16.gmra.mrb[0].mxu0 %v1518
      %v1650 = vpop.f32.mrb[0].mxu0
      %v1651 = vadd.f32 0.0, %v1650
      %v1652 = vpop.f32.mrb[0].mxu0
      %v1653 = vpop.f32.mrb[0].mxu0
      %v1654 = vpop.f32.mrb[0].mxu0
      %1655 = vdwg.mxu0
      %1656 = vst [vmem:[#allocation14] sm:$0xff] %v1651
      %v1657 = vld [vmem:[#allocation12] sm:$0xff]
      %v1658 = vld [vmem:[#allocation12 + $0x8] sm:$0xff]
      %v1659 = vpack.c.bf16 %v1657, %v1657
      %v1660 = vpack.c.bf16 %v1658, %v1658
      %1661 = vmatprep.subr.bf16.mxu0 %v1412
      %1662 = vmatpush1.bf16.msra.mxu0 %v1411
      %1663 = vmatprep.subr.bf16.mxu0 %v1414
      %1664 = vmatpush1.bf16.msra.mxu0 %v1413
      %1665 = vmatprep.subr.bf16.mxu0 %v1416
      %1666 = vmatpush1.bf16.msra.mxu0 %v1415
      %1667 = vmatprep.subr.bf16.mxu0 %v1418
      %1668 = vmatpush1.bf16.msra.mxu0 %v1417
      %1669 = vmatprep.subr.bf16.mxu0 %v1420
      %1670 = vmatpush1.bf16.msra.mxu0 %v1419
      %1671 = vmatprep.subr.bf16.mxu0 %v1422
      %1672 = vmatpush1.bf16.msra.mxu0 %v1421
      %1673 = vmatprep.subr.bf16.mxu0 %v1424
      %1674 = vmatpush1.bf16.msra.mxu0 %v1423
      %1675 = vmatprep.subr.bf16.mxu0 %v1426
      %1676 = vmatpush1.bf16.msra.mxu0 %v1425
      %1677 = vmatprep.subr.bf16.mxu0 %v1428
      %1678 = vmatpush1.bf16.msra.mxu0 %v1427
      %1679 = vmatprep.subr.bf16.mxu0 %v1430
      %1680 = vmatpush1.bf16.msra.mxu0 %v1429
      %1681 = vmatprep.subr.bf16.mxu0 %v1432
      %1682 = vmatpush1.bf16.msra.mxu0 %v1431
      %1683 = vmatprep.subr.bf16.mxu0 %v1434
      %1684 = vmatpush1.bf16.msra.mxu0 %v1433
      %1685 = vmatprep.subr.bf16.mxu0 %v1436
      %1686 = vmatpush1.bf16.msra.mxu0 %v1435
      %1687 = vmatprep.subr.bf16.mxu0 %v1438
      %1688 = vmatpush1.bf16.msra.mxu0 %v1437
      %1689 = vmatprep.subr.bf16.mxu0 %v1440
      %1690 = vmatpush1.bf16.msra.mxu0 %v1439
      %1691 = vmatprep.subr.bf16.mxu0 %v1442
      %1692 = vmatpush1.bf16.msra.mxu0 %v1441
      %1693 = vmatprep.mubr.bf16.mxu0 %v1660
      %1694 = vmatmul.mubr.bf16.gmra.mrb[0].mxu0 %v1659
      %v1695 = vpop.f32.mrb[0].mxu0
      %v1696 = vadd.f32 0.0, %v1695
      %v1697 = vpop.f32.mrb[0].mxu0
      %v1698 = vadd.f32 0.0, %v1697
      %v1699 = vpop.f32.mrb[0].mxu0
      %v1700 = vpop.f32.mrb[0].mxu0
      %1701 = vdwg.mxu0
      %v1702 = vmax.f32 %v1696, 0.0
      %v1703 = vmax.f32 %v1698, 0.0
      %v1704 = vpack.c.bf16 %v1702, %v1702
      %v1705 = vpack.c.bf16 %v1703, %v1703
      %1706 = vmatprep.subr.bf16.mxu0 0
      %1707 = vmatpush1.bf16.msra.mxu0 %v1584
      %1708 = vmatprep.subr.bf16.mxu0 0
      %1709 = vmatpush1.bf16.msra.mxu0 %v1585
      %1710 = vmatprep.subr.bf16.mxu0 0
      %1711 = vmatpush1.bf16.msra.mxu0 %v1586
      %1712 = vmatprep.subr.bf16.mxu0 0
      %1713 = vmatpush1.bf16.msra.mxu0 %v1587
      %1714 = vmatprep.subr.bf16.mxu0 0
      %1715 = vmatpush1.bf16.msra.mxu0 %v1588
      %1716 = vmatprep.subr.bf16.mxu0 0
      %1717 = vmatpush1.bf16.msra.mxu0 %v1589
      %1718 = vmatprep.subr.bf16.mxu0 0
      %1719 = vmatpush1.bf16.msra.mxu0 %v1590
      %1720 = vmatprep.subr.bf16.mxu0 0
      %1721 = vmatpush1.bf16.msra.mxu0 %v1591
      %1722 = vmatprep.subr.bf16.mxu0 0
      %1723 = vmatpush1.bf16.msra.mxu0 %v1592
      %1724 = vmatprep.subr.bf16.mxu0 0
      %1725 = vmatpush1.bf16.msra.mxu0 %v1593
      %1726 = vmatprep.subr.bf16.mxu0 0
      %1727 = vmatpush1.bf16.msra.mxu0 %v1594
      %1728 = vmatprep.subr.bf16.mxu0 0
      %1729 = vmatpush1.bf16.msra.mxu0 %v1595
      %1730 = vmatprep.subr.bf16.mxu0 0
      %1731 = vmatpush1.bf16.msra.mxu0 %v1596
      %1732 = vmatprep.subr.bf16.mxu0 0
      %1733 = vmatpush1.bf16.msra.mxu0 %v1597
      %1734 = vmatprep.subr.bf16.mxu0 0
      %1735 = vmatpush1.bf16.msra.mxu0 %v1598
      %1736 = vmatprep.subr.bf16.mxu0 0
      %1737 = vmatpush1.bf16.msra.mxu0 %v1599
      %1738 = vmatprep.mubr.bf16.mxu0 %v1705
      %1739 = vmatmul.mubr.bf16.gmra.mrb[0].mxu0 %v1704
      %v1740 = vpop.f32.mrb[0].mxu0
      %v1741 = vadd.f32 0.0, %v1740
      %v1742 = vpop.f32.mrb[0].mxu0
      %v1743 = vpop.f32.mrb[0].mxu0
      %v1744 = vpop.f32.mrb[0].mxu0
      %1745 = vdwg.mxu0
      %1746 = vst [vmem:[#allocation15] sm:$0xff] %v1741
    $region53: #{tpu_custom_call.1} parent=1 // pred_fallthru
      _
    // Predicated region
    $region54: #{tpu_custom_call.1} parent=1 // pred_check
      _
    $region55: #{tpu_custom_call.1} parent=1 // pred_check_branch
      %1748 = sbr.rel (0) target = $region57
    $region56: #{tpu_custom_call.1} parent=1 // pred_region
      %s1750 = ssub.s32 256, 256
      %1751 = vsyncadd [#allocation4], %s1750
      %s1753 = sshll.u32 [#allocation11], 4
      %s1754 = int_to_ptr.vmem [resolvable:$true] %s1753
      %1756 = dma.vmem_to_hbm [thread:$0]  %s1754, 256, %s5, [#allocation4]
    $region57: #{tpu_custom_call.1} parent=1 // pred_fallthru
      _
    // Predicated region
    $region58: #{tpu_custom_call.1} parent=1 // pred_check
      _
    $region59: #{tpu_custom_call.1} parent=1 // pred_check_branch
      %1758 = sbr.rel (0) target = $region61
    $region60: #{tpu_custom_call.1} parent=1 // pred_region
      %s1760 = ssub.s32 256, 256
      %1761 = vsyncadd [#allocation13], %s1760
      %s1763 = sshll.u32 [#allocation12], 4
      %s1764 = int_to_ptr.vmem [resolvable:$true] %s1763
      %1766 = dma.vmem_to_hbm [thread:$0]  %s1764, 256, %s6, [#allocation13]
    $region61: #{tpu_custom_call.1} parent=1 // pred_fallthru
      _
    // Predicated region
    $region62: #{tpu_custom_call.1} parent=1 // pred_check
      _
    $region63: #{tpu_custom_call.1} parent=1 // pred_check_branch
      %1768 = sbr.rel (0) target = $region65
    $region64: #{tpu_custom_call.1} parent=1 // pred_region
      %s1770 = ssub.s32 128, 128
      %1771 = vsyncadd [#allocation13], %s1770
      %s1773 = sshll.u32 [#allocation14], 4
      %s1774 = int_to_ptr.vmem [resolvable:$true] %s1773
      %1776 = dma.vmem_to_hbm [thread:$0]  %s1774, 128, %s7, [#allocation13]
    $region65: #{tpu_custom_call.1} parent=1 // pred_fallthru
      _
    // Predicated region
    $region66: #{tpu_custom_call.1} parent=1 // pred_check
      _
    $region67: #{tpu_custom_call.1} parent=1 // pred_check_branch
      %1778 = sbr.rel (0) target = $region69
    $region68: #{tpu_custom_call.1} parent=1 // pred_region
      %s1780 = ssub.s32 128, 128
      %1781 = vsyncadd [#allocation16], %s1780
      %s1783 = sshll.u32 [#allocation15], 4
      %s1784 = int_to_ptr.vmem [resolvable:$true] %s1783
      %1786 = dma.vmem_to_hbm [thread:$0]  %s1784, 128, %s8, [#allocation16]
    $region69: #{tpu_custom_call.1} parent=1 // pred_fallthru
      _
    // Predicated region
    $region70: #{tpu_custom_call.1} parent=1 // pred_check
      _
    $region71: #{tpu_custom_call.1} parent=1 // pred_check_branch
      %1788 = sbr.rel (0) target = $region73
    $region72: #{tpu_custom_call.1} parent=1 // pred_region
      %1789 = dma.done [#allocation4], 256
    $region73: #{tpu_custom_call.1} parent=1 // pred_fallthru
      _
    // Predicated region
    $region74: #{tpu_custom_call.1} parent=1 // pred_check
      _
    $region75: #{tpu_custom_call.1} parent=1 // pred_check_branch
      %1791 = sbr.rel (0) target = $region77
    $region76: #{tpu_custom_call.1} parent=1 // pred_region
      %1792 = dma.done [#allocation13], 256
    $region77: #{tpu_custom_call.1} parent=1 // pred_fallthru
      _
    // Predicated region
    $region78: #{tpu_custom_call.1} parent=1 // pred_check
      _
    $region79: #{tpu_custom_call.1} parent=1 // pred_check_branch
      %1794 = sbr.rel (0) target = $region81
    $region80: #{tpu_custom_call.1} parent=1 // pred_region
      %1795 = dma.done [#allocation13], 128
    $region81: #{tpu_custom_call.1} parent=1 // pred_fallthru
      _
    // Predicated region
    $region82: #{tpu_custom_call.1} parent=1 // pred_check
      _
    $region83: #{tpu_custom_call.1} parent=1 // pred_check_branch
      %1797 = sbr.rel (0) target = $region85
    $region84: #{tpu_custom_call.1} parent=1 // pred_region
      %1798 = dma.done [#allocation16], 128
    $region85: #{tpu_custom_call.1} parent=1 // pred_fallthru
      _
    %1799 = vsyncpa [#allocation3], 1
    %1800 = vsyncpa [#allocation6], 1
    %1801 = vsyncpa [#allocation9], 1
    %1802 = vsyncpa [#allocation4], 1
    %1803 = vsyncpa [#allocation13], 1
    %1804 = vsyncpa [#allocation16], 1

// kernel: tpu_custom_call.1
$region0: #{tpu_custom_call.1}
  #allocation0 [shape = 'u32[]', space=smem, size = 0x4, offset = 0x4, fixed_abs, tag = 'smem constant byte address 0x4 - core index']
  #allocation1 [shape = 'u32[144,128]{1,0:T(1,128)}', space=vmem, size = 0x12000, scoped, tag = 'internal scratch']
  %s0 = inlined_call_operand.hbm [shape: f32[8,1024], index: 0, kind: input, shape index: {}]
  %s1 = inlined_call_operand.hbm [shape: f32[8,1024], index: 1, kind: input, shape index: {}]
  %s2 = inlined_call_operand.hbm [shape: bf16[1024,256], index: 2, kind: input, shape index: {}]
  %s3 = inlined_call_operand.hbm [shape: bf16[256,256], index: 3, kind: input, shape index: {}]
  %s4 = inlined_call_operand.hbm [shape: bf16[256,128], index: 4, kind: input, shape index: {}]
  %s5 = inlined_call_operand.hbm [shape: f32[8,256], index: 5, kind: output, shape index: {0}]
  %s6 = inlined_call_operand.hbm [shape: f32[8,256], index: 6, kind: output, shape index: {1}]
  %s7 = inlined_call_operand.hbm [shape: f32[8,128], index: 7, kind: output, shape index: {2}]
  %s8 = inlined_call_operand.hbm [shape: f32[8,128], index: 8, kind: output, shape index: {3}]
  %9 = xla_tuple %s5, %s6, %s7, %s8
  %s10 = sld [smem:[#allocation0]]
  $region86: #{tpu_custom_call.1} parent=0
    _
  %s12 = ssub.s32 1, %s10
  %s13 = scalar_select 0, %s12, %s10
  $region1: #{tpu_custom_call.1} parent=0
    #allocation2 [shape = 'u8[32768]{0}', space=vmem, size = 0x8000, scoped, tag = 'input window, operand 0, single buffered']
    #allocation3 [shape = 's32[1]{0}', space=sflag, size = 0x4, scoped, tag = 'scoped memory for tpu_custom_call.1']
    #allocation4 [shape = 's32[1]{0}', space=sflag, size = 0x4, scoped, tag = 'scoped memory for tpu_custom_call.1']
    #allocation5 [shape = 'u8[32768]{0}', space=vmem, size = 0x8000, scoped, tag = 'input window, operand 1, single buffered']
    #allocation6 [shape = 's32[1]{0}', space=sflag, size = 0x4, scoped, tag = 'scoped memory for tpu_custom_call.1']
    #allocation7 [shape = 'u8[524288]{0}', space=vmem, size = 0x80000, scoped, tag = 'input window, operand 2, single buffered']
    #allocation8 [shape = 'u8[131072]{0}', space=vmem, size = 0x20000, scoped, tag = 'input window, operand 3, single buffered']
    #allocation9 [shape = 's32[1]{0}', space=sflag, size = 0x4, scoped, tag = 'scoped memory for tpu_custom_call.1']
    #allocation10 [shape = 'u8[65536]{0}', space=vmem, size = 0x10000, scoped, tag = 'input window, operand 4, single buffered']
    #allocation11 [shape = 'u8[8192]{0}', space=vmem, size = 0x2000, scoped, tag = 'output window, operand 0, single buffered']
    #allocation12 [shape = 'u8[8192]{0}', space=vmem, size = 0x2000, scoped, tag = 'output window, operand 1, single buffered']
    #allocation13 [shape = 's32[1]{0}', space=sflag, size = 0x4, scoped, tag = 'scoped memory for tpu_custom_call.1']
    #allocation14 [shape = 'u8[4096]{0}', space=vmem, size = 0x1000, scoped, tag = 'output window, operand 2, single buffered']
    #allocation15 [shape = 'u8[4096]{0}', space=vmem, size = 0x1000, scoped, tag = 'output window, operand 3, single buffered']
    #allocation16 [shape = 's32[1]{0}', space=sflag, size = 0x4, scoped, tag = 'scoped memory for tpu_custom_call.1']
    %14 = vsyncpa [#allocation3], 0
    %15 = vsyncpa [#allocation6], 0
    %16 = vsyncpa [#allocation9], 0
    %17 = vsyncpa [#allocation4], 0
    %18 = vsyncpa [#allocation13], 0
    %19 = vsyncpa [#allocation16], 0
    // Predicated region
    $region2: #{tpu_custom_call.1} parent=1 // pred_check
      _
    $region3: #{tpu_custom_call.1} parent=1 // pred_check_branch
      %21 = sbr.rel (0) target = $region5
    $region4: #{tpu_custom_call.1} parent=1 // pred_region
      %s23 = ssub.s32 1024, 1024
      %24 = vsyncadd [#allocation3], %s23
      %s26 = sshll.u32 [#allocation2], 4
      %s27 = int_to_ptr.vmem [resolvable:$true] %s26
      %29 = dma.hbm_to_vmem [thread:$0]  %s0, 1024, %s27, [#allocation3]
    $region5: #{tpu_custom_call.1} parent=1 // pred_fallthru
      _
    // Predicated region
    $region6: #{tpu_custom_call.1} parent=1 // pred_check
      _
    $region7: #{tpu_custom_call.1} parent=1 // pred_check_branch
      %31 = sbr.rel (0) target = $region9
    $region8: #{tpu_custom_call.1} parent=1 // pred_region
      %s33 = ssub.s32 1024, 1024
      %34 = vsyncadd [#allocation6], %s33
      %s36 = sshll.u32 [#allocation5], 4
      %s37 = int_to_ptr.vmem [resolvable:$true] %s36
      %39 = dma.hbm_to_vmem [thread:$0]  %s1, 1024, %s37, [#allocation6]
    $region9: #{tpu_custom_call.1} parent=1 // pred_fallthru
      _
    // Predicated region
    $region10: #{tpu_custom_call.1} parent=1 // pred_check
      _
    $region11: #{tpu_custom_call.1} parent=1 // pred_check_branch
      %41 = sbr.rel (0) target = $region13
    $region12: #{tpu_custom_call.1} parent=1 // pred_region
      %s43 = ssub.s32 16384, 16384
      %44 = vsyncadd [#allocation6], %s43
      %s45 = sshll.u32 [#allocation7], 4
      %s46 = int_to_ptr.vmem [resolvable:$true] %s45
      %51 = dma.hbm_to_vmem [thread:$0]  %s2, 16384, %s46, [#allocation6], 128, 128, 8
    $region13: #{tpu_custom_call.1} parent=1 // pred_fallthru
      _
    // Predicated region
    $region14: #{tpu_custom_call.1} parent=1 // pred_check
      _
    $region15: #{tpu_custom_call.1} parent=1 // pred_check_branch
      %53 = sbr.rel (0) target = $region17
    $region16: #{tpu_custom_call.1} parent=1 // pred_region
      %s55 = ssub.s32 4096, 4096
      %56 = vsyncadd [#allocation9], %s55
      %s57 = sshll.u32 [#allocation8], 4
      %s58 = int_to_ptr.vmem [resolvable:$true] %s57
      %63 = dma.hbm_to_vmem [thread:$0]  %s3, 4096, %s58, [#allocation9], 128, 128, 8
    $region17: #{tpu_custom_call.1} parent=1 // pred_fallthru
      _
    // Predicated region
    $region18: #{tpu_custom_call.1} parent=1 // pred_check
      _
    $region19: #{tpu_custom_call.1} parent=1 // pred_check_branch
      %65 = sbr.rel (0) target = $region21
    $region20: #{tpu_custom_call.1} parent=1 // pred_region
      %s67 = ssub.s32 2048, 2048
      %68 = vsyncadd [#allocation9], %s67
      %s69 = sshll.u32 [#allocation10], 4
      %s70 = int_to_ptr.vmem [resolvable:$true] %s69
      %75 = dma.hbm_to_vmem [thread:$0]  %s4, 2048, %s70, [#allocation9], 64, 64, 4
    $region21: #{tpu_custom_call.1} parent=1 // pred_fallthru
      _
    // Predicated region
    $region22: #{tpu_custom_call.1} parent=1 // pred_check
      _
    $region23: #{tpu_custom_call.1} parent=1 // pred_check_branch
      %77 = sbr.rel (0) target = $region25
    $region24: #{tpu_custom_call.1} parent=1 // pred_region
      %78 = dma.done [#allocation3], 1024
    $region25: #{tpu_custom_call.1} parent=1 // pred_fallthru
      _
    // Predicated region
    $region26: #{tpu_custom_call.1} parent=1 // pred_check
      _
    $region27: #{tpu_custom_call.1} parent=1 // pred_check_branch
      %80 = sbr.rel (0) target = $region29
    $region28: #{tpu_custom_call.1} parent=1 // pred_region
      %81 = dma.done [#allocation6], 1024
    $region29: #{tpu_custom_call.1} parent=1 // pred_fallthru
      _
    // Predicated region
    $region30: #{tpu_custom_call.1} parent=1 // pred_check
      _
    $region31: #{tpu_custom_call.1} parent=1 // pred_check_branch
      %83 = sbr.rel (0) target = $region33
    $region32: #{tpu_custom_call.1} parent=1 // pred_region
      %84 = dma.done [#allocation6], 16384
    $region33: #{tpu_custom_call.1} parent=1 // pred_fallthru
      _
    // Predicated region
    $region34: #{tpu_custom_call.1} parent=1 // pred_check
      _
    $region35: #{tpu_custom_call.1} parent=1 // pred_check_branch
      %86 = sbr.rel (0) target = $region37
    $region36: #{tpu_custom_call.1} parent=1 // pred_region
      %87 = dma.done [#allocation9], 4096
    $region37: #{tpu_custom_call.1} parent=1 // pred_fallthru
      _
    // Predicated region
    $region38: #{tpu_custom_call.1} parent=1 // pred_check
      _
    $region39: #{tpu_custom_call.1} parent=1 // pred_check_branch
      %89 = sbr.rel (0) target = $region41
    $region40: #{tpu_custom_call.1} parent=1 // pred_region
      %90 = dma.done [#allocation9], 2048
    $region41: #{tpu_custom_call.1} parent=1 // pred_fallthru
      _
    %v92 = vld [vmem:[#allocation7] sm:$0xff]
    %v93 = vld [vmem:[#allocation7 + $0x8] sm:$0xff]
    %v94 = vld [vmem:[#allocation7 + $0x10] sm:$0xff]
    %v95 = vld [vmem:[#allocation7 + $0x18] sm:$0xff]
    %v96 = vld [vmem:[#allocation7 + $0x20] sm:$0xff]
    %v97 = vld [vmem:[#allocation7 + $0x28] sm:$0xff]
    %v98 = vld [vmem:[#allocation7 + $0x30] sm:$0xff]
    %v99 = vld [vmem:[#allocation7 + $0x38] sm:$0xff]
    %v100 = vld [vmem:[#allocation7 + $0x40] sm:$0xff]
    %v101 = vld [vmem:[#allocation7 + $0x48] sm:$0xff]
    %v102 = vld [vmem:[#allocation7 + $0x50] sm:$0xff]
    %v103 = vld [vmem:[#allocation7 + $0x58] sm:$0xff]
    %v104 = vld [vmem:[#allocation7 + $0x60] sm:$0xff]
    %v105 = vld [vmem:[#allocation7 + $0x68] sm:$0xff]
    %v106 = vld [vmem:[#allocation7 + $0x70] sm:$0xff]
    %v107 = vld [vmem:[#allocation7 + $0x78] sm:$0xff]
    %v108 = vld [vmem:[#allocation7 + $0x80] sm:$0xff]
    %v109 = vld [vmem:[#allocation7 + $0x88] sm:$0xff]
    %v110 = vld [vmem:[#allocation7 + $0x90] sm:$0xff]
    %v111 = vld [vmem:[#allocation7 + $0x98] sm:$0xff]
    %v112 = vld [vmem:[#allocation7 + $0xa0] sm:$0xff]
    %v113 = vld [vmem:[#allocation7 + $0xa8] sm:$0xff]
    %v114 = vld [vmem:[#allocation7 + $0xb0] sm:$0xff]
    %v115 = vld [vmem:[#allocation7 + $0xb8] sm:$0xff]
    %v116 = vld [vmem:[#allocation7 + $0xc0] sm:$0xff]
    %v117 = vld [vmem:[#allocation7 + $0xc8] sm:$0xff]
    %v118 = vld [vmem:[#allocation7 + $0xd0] sm:$0xff]
    %v119 = vld [vmem:[#allocation7 + $0xd8] sm:$0xff]
    %v120 = vld [vmem:[#allocation7 + $0xe0] sm:$0xff]
    %v121 = vld [vmem:[#allocation7 + $0xe8] sm:$0xff]
    %v122 = vld [vmem:[#allocation7 + $0xf0] sm:$0xff]
    %v123 = vld [vmem:[#allocation7 + $0xf8] sm:$0xff]
    %v124 = vld [vmem:[#allocation7 + $0x100] sm:$0xff]
    %v125 = vld [vmem:[#allocation7 + $0x108] sm:$0xff]
    %v126 = vld [vmem:[#allocation7 + $0x110] sm:$0xff]
    %v127 = vld [vmem:[#allocation7 + $0x118] sm:$0xff]
    %v128 = vld [vmem:[#allocation7 + $0x120] sm:$0xff]
    %v129 = vld [vmem:[#allocation7 + $0x128] sm:$0xff]
    %v130 = vld [vmem:[#allocation7 + $0x130] sm:$0xff]
    %v131 = vld [vmem:[#allocation7 + $0x138] sm:$0xff]
    %v132 = vld [vmem:[#allocation7 + $0x140] sm:$0xff]
    %v133 = vld [vmem:[#allocation7 + $0x148] sm:$0xff]
    %v134 = vld [vmem:[#allocation7 + $0x150] sm:$0xff]
    %v135 = vld [vmem:[#allocation7 + $0x158] sm:$0xff]
    %v136 = vld [vmem:[#allocation7 + $0x160] sm:$0xff]
    %v137 = vld [vmem:[#allocation7 + $0x168] sm:$0xff]
    %v138 = vld [vmem:[#allocation7 + $0x170] sm:$0xff]
    %v139 = vld [vmem:[#allocation7 + $0x178] sm:$0xff]
    %v140 = vld [vmem:[#allocation7 + $0x180] sm:$0xff]
    %v141 = vld [vmem:[#allocation7 + $0x188] sm:$0xff]
    %v142 = vld [vmem:[#allocation7 + $0x190] sm:$0xff]
    %v143 = vld [vmem:[#allocation7 + $0x198] sm:$0xff]
    %v144 = vld [vmem:[#allocation7 + $0x1a0] sm:$0xff]
    %v145 = vld [vmem:[#allocation7 + $0x1a8] sm:$0xff]
    %v146 = vld [vmem:[#allocation7 + $0x1b0] sm:$0xff]
    %v147 = vld [vmem:[#allocation7 + $0x1b8] sm:$0xff]
    %v148 = vld [vmem:[#allocation7 + $0x1c0] sm:$0xff]
    %v149 = vld [vmem:[#allocation7 + $0x1c8] sm:$0xff]
    %v150 = vld [vmem:[#allocation7 + $0x1d0] sm:$0xff]
    %v151 = vld [vmem:[#allocation7 + $0x1d8] sm:$0xff]
    %v152 = vld [vmem:[#allocation7 + $0x1e0] sm:$0xff]
    %v153 = vld [vmem:[#allocation7 + $0x1e8] sm:$0xff]
    %v154 = vld [vmem:[#allocation7 + $0x1f0] sm:$0xff]
    %v155 = vld [vmem:[#allocation7 + $0x1f8] sm:$0xff]
    %v156 = vld [vmem:[#allocation7 + $0x200] sm:$0xff]
    %v157 = vld [vmem:[#allocation7 + $0x208] sm:$0xff]
    %v158 = vld [vmem:[#allocation7 + $0x210] sm:$0xff]
    %v159 = vld [vmem:[#allocation7 + $0x218] sm:$0xff]
    %v160 = vld [vmem:[#allocation7 + $0x220] sm:$0xff]
    %v161 = vld [vmem:[#allocation7 + $0x228] sm:$0xff]
    %v162 = vld [vmem:[#allocation7 + $0x230] sm:$0xff]
    %v163 = vld [vmem:[#allocation7 + $0x238] sm:$0xff]
    %v164 = vld [vmem:[#allocation7 + $0x240] sm:$0xff]
    %v165 = vld [vmem:[#allocation7 + $0x248] sm:$0xff]
    %v166 = vld [vmem:[#allocation7 + $0x250] sm:$0xff]
    %v167 = vld [vmem:[#allocation7 + $0x258] sm:$0xff]
    %v168 = vld [vmem:[#allocation7 + $0x260] sm:$0xff]
    %v169 = vld [vmem:[#allocation7 + $0x268] sm:$0xff]
    %v170 = vld [vmem:[#allocation7 + $0x270] sm:$0xff]
    %v171 = vld [vmem:[#allocation7 + $0x278] sm:$0xff]
    %v172 = vld [vmem:[#allocation7 + $0x280] sm:$0xff]
    %v173 = vld [vmem:[#allocation7 + $0x288] sm:$0xff]
    %v174 = vld [vmem:[#allocation7 + $0x290] sm:$0xff]
    %v175 = vld [vmem:[#allocation7 + $0x298] sm:$0xff]
    %v176 = vld [vmem:[#allocation7 + $0x2a0] sm:$0xff]
    %v177 = vld [vmem:[#allocation7 + $0x2a8] sm:$0xff]
    %v178 = vld [vmem:[#allocation7 + $0x2b0] sm:$0xff]
    %v179 = vld [vmem:[#allocation7 + $0x2b8] sm:$0xff]
    %v180 = vld [vmem:[#allocation7 + $0x2c0] sm:$0xff]
    %v181 = vld [vmem:[#allocation7 + $0x2c8] sm:$0xff]
    %v182 = vld [vmem:[#allocation7 + $0x2d0] sm:$0xff]
    %v183 = vld [vmem:[#allocation7 + $0x2d8] sm:$0xff]
    %v184 = vld [vmem:[#allocation7 + $0x2e0] sm:$0xff]
    %v185 = vld [vmem:[#allocation7 + $0x2e8] sm:$0xff]
    %v186 = vld [vmem:[#allocation7 + $0x2f0] sm:$0xff]
    %v187 = vld [vmem:[#allocation7 + $0x2f8] sm:$0xff]
    %v188 = vld [vmem:[#allocation7 + $0x300] sm:$0xff]
    %v189 = vld [vmem:[#allocation7 + $0x308] sm:$0xff]
    %v190 = vld [vmem:[#allocation7 + $0x310] sm:$0xff]
    %v191 = vld [vmem:[#allocation7 + $0x318] sm:$0xff]
    %v192 = vld [vmem:[#allocation7 + $0x320] sm:$0xff]
    %v193 = vld [vmem:[#allocation7 + $0x328] sm:$0xff]
    %v194 = vld [vmem:[#allocation7 + $0x330] sm:$0xff]
    %v195 = vld [vmem:[#allocation7 + $0x338] sm:$0xff]
    %v196 = vld [vmem:[#allocation7 + $0x340] sm:$0xff]
    %v197 = vld [vmem:[#allocation7 + $0x348] sm:$0xff]
    %v198 = vld [vmem:[#allocation7 + $0x350] sm:$0xff]
    %v199 = vld [vmem:[#allocation7 + $0x358] sm:$0xff]
    %v200 = vld [vmem:[#allocation7 + $0x360] sm:$0xff]
    %v201 = vld [vmem:[#allocation7 + $0x368] sm:$0xff]
    %v202 = vld [vmem:[#allocation7 + $0x370] sm:$0xff]
    %v203 = vld [vmem:[#allocation7 + $0x378] sm:$0xff]
    %v204 = vld [vmem:[#allocation7 + $0x380] sm:$0xff]
    %v205 = vld [vmem:[#allocation7 + $0x388] sm:$0xff]
    %v206 = vld [vmem:[#allocation7 + $0x390] sm:$0xff]
    %v207 = vld [vmem:[#allocation7 + $0x398] sm:$0xff]
    %v208 = vld [vmem:[#allocation7 + $0x3a0] sm:$0xff]
    %v209 = vld [vmem:[#allocation7 + $0x3a8] sm:$0xff]
    %v210 = vld [vmem:[#allocation7 + $0x3b0] sm:$0xff]
    %v211 = vld [vmem:[#allocation7 + $0x3b8] sm:$0xff]
    %v212 = vld [vmem:[#allocation7 + $0x3c0] sm:$0xff]
    %v213 = vld [vmem:[#allocation7 + $0x3c8] sm:$0xff]
    %v214 = vld [vmem:[#allocation7 + $0x3d0] sm:$0xff]
    %v215 = vld [vmem:[#allocation7 + $0x3d8] sm:$0xff]
    %v216 = vld [vmem:[#allocation7 + $0x3e0] sm:$0xff]
    %v217 = vld [vmem:[#allocation7 + $0x3e8] sm:$0xff]
    %v218 = vld [vmem:[#allocation7 + $0x3f0] sm:$0xff]
    %v219 = vld [vmem:[#allocation7 + $0x3f8] sm:$0xff]
    %v220 = vld [vmem:[#allocation2] sm:$0xff]
    %v221 = vld [vmem:[#allocation2 + $0x8] sm:$0xff]
    %v222 = vld [vmem:[#allocation2 + $0x10] sm:$0xff]
    %v223 = vld [vmem:[#allocation2 + $0x18] sm:$0xff]
    %v224 = vld [vmem:[#allocation2 + $0x20] sm:$0xff]
    %v225 = vld [vmem:[#allocation2 + $0x28] sm:$0xff]
    %v226 = vld [vmem:[#allocation2 + $0x30] sm:$0xff]
    %v227 = vld [vmem:[#allocation2 + $0x38] sm:$0xff]
    %v228 = vpack.c.bf16 %v220, %v220
    %v229 = vpack.c.bf16 %v221, %v221
    %v230 = vpack.c.bf16 %v222, %v222
    %v231 = vpack.c.bf16 %v223, %v223
    %v232 = vpack.c.bf16 %v224, %v224
    %v233 = vpack.c.bf16 %v225, %v225
    %v234 = vpack.c.bf16 %v226, %v226
    %v235 = vpack.c.bf16 %v227, %v227
    %v364 = vunpack.c.l.b16 %v92
    %v365 = vunpack.c.h.b16 %v92
    %v366 = vunpack.c.l.b16 %v93
    %v367 = vunpack.c.h.b16 %v93
    %v368 = vunpack.c.l.b16 %v94
    %v369 = vunpack.c.h.b16 %v94
    %v370 = vunpack.c.l.b16 %v95
    %v371 = vunpack.c.h.b16 %v95
    %v372 = vunpack.c.l.b16 %v96
    %v373 = vunpack.c.h.b16 %v96
    %v374 = vunpack.c.l.b16 %v97
    %v375 = vunpack.c.h.b16 %v97
    %v376 = vunpack.c.l.b16 %v98
    %v377 = vunpack.c.h.b16 %v98
    %v378 = vunpack.c.l.b16 %v99
    %v379 = vunpack.c.h.b16 %v99
    %v380 = vunpack.c.l.b16 %v100
    %v381 = vunpack.c.h.b16 %v100
    %v382 = vunpack.c.l.b16 %v101
    %v383 = vunpack.c.h.b16 %v101
    %v384 = vunpack.c.l.b16 %v102
    %v385 = vunpack.c.h.b16 %v102
    %v386 = vunpack.c.l.b16 %v103
    %v387 = vunpack.c.h.b16 %v103
    %v388 = vunpack.c.l.b16 %v104
    %v389 = vunpack.c.h.b16 %v104
    %v390 = vunpack.c.l.b16 %v105
    %v391 = vunpack.c.h.b16 %v105
    %v392 = vunpack.c.l.b16 %v106
    %v393 = vunpack.c.h.b16 %v106
    %v394 = vunpack.c.l.b16 %v107
    %v395 = vunpack.c.h.b16 %v107
    %v396 = vunpack.c.l.b16 %v108
    %v397 = vunpack.c.h.b16 %v108
    %v398 = vunpack.c.l.b16 %v109
    %v399 = vunpack.c.h.b16 %v109
    %v400 = vunpack.c.l.b16 %v110
    %v401 = vunpack.c.h.b16 %v110
    %v402 = vunpack.c.l.b16 %v111
    %v403 = vunpack.c.h.b16 %v111
    %v404 = vunpack.c.l.b16 %v112
    %v405 = vunpack.c.h.b16 %v112
    %v406 = vunpack.c.l.b16 %v113
    %v407 = vunpack.c.h.b16 %v113
    %v408 = vunpack.c.l.b16 %v114
    %v409 = vunpack.c.h.b16 %v114
    %v410 = vunpack.c.l.b16 %v115
    %v411 = vunpack.c.h.b16 %v115
    %v412 = vunpack.c.l.b16 %v116
    %v413 = vunpack.c.h.b16 %v116
    %v414 = vunpack.c.l.b16 %v117
    %v415 = vunpack.c.h.b16 %v117
    %v416 = vunpack.c.l.b16 %v118
    %v417 = vunpack.c.h.b16 %v118
    %v418 = vunpack.c.l.b16 %v119
    %v419 = vunpack.c.h.b16 %v119
    %v420 = vunpack.c.l.b16 %v120
    %v421 = vunpack.c.h.b16 %v120
    %v422 = vunpack.c.l.b16 %v121
    %v423 = vunpack.c.h.b16 %v121
    %v424 = vunpack.c.l.b16 %v122
    %v425 = vunpack.c.h.b16 %v122
    %v426 = vunpack.c.l.b16 %v123
    %v427 = vunpack.c.h.b16 %v123
    %v428 = vunpack.c.l.b16 %v124
    %v429 = vunpack.c.h.b16 %v124
    %v430 = vunpack.c.l.b16 %v125
    %v431 = vunpack.c.h.b16 %v125
    %v432 = vunpack.c.l.b16 %v126
    %v433 = vunpack.c.h.b16 %v126
    %v434 = vunpack.c.l.b16 %v127
    %v435 = vunpack.c.h.b16 %v127
    %v436 = vunpack.c.l.b16 %v128
    %v437 = vunpack.c.h.b16 %v128
    %v438 = vunpack.c.l.b16 %v129
    %v439 = vunpack.c.h.b16 %v129
    %v440 = vunpack.c.l.b16 %v130
    %v441 = vunpack.c.h.b16 %v130
    %v442 = vunpack.c.l.b16 %v131
    %v443 = vunpack.c.h.b16 %v131
    %v444 = vunpack.c.l.b16 %v132
    %v445 = vunpack.c.h.b16 %v132
    %v446 = vunpack.c.l.b16 %v133
    %v447 = vunpack.c.h.b16 %v133
    %v448 = vunpack.c.l.b16 %v134
    %v449 = vunpack.c.h.b16 %v134
    %v450 = vunpack.c.l.b16 %v135
    %v451 = vunpack.c.h.b16 %v135
    %v452 = vunpack.c.l.b16 %v136
    %v453 = vunpack.c.h.b16 %v136
    %v454 = vunpack.c.l.b16 %v137
    %v455 = vunpack.c.h.b16 %v137
    %v456 = vunpack.c.l.b16 %v138
    %v457 = vunpack.c.h.b16 %v138
    %v458 = vunpack.c.l.b16 %v139
    %v459 = vunpack.c.h.b16 %v139
    %v460 = vunpack.c.l.b16 %v140
    %v461 = vunpack.c.h.b16 %v140
    %v462 = vunpack.c.l.b16 %v141
    %v463 = vunpack.c.h.b16 %v141
    %v464 = vunpack.c.l.b16 %v142
    %v465 = vunpack.c.h.b16 %v142
    %v466 = vunpack.c.l.b16 %v143
    %v467 = vunpack.c.h.b16 %v143
    %v468 = vunpack.c.l.b16 %v144
    %v469 = vunpack.c.h.b16 %v144
    %v470 = vunpack.c.l.b16 %v145
    %v471 = vunpack.c.h.b16 %v145
    %v472 = vunpack.c.l.b16 %v146
    %v473 = vunpack.c.h.b16 %v146
    %v474 = vunpack.c.l.b16 %v147
    %v475 = vunpack.c.h.b16 %v147
    %v476 = vunpack.c.l.b16 %v148
    %v477 = vunpack.c.h.b16 %v148
    %v478 = vunpack.c.l.b16 %v149
    %v479 = vunpack.c.h.b16 %v149
    %v480 = vunpack.c.l.b16 %v150
    %v481 = vunpack.c.h.b16 %v150
    %v482 = vunpack.c.l.b16 %v151
    %v483 = vunpack.c.h.b16 %v151
    %v484 = vunpack.c.l.b16 %v152
    %v485 = vunpack.c.h.b16 %v152
    %v486 = vunpack.c.l.b16 %v153
    %v487 = vunpack.c.h.b16 %v153
    %v488 = vunpack.c.l.b16 %v154
    %v489 = vunpack.c.h.b16 %v154
    %v490 = vunpack.c.l.b16 %v155
    %v491 = vunpack.c.h.b16 %v155
    %v492 = vunpack.c.l.b16 %v156
    %v493 = vunpack.c.h.b16 %v156
    %v494 = vunpack.c.l.b16 %v157
    %v495 = vunpack.c.h.b16 %v157
    %v496 = vunpack.c.l.b16 %v158
    %v497 = vunpack.c.h.b16 %v158
    %v498 = vunpack.c.l.b16 %v159
    %v499 = vunpack.c.h.b16 %v159
    %v500 = vunpack.c.l.b16 %v160
    %v501 = vunpack.c.h.b16 %v160
    %v502 = vunpack.c.l.b16 %v161
    %v503 = vunpack.c.h.b16 %v161
    %v504 = vunpack.c.l.b16 %v162
    %v505 = vunpack.c.h.b16 %v162
    %v506 = vunpack.c.l.b16 %v163
    %v507 = vunpack.c.h.b16 %v163
    %v508 = vunpack.c.l.b16 %v164
    %v509 = vunpack.c.h.b16 %v164
    %v510 = vunpack.c.l.b16 %v165
    %v511 = vunpack.c.h.b16 %v165
    %v512 = vunpack.c.l.b16 %v166
    %v513 = vunpack.c.h.b16 %v166
    %v514 = vunpack.c.l.b16 %v167
    %v515 = vunpack.c.h.b16 %v167
    %v516 = vunpack.c.l.b16 %v168
    %v517 = vunpack.c.h.b16 %v168
    %v518 = vunpack.c.l.b16 %v169
    %v519 = vunpack.c.h.b16 %v169
    %v520 = vunpack.c.l.b16 %v170
    %v521 = vunpack.c.h.b16 %v170
    %v522 = vunpack.c.l.b16 %v171
    %v523 = vunpack.c.h.b16 %v171
    %v524 = vunpack.c.l.b16 %v172
    %v525 = vunpack.c.h.b16 %v172
    %v526 = vunpack.c.l.b16 %v173
    %v527 = vunpack.c.h.b16 %v173
    %v528 = vunpack.c.l.b16 %v174
    %v529 = vunpack.c.h.b16 %v174
    %v530 = vunpack.c.l.b16 %v175
    %v531 = vunpack.c.h.b16 %v175
    %v532 = vunpack.c.l.b16 %v176
    %v533 = vunpack.c.h.b16 %v176
    %v534 = vunpack.c.l.b16 %v177
    %v535 = vunpack.c.h.b16 %v177
    %v536 = vunpack.c.l.b16 %v178
    %v537 = vunpack.c.h.b16 %v178
    %v538 = vunpack.c.l.b16 %v179
    %v539 = vunpack.c.h.b16 %v179
    %v540 = vunpack.c.l.b16 %v180
    %v541 = vunpack.c.h.b16 %v180
    %v542 = vunpack.c.l.b16 %v181
    %v543 = vunpack.c.h.b16 %v181
    %v544 = vunpack.c.l.b16 %v182
    %v545 = vunpack.c.h.b16 %v182
    %v546 = vunpack.c.l.b16 %v183
    %v547 = vunpack.c.h.b16 %v183
    %v548 = vunpack.c.l.b16 %v184
    %v549 = vunpack.c.h.b16 %v184
    %v550 = vunpack.c.l.b16 %v185
    %v551 = vunpack.c.h.b16 %v185
    %v552 = vunpack.c.l.b16 %v186
    %v553 = vunpack.c.h.b16 %v186
    %v554 = vunpack.c.l.b16 %v187
    %v555 = vunpack.c.h.b16 %v187
    %v556 = vunpack.c.l.b16 %v188
    %v557 = vunpack.c.h.b16 %v188
    %v558 = vunpack.c.l.b16 %v189
    %v559 = vunpack.c.h.b16 %v189
    %v560 = vunpack.c.l.b16 %v190
    %v561 = vunpack.c.h.b16 %v190
    %v562 = vunpack.c.l.b16 %v191
    %v563 = vunpack.c.h.b16 %v191
    %v564 = vunpack.c.l.b16 %v192
    %v565 = vunpack.c.h.b16 %v192
    %v566 = vunpack.c.l.b16 %v193
    %v567 = vunpack.c.h.b16 %v193
    %v568 = vunpack.c.l.b16 %v194
    %v569 = vunpack.c.h.b16 %v194
    %v570 = vunpack.c.l.b16 %v195
    %v571 = vunpack.c.h.b16 %v195
    %v572 = vunpack.c.l.b16 %v196
    %v573 = vunpack.c.h.b16 %v196
    %v574 = vunpack.c.l.b16 %v197
    %v575 = vunpack.c.h.b16 %v197
    %v576 = vunpack.c.l.b16 %v198
    %v577 = vunpack.c.h.b16 %v198
    %v578 = vunpack.c.l.b16 %v199
    %v579 = vunpack.c.h.b16 %v199
    %v580 = vunpack.c.l.b16 %v200
    %v581 = vunpack.c.h.b16 %v200
    %v582 = vunpack.c.l.b16 %v201
    %v583 = vunpack.c.h.b16 %v201
    %v584 = vunpack.c.l.b16 %v202
    %v585 = vunpack.c.h.b16 %v202
    %v586 = vunpack.c.l.b16 %v203
    %v587 = vunpack.c.h.b16 %v203
    %v588 = vunpack.c.l.b16 %v204
    %v589 = vunpack.c.h.b16 %v204
    %v590 = vunpack.c.l.b16 %v205
    %v591 = vunpack.c.h.b16 %v205
    %v592 = vunpack.c.l.b16 %v206
    %v593 = vunpack.c.h.b16 %v206
    %v594 = vunpack.c.l.b16 %v207
    %v595 = vunpack.c.h.b16 %v207
    %v596 = vunpack.c.l.b16 %v208
    %v597 = vunpack.c.h.b16 %v208
    %v598 = vunpack.c.l.b16 %v209
    %v599 = vunpack.c.h.b16 %v209
    %v600 = vunpack.c.l.b16 %v210
    %v601 = vunpack.c.h.b16 %v210
    %v602 = vunpack.c.l.b16 %v211
    %v603 = vunpack.c.h.b16 %v211
    %v604 = vunpack.c.l.b16 %v212
    %v605 = vunpack.c.h.b16 %v212
    %v606 = vunpack.c.l.b16 %v213
    %v607 = vunpack.c.h.b16 %v213
    %v608 = vunpack.c.l.b16 %v214
    %v609 = vunpack.c.h.b16 %v214
    %v610 = vunpack.c.l.b16 %v215
    %v611 = vunpack.c.h.b16 %v215
    %v612 = vunpack.c.l.b16 %v216
    %v613 = vunpack.c.h.b16 %v216
    %v614 = vunpack.c.l.b16 %v217
    %v615 = vunpack.c.h.b16 %v217
    %v616 = vunpack.c.l.b16 %v218
    %v617 = vunpack.c.h.b16 %v218
    %v618 = vunpack.c.l.b16 %v219
    %v619 = vunpack.c.h.b16 %v219
    %v620 = vpack.c.b16 %v366, %v364
    %v621 = vpack.c.b16 %v367, %v365
    %v622 = vpack.c.b16 %v370, %v368
    %v623 = vpack.c.b16 %v371, %v369
    %v624 = vpack.c.b16 %v374, %v372
    %v625 = vpack.c.b16 %v375, %v373
    %v626 = vpack.c.b16 %v378, %v376
    %v627 = vpack.c.b16 %v379, %v377
    %v628 = vpack.c.b16 %v382, %v380
    %v629 = vpack.c.b16 %v383, %v381
    %v630 = vpack.c.b16 %v386, %v384
    %v631 = vpack.c.b16 %v387, %v385
    %v632 = vpack.c.b16 %v390, %v388
    %v633 = vpack.c.b16 %v391, %v389
    %v634 = vpack.c.b16 %v394, %v392
    %v635 = vpack.c.b16 %v395, %v393
    %v636 = vpack.c.b16 %v398, %v396
    %v637 = vpack.c.b16 %v399, %v397
    %v638 = vpack.c.b16 %v402, %v400
    %v639 = vpack.c.b16 %v403, %v401
    %v640 = vpack.c.b16 %v406, %v404
    %v641 = vpack.c.b16 %v407, %v405
    %v642 = vpack.c.b16 %v410, %v408
    %v643 = vpack.c.b16 %v411, %v409
    %v644 = vpack.c.b16 %v414, %v412
    %v645 = vpack.c.b16 %v415, %v413
    %v646 = vpack.c.b16 %v418, %v416
    %v647 = vpack.c.b16 %v419, %v417
    %v648 = vpack.c.b16 %v422, %v420
    %v649 = vpack.c.b16 %v423, %v421
    %v650 = vpack.c.b16 %v426, %v424
    %v651 = vpack.c.b16 %v427, %v425
    %v652 = vpack.c.b16 %v430, %v428
    %v653 = vpack.c.b16 %v431, %v429
    %v654 = vpack.c.b16 %v434, %v432
    %v655 = vpack.c.b16 %v435, %v433
    %v656 = vpack.c.b16 %v438, %v436
    %v657 = vpack.c.b16 %v439, %v437
    %v658 = vpack.c.b16 %v442, %v440
    %v659 = vpack.c.b16 %v443, %v441
    %v660 = vpack.c.b16 %v446, %v444
    %v661 = vpack.c.b16 %v447, %v445
    %v662 = vpack.c.b16 %v450, %v448
    %v663 = vpack.c.b16 %v451, %v449
    %v664 = vpack.c.b16 %v454, %v452
    %v665 = vpack.c.b16 %v455, %v453
    %v666 = vpack.c.b16 %v458, %v456
    %v667 = vpack.c.b16 %v459, %v457
    %v668 = vpack.c.b16 %v462, %v460
    %v669 = vpack.c.b16 %v463, %v461
    %v670 = vpack.c.b16 %v466, %v464
    %v671 = vpack.c.b16 %v467, %v465
    %v672 = vpack.c.b16 %v470, %v468
    %v673 = vpack.c.b16 %v471, %v469
    %v674 = vpack.c.b16 %v474, %v472
    %v675 = vpack.c.b16 %v475, %v473
    %v676 = vpack.c.b16 %v478, %v476
    %v677 = vpack.c.b16 %v479, %v477
    %v678 = vpack.c.b16 %v482, %v480
    %v679 = vpack.c.b16 %v483, %v481
    %v680 = vpack.c.b16 %v486, %v484
    %v681 = vpack.c.b16 %v487, %v485
    %v682 = vpack.c.b16 %v490, %v488
    %v683 = vpack.c.b16 %v491, %v489
    %v684 = vpack.c.b16 %v494, %v492
    %v685 = vpack.c.b16 %v495, %v493
    %v686 = vpack.c.b16 %v498, %v496
    %v687 = vpack.c.b16 %v499, %v497
    %v688 = vpack.c.b16 %v502, %v500
    %v689 = vpack.c.b16 %v503, %v501
    %v690 = vpack.c.b16 %v506, %v504
    %v691 = vpack.c.b16 %v507, %v505
    %v692 = vpack.c.b16 %v510, %v508
    %v693 = vpack.c.b16 %v511, %v509
    %v694 = vpack.c.b16 %v514, %v512
    %v695 = vpack.c.b16 %v515, %v513
    %v696 = vpack.c.b16 %v518, %v516
    %v697 = vpack.c.b16 %v519, %v517
    %v698 = vpack.c.b16 %v522, %v520
    %v699 = vpack.c.b16 %v523, %v521
    %v700 = vpack.c.b16 %v526, %v524
    %v701 = vpack.c.b16 %v527, %v525
    %v702 = vpack.c.b16 %v530, %v528
    %v703 = vpack.c.b16 %v531, %v529
    %v704 = vpack.c.b16 %v534, %v532
    %v705 = vpack.c.b16 %v535, %v533
    %v706 = vpack.c.b16 %v538, %v536
    %v707 = vpack.c.b16 %v539, %v537
    %v708 = vpack.c.b16 %v542, %v540
    %v709 = vpack.c.b16 %v543, %v541
    %v710 = vpack.c.b16 %v546, %v544
    %v711 = vpack.c.b16 %v547, %v545
    %v712 = vpack.c.b16 %v550, %v548
    %v713 = vpack.c.b16 %v551, %v549
    %v714 = vpack.c.b16 %v554, %v552
    %v715 = vpack.c.b16 %v555, %v553
    %v716 = vpack.c.b16 %v558, %v556
    %v717 = vpack.c.b16 %v559, %v557
    %v718 = vpack.c.b16 %v562, %v560
    %v719 = vpack.c.b16 %v563, %v561
    %v720 = vpack.c.b16 %v566, %v564
    %v721 = vpack.c.b16 %v567, %v565
    %v722 = vpack.c.b16 %v570, %v568
    %v723 = vpack.c.b16 %v571, %v569
    %v724 = vpack.c.b16 %v574, %v572
    %v725 = vpack.c.b16 %v575, %v573
    %v726 = vpack.c.b16 %v578, %v576
    %v727 = vpack.c.b16 %v579, %v577
    %v728 = vpack.c.b16 %v582, %v580
    %v729 = vpack.c.b16 %v583, %v581
    %v730 = vpack.c.b16 %v586, %v584
    %v731 = vpack.c.b16 %v587, %v585
    %v732 = vpack.c.b16 %v590, %v588
    %v733 = vpack.c.b16 %v591, %v589
    %v734 = vpack.c.b16 %v594, %v592
    %v735 = vpack.c.b16 %v595, %v593
    %v736 = vpack.c.b16 %v598, %v596
    %v737 = vpack.c.b16 %v599, %v597
    %v738 = vpack.c.b16 %v602, %v600
    %v739 = vpack.c.b16 %v603, %v601
    %v740 = vpack.c.b16 %v606, %v604
    %v741 = vpack.c.b16 %v607, %v605
    %v742 = vpack.c.b16 %v610, %v608
    %v743 = vpack.c.b16 %v611, %v609
    %v744 = vpack.c.b16 %v614, %v612
    %v745 = vpack.c.b16 %v615, %v613
    %v746 = vpack.c.b16 %v618, %v616
    %v747 = vpack.c.b16 %v619, %v617
    %876 = vmatprep.subr.bf16.mxu0 %v621
    %877 = vmatpush1.bf16.msra.mxu0 %v620
    %878 = vmatprep.subr.bf16.mxu0 %v623
    %879 = vmatpush1.bf16.msra.mxu0 %v622
    %880 = vmatprep.subr.bf16.mxu0 %v625
    %881 = vmatpush1.bf16.msra.mxu0 %v624
    %882 = vmatprep.subr.bf16.mxu0 %v627
    %883 = vmatpush1.bf16.msra.mxu0 %v626
    %884 = vmatprep.subr.bf16.mxu0 %v629
    %885 = vmatpush1.bf16.msra.mxu0 %v628
    %886 = vmatprep.subr.bf16.mxu0 %v631
    %887 = vmatpush1.bf16.msra.mxu0 %v630
    %888 = vmatprep.subr.bf16.mxu0 %v633
    %889 = vmatpush1.bf16.msra.mxu0 %v632
    %890 = vmatprep.subr.bf16.mxu0 %v635
    %891 = vmatpush1.bf16.msra.mxu0 %v634
    %892 = vmatprep.subr.bf16.mxu0 %v637
    %893 = vmatpush1.bf16.msra.mxu0 %v636
    %894 = vmatprep.subr.bf16.mxu0 %v639
    %895 = vmatpush1.bf16.msra.mxu0 %v638
    %896 = vmatprep.subr.bf16.mxu0 %v641
    %897 = vmatpush1.bf16.msra.mxu0 %v640
    %898 = vmatprep.subr.bf16.mxu0 %v643
    %899 = vmatpush1.bf16.msra.mxu0 %v642
    %900 = vmatprep.subr.bf16.mxu0 %v645
    %901 = vmatpush1.bf16.msra.mxu0 %v644
    %902 = vmatprep.subr.bf16.mxu0 %v647
    %903 = vmatpush1.bf16.msra.mxu0 %v646
    %904 = vmatprep.subr.bf16.mxu0 %v649
    %905 = vmatpush1.bf16.msra.mxu0 %v648
    %906 = vmatprep.subr.bf16.mxu0 %v651
    %907 = vmatpush1.bf16.msra.mxu0 %v650
    %908 = vmatprep.mubr.bf16.mxu0 %v229
    %909 = vmatmul.mubr.bf16.gmra.mrb[0].mxu0 %v228
    %v910 = vpop.f32.mrb[0].mxu0
    %v911 = vadd.f32 0.0, %v910
    %v912 = vpop.f32.mrb[0].mxu0
    %v913 = vadd.f32 0.0, %v912
    %v914 = vpop.f32.mrb[0].mxu0
    %v915 = vpop.f32.mrb[0].mxu0
    %916 = vdwg.mxu0
    %917 = vmatprep.subr.bf16.mxu0 %v653
    %918 = vmatpush1.bf16.msra.mxu0 %v652
    %919 = vmatprep.subr.bf16.mxu0 %v655
    %920 = vmatpush1.bf16.msra.mxu0 %v654
    %921 = vmatprep.subr.bf16.mxu0 %v657
    %922 = vmatpush1.bf16.msra.mxu0 %v656
    %923 = vmatprep.subr.bf16.mxu0 %v659
    %924 = vmatpush1.bf16.msra.mxu0 %v658
    %925 = vmatprep.subr.bf16.mxu0 %v661
    %926 = vmatpush1.bf16.msra.mxu0 %v660
    %927 = vmatprep.subr.bf16.mxu0 %v663
    %928 = vmatpush1.bf16.msra.mxu0 %v662
    %929 = vmatprep.subr.bf16.mxu0 %v665
    %930 = vmatpush1.bf16.msra.mxu0 %v664
    %931 = vmatprep.subr.bf16.mxu0 %v667
    %932 = vmatpush1.bf16.msra.mxu0 %v666
    %933 = vmatprep.subr.bf16.mxu0 %v669
    %934 = vmatpush1.bf16.msra.mxu0 %v668
    %935 = vmatprep.subr.bf16.mxu0 %v671
    %936 = vmatpush1.bf16.msra.mxu0 %v670
    %937 = vmatprep.subr.bf16.mxu0 %v673
    %938 = vmatpush1.bf16.msra.mxu0 %v672
    %939 = vmatprep.subr.bf16.mxu0 %v675
    %940 = vmatpush1.bf16.msra.mxu0 %v674
    %941 = vmatprep.subr.bf16.mxu0 %v677
    %942 = vmatpush1.bf16.msra.mxu0 %v676
    %943 = vmatprep.subr.bf16.mxu0 %v679
    %944 = vmatpush1.bf16.msra.mxu0 %v678
    %945 = vmatprep.subr.bf16.mxu0 %v681
    %946 = vmatpush1.bf16.msra.mxu0 %v680
    %947 = vmatprep.subr.bf16.mxu0 %v683
    %948 = vmatpush1.bf16.msra.mxu0 %v682
    %949 = vmatprep.mubr.bf16.mxu0 %v231
    %950 = vmatmul.mubr.bf16.gmra.mrb[0].mxu0 %v230
    %v951 = vpop.f32.mrb[0].mxu0
    %v952 = vadd.f32 %v911, %v951
    %v953 = vpop.f32.mrb[0].mxu0
    %v954 = vadd.f32 %v913, %v953
    %v955 = vpop.f32.mrb[0].mxu0
    %v956 = vpop.f32.mrb[0].mxu0
    %957 = vdwg.mxu0
    %958 = vmatprep.subr.bf16.mxu0 %v685
    %959 = vmatpush1.bf16.msra.mxu0 %v684
    %960 = vmatprep.subr.bf16.mxu0 %v687
    %961 = vmatpush1.bf16.msra.mxu0 %v686
    %962 = vmatprep.subr.bf16.mxu0 %v689
    %963 = vmatpush1.bf16.msra.mxu0 %v688
    %964 = vmatprep.subr.bf16.mxu0 %v691
    %965 = vmatpush1.bf16.msra.mxu0 %v690
    %966 = vmatprep.subr.bf16.mxu0 %v693
    %967 = vmatpush1.bf16.msra.mxu0 %v692
    %968 = vmatprep.subr.bf16.mxu0 %v695
    %969 = vmatpush1.bf16.msra.mxu0 %v694
    %970 = vmatprep.subr.bf16.mxu0 %v697
    %971 = vmatpush1.bf16.msra.mxu0 %v696
    %972 = vmatprep.subr.bf16.mxu0 %v699
    %973 = vmatpush1.bf16.msra.mxu0 %v698
    %974 = vmatprep.subr.bf16.mxu0 %v701
    %975 = vmatpush1.bf16.msra.mxu0 %v700
    %976 = vmatprep.subr.bf16.mxu0 %v703
    %977 = vmatpush1.bf16.msra.mxu0 %v702
    %978 = vmatprep.subr.bf16.mxu0 %v705
    %979 = vmatpush1.bf16.msra.mxu0 %v704
    %980 = vmatprep.subr.bf16.mxu0 %v707
    %981 = vmatpush1.bf16.msra.mxu0 %v706
    %982 = vmatprep.subr.bf16.mxu0 %v709
    %983 = vmatpush1.bf16.msra.mxu0 %v708
    %984 = vmatprep.subr.bf16.mxu0 %v711
    %985 = vmatpush1.bf16.msra.mxu0 %v710
    %986 = vmatprep.subr.bf16.mxu0 %v713
    %987 = vmatpush1.bf16.msra.mxu0 %v712
    %988 = vmatprep.subr.bf16.mxu0 %v715
    %989 = vmatpush1.bf16.msra.mxu0 %v714
    %990 = vmatprep.mubr.bf16.mxu0 %v233
    %991 = vmatmul.mubr.bf16.gmra.mrb[0].mxu0 %v232
    %v992 = vpop.f32.mrb[0].mxu0
    %v993 = vadd.f32 %v952, %v992
    %v994 = vpop.f32.mrb[0].mxu0
    %v995 = vadd.f32 %v954, %v994
    %v996 = vpop.f32.mrb[0].mxu0
    %v997 = vpop.f32.mrb[0].mxu0
    %998 = vdwg.mxu0
    %999 = vmatprep.subr.bf16.mxu0 %v717
    %1000 = vmatpush1.bf16.msra.mxu0 %v716
    %1001 = vmatprep.subr.bf16.mxu0 %v719
    %1002 = vmatpush1.bf16.msra.mxu0 %v718
    %1003 = vmatprep.subr.bf16.mxu0 %v721
    %1004 = vmatpush1.bf16.msra.mxu0 %v720
    %1005 = vmatprep.subr.bf16.mxu0 %v723
    %1006 = vmatpush1.bf16.msra.mxu0 %v722
    %1007 = vmatprep.subr.bf16.mxu0 %v725
    %1008 = vmatpush1.bf16.msra.mxu0 %v724
    %1009 = vmatprep.subr.bf16.mxu0 %v727
    %1010 = vmatpush1.bf16.msra.mxu0 %v726
    %1011 = vmatprep.subr.bf16.mxu0 %v729
    %1012 = vmatpush1.bf16.msra.mxu0 %v728
    %1013 = vmatprep.subr.bf16.mxu0 %v731
    %1014 = vmatpush1.bf16.msra.mxu0 %v730
    %1015 = vmatprep.subr.bf16.mxu0 %v733
    %1016 = vmatpush1.bf16.msra.mxu0 %v732
    %1017 = vmatprep.subr.bf16.mxu0 %v735
    %1018 = vmatpush1.bf16.msra.mxu0 %v734
    %1019 = vmatprep.subr.bf16.mxu0 %v737
    %1020 = vmatpush1.bf16.msra.mxu0 %v736
    %1021 = vmatprep.subr.bf16.mxu0 %v739
    %1022 = vmatpush1.bf16.msra.mxu0 %v738
    %1023 = vmatprep.subr.bf16.mxu0 %v741
    %1024 = vmatpush1.bf16.msra.mxu0 %v740
    %1025 = vmatprep.subr.bf16.mxu0 %v743
    %1026 = vmatpush1.bf16.msra.mxu0 %v742
    %1027 = vmatprep.subr.bf16.mxu0 %v745
    %1028 = vmatpush1.bf16.msra.mxu0 %v744
    %1029 = vmatprep.subr.bf16.mxu0 %v747
    %1030 = vmatpush1.bf16.msra.mxu0 %v746
    %1031 = vmatprep.mubr.bf16.mxu0 %v235
    %1032 = vmatmul.mubr.bf16.gmra.mrb[0].mxu0 %v234
    %v1033 = vpop.f32.mrb[0].mxu0
    %v1034 = vadd.f32 %v993, %v1033
    %v1035 = vpop.f32.mrb[0].mxu0
    %v1036 = vadd.f32 %v995, %v1035
    %v1037 = vpop.f32.mrb[0].mxu0
    %v1038 = vpop.f32.mrb[0].mxu0
    %1039 = vdwg.mxu0
    %v1040 = vld [vmem:[#allocation5] sm:$0xff]
    %v1041 = vld [vmem:[#allocation5 + $0x8] sm:$0xff]
    %v1042 = vld [vmem:[#allocation5 + $0x10] sm:$0xff]
    %v1043 = vld [vmem:[#allocation5 + $0x18] sm:$0xff]
    %v1044 = vld [vmem:[#allocation5 + $0x20] sm:$0xff]
    %v1045 = vld [vmem:[#allocation5 + $0x28] sm:$0xff]
    %v1046 = vld [vmem:[#allocation5 + $0x30] sm:$0xff]
    %v1047 = vld [vmem:[#allocation5 + $0x38] sm:$0xff]
    %v1048 = vpack.c.bf16 %v1040, %v1040
    %v1049 = vpack.c.bf16 %v1041, %v1041
    %v1050 = vpack.c.bf16 %v1042, %v1042
    %v1051 = vpack.c.bf16 %v1043, %v1043
    %v1052 = vpack.c.bf16 %v1044, %v1044
    %v1053 = vpack.c.bf16 %v1045, %v1045
    %v1054 = vpack.c.bf16 %v1046, %v1046
    %v1055 = vpack.c.bf16 %v1047, %v1047
    %1056 = vmatprep.subr.bf16.mxu0 %v621
    %1057 = vmatpush1.bf16.msra.mxu0 %v620
    %1058 = vmatprep.subr.bf16.mxu0 %v623
    %1059 = vmatpush1.bf16.msra.mxu0 %v622
    %1060 = vmatprep.subr.bf16.mxu0 %v625
    %1061 = vmatpush1.bf16.msra.mxu0 %v624
    %1062 = vmatprep.subr.bf16.mxu0 %v627
    %1063 = vmatpush1.bf16.msra.mxu0 %v626
    %1064 = vmatprep.subr.bf16.mxu0 %v629
    %1065 = vmatpush1.bf16.msra.mxu0 %v628
    %1066 = vmatprep.subr.bf16.mxu0 %v631
    %1067 = vmatpush1.bf16.msra.mxu0 %v630
    %1068 = vmatprep.subr.bf16.mxu0 %v633
    %1069 = vmatpush1.bf16.msra.mxu0 %v632
    %1070 = vmatprep.subr.bf16.mxu0 %v635
    %1071 = vmatpush1.bf16.msra.mxu0 %v634
    %1072 = vmatprep.subr.bf16.mxu0 %v637
    %1073 = vmatpush1.bf16.msra.mxu0 %v636
    %1074 = vmatprep.subr.bf16.mxu0 %v639
    %1075 = vmatpush1.bf16.msra.mxu0 %v638
    %1076 = vmatprep.subr.bf16.mxu0 %v641
    %1077 = vmatpush1.bf16.msra.mxu0 %v640
    %1078 = vmatprep.subr.bf16.mxu0 %v643
    %1079 = vmatpush1.bf16.msra.mxu0 %v642
    %1080 = vmatprep.subr.bf16.mxu0 %v645
    %1081 = vmatpush1.bf16.msra.mxu0 %v644
    %1082 = vmatprep.subr.bf16.mxu0 %v647
    %1083 = vmatpush1.bf16.msra.mxu0 %v646
    %1084 = vmatprep.subr.bf16.mxu0 %v649
    %1085 = vmatpush1.bf16.msra.mxu0 %v648
    %1086 = vmatprep.subr.bf16.mxu0 %v651
    %1087 = vmatpush1.bf16.msra.mxu0 %v650
    %1088 = vmatprep.mubr.bf16.mxu0 %v1049
    %1089 = vmatmul.mubr.bf16.gmra.mrb[0].mxu0 %v1048
    %v1090 = vpop.f32.mrb[0].mxu0
    %v1091 = vadd.f32 0.0, %v1090
    %v1092 = vpop.f32.mrb[0].mxu0
    %v1093 = vadd.f32 0.0, %v1092
    %v1094 = vpop.f32.mrb[0].mxu0
    %v1095 = vpop.f32.mrb[0].mxu0
    %1096 = vdwg.mxu0
    %1097 = vmatprep.subr.bf16.mxu0 %v653
    %1098 = vmatpush1.bf16.msra.mxu0 %v652
    %1099 = vmatprep.subr.bf16.mxu0 %v655
    %1100 = vmatpush1.bf16.msra.mxu0 %v654
    %1101 = vmatprep.subr.bf16.mxu0 %v657
    %1102 = vmatpush1.bf16.msra.mxu0 %v656
    %1103 = vmatprep.subr.bf16.mxu0 %v659
    %1104 = vmatpush1.bf16.msra.mxu0 %v658
    %1105 = vmatprep.subr.bf16.mxu0 %v661
    %1106 = vmatpush1.bf16.msra.mxu0 %v660
    %1107 = vmatprep.subr.bf16.mxu0 %v663
    %1108 = vmatpush1.bf16.msra.mxu0 %v662
    %1109 = vmatprep.subr.bf16.mxu0 %v665
    %1110 = vmatpush1.bf16.msra.mxu0 %v664
    %1111 = vmatprep.subr.bf16.mxu0 %v667
    %1112 = vmatpush1.bf16.msra.mxu0 %v666
    %1113 = vmatprep.subr.bf16.mxu0 %v669
    %1114 = vmatpush1.bf16.msra.mxu0 %v668
    %1115 = vmatprep.subr.bf16.mxu0 %v671
    %1116 = vmatpush1.bf16.msra.mxu0 %v670
    %1117 = vmatprep.subr.bf16.mxu0 %v673
    %1118 = vmatpush1.bf16.msra.mxu0 %v672
    %1119 = vmatprep.subr.bf16.mxu0 %v675
    %1120 = vmatpush1.bf16.msra.mxu0 %v674
    %1121 = vmatprep.subr.bf16.mxu0 %v677
    %1122 = vmatpush1.bf16.msra.mxu0 %v676
    %1123 = vmatprep.subr.bf16.mxu0 %v679
    %1124 = vmatpush1.bf16.msra.mxu0 %v678
    %1125 = vmatprep.subr.bf16.mxu0 %v681
    %1126 = vmatpush1.bf16.msra.mxu0 %v680
    %1127 = vmatprep.subr.bf16.mxu0 %v683
    %1128 = vmatpush1.bf16.msra.mxu0 %v682
    %1129 = vmatprep.mubr.bf16.mxu0 %v1051
    %1130 = vmatmul.mubr.bf16.gmra.mrb[0].mxu0 %v1050
    %v1131 = vpop.f32.mrb[0].mxu0
    %v1132 = vadd.f32 %v1091, %v1131
    %v1133 = vpop.f32.mrb[0].mxu0
    %v1134 = vadd.f32 %v1093, %v1133
    %v1135 = vpop.f32.mrb[0].mxu0
    %v1136 = vpop.f32.mrb[0].mxu0
    %1137 = vdwg.mxu0
    %1138 = vmatprep.subr.bf16.mxu0 %v685
    %1139 = vmatpush1.bf16.msra.mxu0 %v684
    %1140 = vmatprep.subr.bf16.mxu0 %v687
    %1141 = vmatpush1.bf16.msra.mxu0 %v686
    %1142 = vmatprep.subr.bf16.mxu0 %v689
    %1143 = vmatpush1.bf16.msra.mxu0 %v688
    %1144 = vmatprep.subr.bf16.mxu0 %v691
    %1145 = vmatpush1.bf16.msra.mxu0 %v690
    %1146 = vmatprep.subr.bf16.mxu0 %v693
    %1147 = vmatpush1.bf16.msra.mxu0 %v692
    %1148 = vmatprep.subr.bf16.mxu0 %v695
    %1149 = vmatpush1.bf16.msra.mxu0 %v694
    %1150 = vmatprep.subr.bf16.mxu0 %v697
    %1151 = vmatpush1.bf16.msra.mxu0 %v696
    %1152 = vmatprep.subr.bf16.mxu0 %v699
    %1153 = vmatpush1.bf16.msra.mxu0 %v698
    %1154 = vmatprep.subr.bf16.mxu0 %v701
    %1155 = vmatpush1.bf16.msra.mxu0 %v700
    %1156 = vmatprep.subr.bf16.mxu0 %v703
    %1157 = vmatpush1.bf16.msra.mxu0 %v702
    %1158 = vmatprep.subr.bf16.mxu0 %v705
    %1159 = vmatpush1.bf16.msra.mxu0 %v704
    %1160 = vmatprep.subr.bf16.mxu0 %v707
    %1161 = vmatpush1.bf16.msra.mxu0 %v706
    %1162 = vmatprep.subr.bf16.mxu0 %v709
    %1163 = vmatpush1.bf16.msra.mxu0 %v708
    %1164 = vmatprep.subr.bf16.mxu0 %v711
    %1165 = vmatpush1.bf16.msra.mxu0 %v710
    %1166 = vmatprep.subr.bf16.mxu0 %v713
    %1167 = vmatpush1.bf16.msra.mxu0 %v712
    %1168 = vmatprep.subr.bf16.mxu0 %v715
    %1169 = vmatpush1.bf16.msra.mxu0 %v714
    %1170 = vmatprep.mubr.bf16.mxu0 %v1053
    %1171 = vmatmul.mubr.bf16.gmra.mrb[0].mxu0 %v1052
    %v1172 = vpop.f32.mrb[0].mxu0
    %v1173 = vadd.f32 %v1132, %v1172
    %v1174 = vpop.f32.mrb[0].mxu0
    %v1175 = vadd.f32 %v1134, %v1174
    %v1176 = vpop.f32.mrb[0].mxu0
    %v1177 = vpop.f32.mrb[0].mxu0
    %1178 = vdwg.mxu0
    %1179 = vmatprep.subr.bf16.mxu0 %v717
    %1180 = vmatpush1.bf16.msra.mxu0 %v716
    %1181 = vmatprep.subr.bf16.mxu0 %v719
    %1182 = vmatpush1.bf16.msra.mxu0 %v718
    %1183 = vmatprep.subr.bf16.mxu0 %v721
    %1184 = vmatpush1.bf16.msra.mxu0 %v720
    %1185 = vmatprep.subr.bf16.mxu0 %v723
    %1186 = vmatpush1.bf16.msra.mxu0 %v722
    %1187 = vmatprep.subr.bf16.mxu0 %v725
    %1188 = vmatpush1.bf16.msra.mxu0 %v724
    %1189 = vmatprep.subr.bf16.mxu0 %v727
    %1190 = vmatpush1.bf16.msra.mxu0 %v726
    %1191 = vmatprep.subr.bf16.mxu0 %v729
    %1192 = vmatpush1.bf16.msra.mxu0 %v728
    %1193 = vmatprep.subr.bf16.mxu0 %v731
    %1194 = vmatpush1.bf16.msra.mxu0 %v730
    %1195 = vmatprep.subr.bf16.mxu0 %v733
    %1196 = vmatpush1.bf16.msra.mxu0 %v732
    %1197 = vmatprep.subr.bf16.mxu0 %v735
    %1198 = vmatpush1.bf16.msra.mxu0 %v734
    %1199 = vmatprep.subr.bf16.mxu0 %v737
    %1200 = vmatpush1.bf16.msra.mxu0 %v736
    %1201 = vmatprep.subr.bf16.mxu0 %v739
    %1202 = vmatpush1.bf16.msra.mxu0 %v738
    %1203 = vmatprep.subr.bf16.mxu0 %v741
    %1204 = vmatpush1.bf16.msra.mxu0 %v740
    %1205 = vmatprep.subr.bf16.mxu0 %v743
    %1206 = vmatpush1.bf16.msra.mxu0 %v742
    %1207 = vmatprep.subr.bf16.mxu0 %v745
    %1208 = vmatpush1.bf16.msra.mxu0 %v744
    %1209 = vmatprep.subr.bf16.mxu0 %v747
    %1210 = vmatpush1.bf16.msra.mxu0 %v746
    %1211 = vmatprep.mubr.bf16.mxu0 %v1055
    %1212 = vmatmul.mubr.bf16.gmra.mrb[0].mxu0 %v1054
    %v1213 = vpop.f32.mrb[0].mxu0
    %v1214 = vadd.f32 %v1173, %v1213
    %v1215 = vpop.f32.mrb[0].mxu0
    %v1216 = vadd.f32 %v1175, %v1215
    %v1217 = vpop.f32.mrb[0].mxu0
    %v1218 = vpop.f32.mrb[0].mxu0
    %1219 = vdwg.mxu0
    %p1220 = scmp.eq.s32.totalorder 0, 0
    // Predicated region
    $region42: #{tpu_custom_call.1} parent=1 // pred_check
      %p1221 = pneg %p1220
    $region43: #{tpu_custom_call.1} parent=1 // pred_check_branch
      %1223 = sbr.rel (%p1221) target = $region45
    $region44: #{tpu_custom_call.1} parent=1 // pred_region
      %1224 = vst [vmem:[#allocation11] sm:$0xff] %v1034
      %1225 = vst [vmem:[#allocation11 + $0x8] sm:$0xff] %v1036
      %1226 = vst [vmem:[#allocation12] sm:$0xff] %v1214
      %1227 = vst [vmem:[#allocation12 + $0x8] sm:$0xff] %v1216
    $region45: #{tpu_custom_call.1} parent=1 // pred_fallthru
      _
    %p1228 = scmp.gt.s32.totalorder 0, 0
    // Predicated region
    $region46: #{tpu_custom_call.1} parent=1 // pred_check
      %p1229 = pneg %p1228
    $region47: #{tpu_custom_call.1} parent=1 // pred_check_branch
      %1231 = sbr.rel (%p1229) target = $region49
    $region48: #{tpu_custom_call.1} parent=1 // pred_region
      %v1232 = vld [vmem:[#allocation11] sm:$0xff]
      %v1233 = vld [vmem:[#allocation11 + $0x8] sm:$0xff]
      %v1234 = vadd.f32 %v1232, %v1034
      %v1235 = vadd.f32 %v1233, %v1036
      %1236 = vst [vmem:[#allocation11] sm:$0xff] %v1234
      %1237 = vst [vmem:[#allocation11 + $0x8] sm:$0xff] %v1235
      %v1238 = vld [vmem:[#allocation12] sm:$0xff]
      %v1239 = vld [vmem:[#allocation12 + $0x8] sm:$0xff]
      %v1240 = vadd.f32 %v1238, %v1214
      %v1241 = vadd.f32 %v1239, %v1216
      %1242 = vst [vmem:[#allocation12] sm:$0xff] %v1240
      %1243 = vst [vmem:[#allocation12 + $0x8] sm:$0xff] %v1241
    $region49: #{tpu_custom_call.1} parent=1 // pred_fallthru
      _
    // Predicated region
    $region50: #{tpu_custom_call.1} parent=1 // pred_check
      %p1244 = pneg %p1220
    $region51: #{tpu_custom_call.1} parent=1 // pred_check_branch
      %1246 = sbr.rel (%p1244) target = $region53
    $region52: #{tpu_custom_call.1} parent=1 // pred_region
      %v1247 = vld [vmem:[#allocation8] sm:$0xff]
      %v1248 = vld [vmem:[#allocation8 + $0x8] sm:$0xff]
      %v1249 = vld [vmem:[#allocation8 + $0x10] sm:$0xff]
      %v1250 = vld [vmem:[#allocation8 + $0x18] sm:$0xff]
      %v1251 = vld [vmem:[#allocation8 + $0x20] sm:$0xff]
      %v1252 = vld [vmem:[#allocation8 + $0x28] sm:$0xff]
      %v1253 = vld [vmem:[#allocation8 + $0x30] sm:$0xff]
      %v1254 = vld [vmem:[#allocation8 + $0x38] sm:$0xff]
      %v1255 = vld [vmem:[#allocation8 + $0x40] sm:$0xff]
      %v1256 = vld [vmem:[#allocation8 + $0x48] sm:$0xff]
      %v1257 = vld [vmem:[#allocation8 + $0x50] sm:$0xff]
      %v1258 = vld [vmem:[#allocation8 + $0x58] sm:$0xff]
      %v1259 = vld [vmem:[#allocation8 + $0x60] sm:$0xff]
      %v1260 = vld [vmem:[#allocation8 + $0x68] sm:$0xff]
      %v1261 = vld [vmem:[#allocation8 + $0x70] sm:$0xff]
      %v1262 = vld [vmem:[#allocation8 + $0x78] sm:$0xff]
      %v1263 = vld [vmem:[#allocation8 + $0x80] sm:$0xff]
      %v1264 = vld [vmem:[#allocation8 + $0x88] sm:$0xff]
      %v1265 = vld [vmem:[#allocation8 + $0x90] sm:$0xff]
      %v1266 = vld [vmem:[#allocation8 + $0x98] sm:$0xff]
      %v1267 = vld [vmem:[#allocation8 + $0xa0] sm:$0xff]
      %v1268 = vld [vmem:[#allocation8 + $0xa8] sm:$0xff]
      %v1269 = vld [vmem:[#allocation8 + $0xb0] sm:$0xff]
      %v1270 = vld [vmem:[#allocation8 + $0xb8] sm:$0xff]
      %v1271 = vld [vmem:[#allocation8 + $0xc0] sm:$0xff]
      %v1272 = vld [vmem:[#allocation8 + $0xc8] sm:$0xff]
      %v1273 = vld [vmem:[#allocation8 + $0xd0] sm:$0xff]
      %v1274 = vld [vmem:[#allocation8 + $0xd8] sm:$0xff]
      %v1275 = vld [vmem:[#allocation8 + $0xe0] sm:$0xff]
      %v1276 = vld [vmem:[#allocation8 + $0xe8] sm:$0xff]
      %v1277 = vld [vmem:[#allocation8 + $0xf0] sm:$0xff]
      %v1278 = vld [vmem:[#allocation8 + $0xf8] sm:$0xff]
      %v1279 = vld [vmem:[#allocation10] sm:$0xf]
      %v1280 = vld [vmem:[#allocation10 + $0x4] sm:$0xf]
      %v1281 = vld [vmem:[#allocation10 + $0x8] sm:$0xf]
      %v1282 = vld [vmem:[#allocation10 + $0xc] sm:$0xf]
      %v1283 = vld [vmem:[#allocation10 + $0x10] sm:$0xf]
      %v1284 = vld [vmem:[#allocation10 + $0x14] sm:$0xf]
      %v1285 = vld [vmem:[#allocation10 + $0x18] sm:$0xf]
      %v1286 = vld [vmem:[#allocation10 + $0x1c] sm:$0xf]
      %v1287 = vld [vmem:[#allocation10 + $0x20] sm:$0xf]
      %v1288 = vld [vmem:[#allocation10 + $0x24] sm:$0xf]
      %v1289 = vld [vmem:[#allocation10 + $0x28] sm:$0xf]
      %v1290 = vld [vmem:[#allocation10 + $0x2c] sm:$0xf]
      %v1291 = vld [vmem:[#allocation10 + $0x30] sm:$0xf]
      %v1292 = vld [vmem:[#allocation10 + $0x34] sm:$0xf]
      %v1293 = vld [vmem:[#allocation10 + $0x38] sm:$0xf]
      %v1294 = vld [vmem:[#allocation10 + $0x3c] sm:$0xf]
      %v1295 = vld [vmem:[#allocation10 + $0x40] sm:$0xf]
      %v1296 = vld [vmem:[#allocation10 + $0x44] sm:$0xf]
      %v1297 = vld [vmem:[#allocation10 + $0x48] sm:$0xf]
      %v1298 = vld [vmem:[#allocation10 + $0x4c] sm:$0xf]
      %v1299 = vld [vmem:[#allocation10 + $0x50] sm:$0xf]
      %v1300 = vld [vmem:[#allocation10 + $0x54] sm:$0xf]
      %v1301 = vld [vmem:[#allocation10 + $0x58] sm:$0xf]
      %v1302 = vld [vmem:[#allocation10 + $0x5c] sm:$0xf]
      %v1303 = vld [vmem:[#allocation10 + $0x60] sm:$0xf]
      %v1304 = vld [vmem:[#allocation10 + $0x64] sm:$0xf]
      %v1305 = vld [vmem:[#allocation10 + $0x68] sm:$0xf]
      %v1306 = vld [vmem:[#allocation10 + $0x6c] sm:$0xf]
      %v1307 = vld [vmem:[#allocation10 + $0x70] sm:$0xf]
      %v1308 = vld [vmem:[#allocation10 + $0x74] sm:$0xf]
      %v1309 = vld [vmem:[#allocation10 + $0x78] sm:$0xf]
      %v1310 = vld [vmem:[#allocation10 + $0x7c] sm:$0xf]
      %v1311 = vld [vmem:[#allocation11] sm:$0xff]
      %v1312 = vld [vmem:[#allocation11 + $0x8] sm:$0xff]
      %v1313 = vpack.c.bf16 %v1311, %v1311
      %v1314 = vpack.c.bf16 %v1312, %v1312
      %v1347 = vunpack.c.l.b16 %v1247
      %v1348 = vunpack.c.h.b16 %v1247
      %v1349 = vunpack.c.l.b16 %v1248
      %v1350 = vunpack.c.h.b16 %v1248
      %v1351 = vunpack.c.l.b16 %v1249
      %v1352 = vunpack.c.h.b16 %v1249
      %v1353 = vunpack.c.l.b16 %v1250
      %v1354 = vunpack.c.h.b16 %v1250
      %v1355 = vunpack.c.l.b16 %v1251
      %v1356 = vunpack.c.h.b16 %v1251
      %v1357 = vunpack.c.l.b16 %v1252
      %v1358 = vunpack.c.h.b16 %v1252
      %v1359 = vunpack.c.l.b16 %v1253
      %v1360 = vunpack.c.h.b16 %v1253
      %v1361 = vunpack.c.l.b16 %v1254
      %v1362 = vunpack.c.h.b16 %v1254
      %v1363 = vunpack.c.l.b16 %v1255
      %v1364 = vunpack.c.h.b16 %v1255
      %v1365 = vunpack.c.l.b16 %v1256
      %v1366 = vunpack.c.h.b16 %v1256
      %v1367 = vunpack.c.l.b16 %v1257
      %v1368 = vunpack.c.h.b16 %v1257
      %v1369 = vunpack.c.l.b16 %v1258
      %v1370 = vunpack.c.h.b16 %v1258
      %v1371 = vunpack.c.l.b16 %v1259
      %v1372 = vunpack.c.h.b16 %v1259
      %v1373 = vunpack.c.l.b16 %v1260
      %v1374 = vunpack.c.h.b16 %v1260
      %v1375 = vunpack.c.l.b16 %v1261
      %v1376 = vunpack.c.h.b16 %v1261
      %v1377 = vunpack.c.l.b16 %v1262
      %v1378 = vunpack.c.h.b16 %v1262
      %v1379 = vunpack.c.l.b16 %v1263
      %v1380 = vunpack.c.h.b16 %v1263
      %v1381 = vunpack.c.l.b16 %v1264
      %v1382 = vunpack.c.h.b16 %v1264
      %v1383 = vunpack.c.l.b16 %v1265
      %v1384 = vunpack.c.h.b16 %v1265
      %v1385 = vunpack.c.l.b16 %v1266
      %v1386 = vunpack.c.h.b16 %v1266
      %v1387 = vunpack.c.l.b16 %v1267
      %v1388 = vunpack.c.h.b16 %v1267
      %v1389 = vunpack.c.l.b16 %v1268
      %v1390 = vunpack.c.h.b16 %v1268
      %v1391 = vunpack.c.l.b16 %v1269
      %v1392 = vunpack.c.h.b16 %v1269
      %v1393 = vunpack.c.l.b16 %v1270
      %v1394 = vunpack.c.h.b16 %v1270
      %v1395 = vunpack.c.l.b16 %v1271
      %v1396 = vunpack.c.h.b16 %v1271
      %v1397 = vunpack.c.l.b16 %v1272
      %v1398 = vunpack.c.h.b16 %v1272
      %v1399 = vunpack.c.l.b16 %v1273
      %v1400 = vunpack.c.h.b16 %v1273
      %v1401 = vunpack.c.l.b16 %v1274
      %v1402 = vunpack.c.h.b16 %v1274
      %v1403 = vunpack.c.l.b16 %v1275
      %v1404 = vunpack.c.h.b16 %v1275
      %v1405 = vunpack.c.l.b16 %v1276
      %v1406 = vunpack.c.h.b16 %v1276
      %v1407 = vunpack.c.l.b16 %v1277
      %v1408 = vunpack.c.h.b16 %v1277
      %v1409 = vunpack.c.l.b16 %v1278
      %v1410 = vunpack.c.h.b16 %v1278
      %v1411 = vpack.c.b16 %v1349, %v1347
      %v1412 = vpack.c.b16 %v1350, %v1348
      %v1413 = vpack.c.b16 %v1353, %v1351
      %v1414 = vpack.c.b16 %v1354, %v1352
      %v1415 = vpack.c.b16 %v1357, %v1355
      %v1416 = vpack.c.b16 %v1358, %v1356
      %v1417 = vpack.c.b16 %v1361, %v1359
      %v1418 = vpack.c.b16 %v1362, %v1360
      %v1419 = vpack.c.b16 %v1365, %v1363
      %v1420 = vpack.c.b16 %v1366, %v1364
      %v1421 = vpack.c.b16 %v1369, %v1367
      %v1422 = vpack.c.b16 %v1370, %v1368
      %v1423 = vpack.c.b16 %v1373, %v1371
      %v1424 = vpack.c.b16 %v1374, %v1372
      %v1425 = vpack.c.b16 %v1377, %v1375
      %v1426 = vpack.c.b16 %v1378, %v1376
      %v1427 = vpack.c.b16 %v1381, %v1379
      %v1428 = vpack.c.b16 %v1382, %v1380
      %v1429 = vpack.c.b16 %v1385, %v1383
      %v1430 = vpack.c.b16 %v1386, %v1384
      %v1431 = vpack.c.b16 %v1389, %v1387
      %v1432 = vpack.c.b16 %v1390, %v1388
      %v1433 = vpack.c.b16 %v1393, %v1391
      %v1434 = vpack.c.b16 %v1394, %v1392
      %v1435 = vpack.c.b16 %v1397, %v1395
      %v1436 = vpack.c.b16 %v1398, %v1396
      %v1437 = vpack.c.b16 %v1401, %v1399
      %v1438 = vpack.c.b16 %v1402, %v1400
      %v1439 = vpack.c.b16 %v1405, %v1403
      %v1440 = vpack.c.b16 %v1406, %v1404
      %v1441 = vpack.c.b16 %v1409, %v1407
      %v1442 = vpack.c.b16 %v1410, %v1408
      %1475 = vmatprep.subr.bf16.mxu0 %v1412
      %1476 = vmatpush1.bf16.msra.mxu0 %v1411
      %1477 = vmatprep.subr.bf16.mxu0 %v1414
      %1478 = vmatpush1.bf16.msra.mxu0 %v1413
      %1479 = vmatprep.subr.bf16.mxu0 %v1416
      %1480 = vmatpush1.bf16.msra.mxu0 %v1415
      %1481 = vmatprep.subr.bf16.mxu0 %v1418
      %1482 = vmatpush1.bf16.msra.mxu0 %v1417
      %1483 = vmatprep.subr.bf16.mxu0 %v1420
      %1484 = vmatpush1.bf16.msra.mxu0 %v1419
      %1485 = vmatprep.subr.bf16.mxu0 %v1422
      %1486 = vmatpush1.bf16.msra.mxu0 %v1421
      %1487 = vmatprep.subr.bf16.mxu0 %v1424
      %1488 = vmatpush1.bf16.msra.mxu0 %v1423
      %1489 = vmatprep.subr.bf16.mxu0 %v1426
      %1490 = vmatpush1.bf16.msra.mxu0 %v1425
      %1491 = vmatprep.subr.bf16.mxu0 %v1428
      %1492 = vmatpush1.bf16.msra.mxu0 %v1427
      %1493 = vmatprep.subr.bf16.mxu0 %v1430
      %1494 = vmatpush1.bf16.msra.mxu0 %v1429
      %1495 = vmatprep.subr.bf16.mxu0 %v1432
      %1496 = vmatpush1.bf16.msra.mxu0 %v1431
      %1497 = vmatprep.subr.bf16.mxu0 %v1434
      %1498 = vmatpush1.bf16.msra.mxu0 %v1433
      %1499 = vmatprep.subr.bf16.mxu0 %v1436
      %1500 = vmatpush1.bf16.msra.mxu0 %v1435
      %1501 = vmatprep.subr.bf16.mxu0 %v1438
      %1502 = vmatpush1.bf16.msra.mxu0 %v1437
      %1503 = vmatprep.subr.bf16.mxu0 %v1440
      %1504 = vmatpush1.bf16.msra.mxu0 %v1439
      %1505 = vmatprep.subr.bf16.mxu0 %v1442
      %1506 = vmatpush1.bf16.msra.mxu0 %v1441
      %1507 = vmatprep.mubr.bf16.mxu0 %v1314
      %1508 = vmatmul.mubr.bf16.gmra.mrb[0].mxu0 %v1313
      %v1509 = vpop.f32.mrb[0].mxu0
      %v1510 = vadd.f32 0.0, %v1509
      %v1511 = vpop.f32.mrb[0].mxu0
      %v1512 = vadd.f32 0.0, %v1511
      %v1513 = vpop.f32.mrb[0].mxu0
      %v1514 = vpop.f32.mrb[0].mxu0
      %1515 = vdwg.mxu0
      %v1516 = vmax.f32 %v1510, 0.0
      %v1517 = vmax.f32 %v1512, 0.0
      %v1518 = vpack.c.bf16 %v1516, %v1516
      %v1519 = vpack.c.bf16 %v1517, %v1517
      %v1552 = vunpack.c.l.b16 %v1279
      %v1553 = vunpack.c.l.b16 %v1280
      %v1554 = vunpack.c.l.b16 %v1281
      %v1555 = vunpack.c.l.b16 %v1282
      %v1556 = vunpack.c.l.b16 %v1283
      %v1557 = vunpack.c.l.b16 %v1284
      %v1558 = vunpack.c.l.b16 %v1285
      %v1559 = vunpack.c.l.b16 %v1286
      %v1560 = vunpack.c.l.b16 %v1287
      %v1561 = vunpack.c.l.b16 %v1288
      %v1562 = vunpack.c.l.b16 %v1289
      %v1563 = vunpack.c.l.b16 %v1290
      %v1564 = vunpack.c.l.b16 %v1291
      %v1565 = vunpack.c.l.b16 %v1292
      %v1566 = vunpack.c.l.b16 %v1293
      %v1567 = vunpack.c.l.b16 %v1294
      %v1568 = vunpack.c.l.b16 %v1295
      %v1569 = vunpack.c.l.b16 %v1296
      %v1570 = vunpack.c.l.b16 %v1297
      %v1571 = vunpack.c.l.b16 %v1298
      %v1572 = vunpack.c.l.b16 %v1299
      %v1573 = vunpack.c.l.b16 %v1300
      %v1574 = vunpack.c.l.b16 %v1301
      %v1575 = vunpack.c.l.b16 %v1302
      %v1576 = vunpack.c.l.b16 %v1303
      %v1577 = vunpack.c.l.b16 %v1304
      %v1578 = vunpack.c.l.b16 %v1305
      %v1579 = vunpack.c.l.b16 %v1306
      %v1580 = vunpack.c.l.b16 %v1307
      %v1581 = vunpack.c.l.b16 %v1308
      %v1582 = vunpack.c.l.b16 %v1309
      %v1583 = vunpack.c.l.b16 %v1310
      %v1584 = vpack.c.b16 %v1553, %v1552
      %v1585 = vpack.c.b16 %v1555, %v1554
      %v1586 = vpack.c.b16 %v1557, %v1556
      %v1587 = vpack.c.b16 %v1559, %v1558
      %v1588 = vpack.c.b16 %v1561, %v1560
      %v1589 = vpack.c.b16 %v1563, %v1562
      %v1590 = vpack.c.b16 %v1565, %v1564
      %v1591 = vpack.c.b16 %v1567, %v1566
      %v1592 = vpack.c.b16 %v1569, %v1568
      %v1593 = vpack.c.b16 %v1571, %v1570
      %v1594 = vpack.c.b16 %v1573, %v1572
      %v1595 = vpack.c.b16 %v1575, %v1574
      %v1596 = vpack.c.b16 %v1577, %v1576
      %v1597 = vpack.c.b16 %v1579, %v1578
      %v1598 = vpack.c.b16 %v1581, %v1580
      %v1599 = vpack.c.b16 %v1583, %v1582
      %1616 = vmatprep.subr.bf16.mxu0 0
      %1617 = vmatpush1.bf16.msra.mxu0 %v1584
      %1618 = vmatprep.subr.bf16.mxu0 0
      %1619 = vmatpush1.bf16.msra.mxu0 %v1585
      %1620 = vmatprep.subr.bf16.mxu0 0
      %1621 = vmatpush1.bf16.msra.mxu0 %v1586
      %1622 = vmatprep.subr.bf16.mxu0 0
      %1623 = vmatpush1.bf16.msra.mxu0 %v1587
      %1624 = vmatprep.subr.bf16.mxu0 0
      %1625 = vmatpush1.bf16.msra.mxu0 %v1588
      %1626 = vmatprep.subr.bf16.mxu0 0
      %1627 = vmatpush1.bf16.msra.mxu0 %v1589
      %1628 = vmatprep.subr.bf16.mxu0 0
      %1629 = vmatpush1.bf16.msra.mxu0 %v1590
      %1630 = vmatprep.subr.bf16.mxu0 0
      %1631 = vmatpush1.bf16.msra.mxu0 %v1591
      %1632 = vmatprep.subr.bf16.mxu0 0
      %1633 = vmatpush1.bf16.msra.mxu0 %v1592
      %1634 = vmatprep.subr.bf16.mxu0 0
      %1635 = vmatpush1.bf16.msra.mxu0 %v1593
      %1636 = vmatprep.subr.bf16.mxu0 0
      %1637 = vmatpush1.bf16.msra.mxu0 %v1594
      %1638 = vmatprep.subr.bf16.mxu0 0
      %1639 = vmatpush1.bf16.msra.mxu0 %v1595
      %1640 = vmatprep.subr.bf16.mxu0 0
      %1641 = vmatpush1.bf16.msra.mxu0 %v1596
      %1642 = vmatprep.subr.bf16.mxu0 0
      %1643 = vmatpush1.bf16.msra.mxu0 %v1597
      %1644 = vmatprep.subr.bf16.mxu0 0
      %1645 = vmatpush1.bf16.msra.mxu0 %v1598
      %1646 = vmatprep.subr.bf16.mxu0 0
      %1647 = vmatpush1.bf16.msra.mxu0 %v1599
      %1648 = vmatprep.mubr.bf16.mxu0 %v1519
      %1649 = vmatmul.mubr.bf16.gmra.mrb[0].mxu0 %v1518
      %v1650 = vpop.f32.mrb[0].mxu0
      %v1651 = vadd.f32 0.0, %v1650
      %v1652 = vpop.f32.mrb[0].mxu0
      %v1653 = vpop.f32.mrb[0].mxu0
      %v1654 = vpop.f32.mrb[0].mxu0
      %1655 = vdwg.mxu0
      %1656 = vst [vmem:[#allocation14] sm:$0xff] %v1651
      %v1657 = vld [vmem:[#allocation12] sm:$0xff]
      %v1658 = vld [vmem:[#allocation12 + $0x8] sm:$0xff]
      %v1659 = vpack.c.bf16 %v1657, %v1657
      %v1660 = vpack.c.bf16 %v1658, %v1658
      %1661 = vmatprep.subr.bf16.mxu0 %v1412
      %1662 = vmatpush1.bf16.msra.mxu0 %v1411
      %1663 = vmatprep.subr.bf16.mxu0 %v1414
      %1664 = vmatpush1.bf16.msra.mxu0 %v1413
      %1665 = vmatprep.subr.bf16.mxu0 %v1416
      %1666 = vmatpush1.bf16.msra.mxu0 %v1415
      %1667 = vmatprep.subr.bf16.mxu0 %v1418
      %1668 = vmatpush1.bf16.msra.mxu0 %v1417
      %1669 = vmatprep.subr.bf16.mxu0 %v1420
      %1670 = vmatpush1.bf16.msra.mxu0 %v1419
      %1671 = vmatprep.subr.bf16.mxu0 %v1422
      %1672 = vmatpush1.bf16.msra.mxu0 %v1421
      %1673 = vmatprep.subr.bf16.mxu0 %v1424
      %1674 = vmatpush1.bf16.msra.mxu0 %v1423
      %1675 = vmatprep.subr.bf16.mxu0 %v1426
      %1676 = vmatpush1.bf16.msra.mxu0 %v1425
      %1677 = vmatprep.subr.bf16.mxu0 %v1428
      %1678 = vmatpush1.bf16.msra.mxu0 %v1427
      %1679 = vmatprep.subr.bf16.mxu0 %v1430
      %1680 = vmatpush1.bf16.msra.mxu0 %v1429
      %1681 = vmatprep.subr.bf16.mxu0 %v1432
      %1682 = vmatpush1.bf16.msra.mxu0 %v1431
      %1683 = vmatprep.subr.bf16.mxu0 %v1434
      %1684 = vmatpush1.bf16.msra.mxu0 %v1433
      %1685 = vmatprep.subr.bf16.mxu0 %v1436
      %1686 = vmatpush1.bf16.msra.mxu0 %v1435
      %1687 = vmatprep.subr.bf16.mxu0 %v1438
      %1688 = vmatpush1.bf16.msra.mxu0 %v1437
      %1689 = vmatprep.subr.bf16.mxu0 %v1440
      %1690 = vmatpush1.bf16.msra.mxu0 %v1439
      %1691 = vmatprep.subr.bf16.mxu0 %v1442
      %1692 = vmatpush1.bf16.msra.mxu0 %v1441
      %1693 = vmatprep.mubr.bf16.mxu0 %v1660
      %1694 = vmatmul.mubr.bf16.gmra.mrb[0].mxu0 %v1659
      %v1695 = vpop.f32.mrb[0].mxu0
      %v1696 = vadd.f32 0.0, %v1695
      %v1697 = vpop.f32.mrb[0].mxu0
      %v1698 = vadd.f32 0.0, %v1697
      %v1699 = vpop.f32.mrb[0].mxu0
      %v1700 = vpop.f32.mrb[0].mxu0
      %1701 = vdwg.mxu0
      %v1702 = vmax.f32 %v1696, 0.0
      %v1703 = vmax.f32 %v1698, 0.0
      %v1704 = vpack.c.bf16 %v1702, %v1702
      %v1705 = vpack.c.bf16 %v1703, %v1703
      %1706 = vmatprep.subr.bf16.mxu0 0
      %1707 = vmatpush1.bf16.msra.mxu0 %v1584
      %1708 = vmatprep.subr.bf16.mxu0 0
      %1709 = vmatpush1.bf16.msra.mxu0 %v1585
      %1710 = vmatprep.subr.bf16.mxu0 0
      %1711 = vmatpush1.bf16.msra.mxu0 %v1586
      %1712 = vmatprep.subr.bf16.mxu0 0
      %1713 = vmatpush1.bf16.msra.mxu0 %v1587
      %1714 = vmatprep.subr.bf16.mxu0 0
      %1715 = vmatpush1.bf16.msra.mxu0 %v1588
      %1716 = vmatprep.subr.bf16.mxu0 0
      %1717 = vmatpush1.bf16.msra.mxu0 %v1589
      %1718 = vmatprep.subr.bf16.mxu0 0
      %1719 = vmatpush1.bf16.msra.mxu0 %v1590
      %1720 = vmatprep.subr.bf16.mxu0 0
      %1721 = vmatpush1.bf16.msra.mxu0 %v1591
      %1722 = vmatprep.subr.bf16.mxu0 0
      %1723 = vmatpush1.bf16.msra.mxu0 %v1592
      %1724 = vmatprep.subr.bf16.mxu0 0
      %1725 = vmatpush1.bf16.msra.mxu0 %v1593
      %1726 = vmatprep.subr.bf16.mxu0 0
      %1727 = vmatpush1.bf16.msra.mxu0 %v1594
      %1728 = vmatprep.subr.bf16.mxu0 0
      %1729 = vmatpush1.bf16.msra.mxu0 %v1595
      %1730 = vmatprep.subr.bf16.mxu0 0
      %1731 = vmatpush1.bf16.msra.mxu0 %v1596
      %1732 = vmatprep.subr.bf16.mxu0 0
      %1733 = vmatpush1.bf16.msra.mxu0 %v1597
      %1734 = vmatprep.subr.bf16.mxu0 0
      %1735 = vmatpush1.bf16.msra.mxu0 %v1598
      %1736 = vmatprep.subr.bf16.mxu0 0
      %1737 = vmatpush1.bf16.msra.mxu0 %v1599
      %1738 = vmatprep.mubr.bf16.mxu0 %v1705
      %1739 = vmatmul.mubr.bf16.gmra.mrb[0].mxu0 %v1704
      %v1740 = vpop.f32.mrb[0].mxu0
      %v1741 = vadd.f32 0.0, %v1740
      %v1742 = vpop.f32.mrb[0].mxu0
      %v1743 = vpop.f32.mrb[0].mxu0
      %v1744 = vpop.f32.mrb[0].mxu0
      %1745 = vdwg.mxu0
      %1746 = vst [vmem:[#allocation15] sm:$0xff] %v1741
    $region53: #{tpu_custom_call.1} parent=1 // pred_fallthru
      _
    // Predicated region
    $region54: #{tpu_custom_call.1} parent=1 // pred_check
      _
    $region55: #{tpu_custom_call.1} parent=1 // pred_check_branch
      %1748 = sbr.rel (0) target = $region57
    $region56: #{tpu_custom_call.1} parent=1 // pred_region
      %s1750 = ssub.s32 256, 256
      %1751 = vsyncadd [#allocation4], %s1750
      %s1753 = sshll.u32 [#allocation11], 4
      %s1754 = int_to_ptr.vmem [resolvable:$true] %s1753
      %1756 = dma.vmem_to_hbm [thread:$0]  %s1754, 256, %s5, [#allocation4]
    $region57: #{tpu_custom_call.1} parent=1 // pred_fallthru
      _
    // Predicated region
    $region58: #{tpu_custom_call.1} parent=1 // pred_check
      _
    $region59: #{tpu_custom_call.1} parent=1 // pred_check_branch
      %1758 = sbr.rel (0) target = $region61
    $region60: #{tpu_custom_call.1} parent=1 // pred_region
      %s1760 = ssub.s32 256, 256
      %1761 = vsyncadd [#allocation13], %s1760
      %s1763 = sshll.u32 [#allocation12], 4
      %s1764 = int_to_ptr.vmem [resolvable:$true] %s1763
      %1766 = dma.vmem_to_hbm [thread:$0]  %s1764, 256, %s6, [#allocation13]
    $region61: #{tpu_custom_call.1} parent=1 // pred_fallthru
      _
    // Predicated region
    $region62: #{tpu_custom_call.1} parent=1 // pred_check
      _
    $region63: #{tpu_custom_call.1} parent=1 // pred_check_branch
      %1768 = sbr.rel (0) target = $region65
    $region64: #{tpu_custom_call.1} parent=1 // pred_region
      %s1770 = ssub.s32 128, 128
      %1771 = vsyncadd [#allocation13], %s1770
      %s1773 = sshll.u32 [#allocation14], 4
      %s1774 = int_to_ptr.vmem [resolvable:$true] %s1773
      %1776 = dma.vmem_to_hbm [thread:$0]  %s1774, 128, %s7, [#allocation13]
    $region65: #{tpu_custom_call.1} parent=1 // pred_fallthru
      _
    // Predicated region
    $region66: #{tpu_custom_call.1} parent=1 // pred_check
      _
    $region67: #{tpu_custom_call.1} parent=1 // pred_check_branch
      %1778 = sbr.rel (0) target = $region69
    $region68: #{tpu_custom_call.1} parent=1 // pred_region
      %s1780 = ssub.s32 128, 128
      %1781 = vsyncadd [#allocation16], %s1780
      %s1783 = sshll.u32 [#allocation15], 4
      %s1784 = int_to_ptr.vmem [resolvable:$true] %s1783
      %1786 = dma.vmem_to_hbm [thread:$0]  %s1784, 128, %s8, [#allocation16]
    $region69: #{tpu_custom_call.1} parent=1 // pred_fallthru
      _
    // Predicated region
    $region70: #{tpu_custom_call.1} parent=1 // pred_check
      _
    $region71: #{tpu_custom_call.1} parent=1 // pred_check_branch
      %1788 = sbr.rel (0) target = $region73
    $region72: #{tpu_custom_call.1} parent=1 // pred_region
      %1789 = dma.done [#allocation4], 256
    $region73: #{tpu_custom_call.1} parent=1 // pred_fallthru
      _
    // Predicated region
    $region74: #{tpu_custom_call.1} parent=1 // pred_check
      _
    $region75: #{tpu_custom_call.1} parent=1 // pred_check_branch
      %1791 = sbr.rel (0) target = $region77
    $region76: #{tpu_custom_call.1} parent=1 // pred_region
      %1792 = dma.done [#allocation13], 256
    $region77: #{tpu_custom_call.1} parent=1 // pred_fallthru
      _
    // Predicated region
    $region78: #{tpu_custom_call.1} parent=1 // pred_check
      _
    $region79: #{tpu_custom_call.1} parent=1 // pred_check_branch
      %1794 = sbr.rel (0) target = $region81
    $region80: #{tpu_custom_call.1} parent=1 // pred_region
      %1795 = dma.done [#allocation13], 128
    $region81: #{tpu_custom_call.1} parent=1 // pred_fallthru
      _
    // Predicated region
    $region82: #{tpu_custom_call.1} parent=1 // pred_check
      _
    $region83: #{tpu_custom_call.1} parent=1 // pred_check_branch
      %1797 = sbr.rel (0) target = $region85
    $region84: #{tpu_custom_call.1} parent=1 // pred_region
      %1798 = dma.done [#allocation16], 128
    $region85: #{tpu_custom_call.1} parent=1 // pred_fallthru
      _
    %1799 = vsyncpa [#allocation3], 1
    %1800 = vsyncpa [#allocation6], 1
    %1801 = vsyncpa [#allocation9], 1
    %1802 = vsyncpa [#allocation4], 1
    %1803 = vsyncpa [#allocation13], 1
    %1804 = vsyncpa [#allocation16], 1

</llo_original>
